<compile_context>
chip_gen: v7x
topology: tpu7x:2x2x1
jax: 0.10.0
libtpu: 0.0.40
codegen_flags: <defaults>
</compile_context>

<pallas_src>
import jax
import jax.numpy as jnp
from jax import lax
from jax.experimental import pallas as pl
from jax.experimental.pallas import tpu as pltpu


# ---------------------------------------------------------------------------
# activation
# ---------------------------------------------------------------------------
def _split_relu(x):
    # TODO(synk): NN_c's default activation is nn.ReLU(), which torch does not
    # define for complex tensors; sno1d uses it split-wise.  Applying ReLU to
    # the stacked [real; imag] array == relu(Re) + i*relu(Im).
    return jax.nn.relu(x)


# ---------------------------------------------------------------------------
# dot_general dimension-number patterns used inside the kernel
# ---------------------------------------------------------------------------
_NN = (((1,), (0,)), ((), ()))   # (m,k) x (k,n) -> (m,n)   standard
_NT = (((1,), (1,)), ((), ()))   # (m,k) x (n,k) -> (m,n)   contract last dims
_TN = (((0,), (0,)), ((), ()))   # (k,m) x (k,n) -> (m,n)   contract first dims


def _dot(a, b, dn):
    return lax.dot_general(a, b, dn,
                           precision=lax.Precision.HIGHEST,
                           preferred_element_type=jnp.float32)


# ---------------------------------------------------------------------------
# fused kernel: the whole NN_c layer chain for one (batch, X-tile) block
# ---------------------------------------------------------------------------
def _make_kernel(num_layers, activation):
    if num_layers == 1:
        # single layer: both input and output transposes fold away (plain NN dots)
        def kernel(ur_ref, ui_ref, ar_ref, ai_ref, br_ref, bi_ref,
                   or_ref, oi_ref):
            ur, ui = ur_ref[0], ui_ref[0]            # (tx, c_in)
            ar, ai = ar_ref[...], ai_ref[...]        # (c_in, c_out)
            or_ref[0] = _dot(ur, ar, _NN) - _dot(ui, ai, _NN) + br_ref[...]
            oi_ref[0] = _dot(ur, ai, _NN) + _dot(ui, ar, _NN) + bi_ref[...]
        return kernel

    def kernel(*refs):
        ur_ref, ui_ref = refs[0], refs[1]
        or_ref, oi_ref = refs[-2], refs[-1]

        # ---- layer 0: fold the (X,C)->(2C,X) input transpose into the dot (NT)
        w0r, w0i, b0 = refs[2][...], refs[3][...], refs[4][...]
        u = _dot(w0r, ur_ref[0], _NT) + _dot(w0i, ui_ref[0], _NT) + b0
        u = activation(u)                            # (2*c1, tx), lane-dense

        # ---- hidden layers: stacked complex block matmul, lane-dense (2C, tx)
        for l in range(1, num_layers - 1):
            w = refs[5 + 2 * (l - 1)][...]           # (2*c_next, 2*c_prev)
            b = refs[6 + 2 * (l - 1)][...]           # (2*c_next, 1)
            u = activation(_dot(w, u, _NN) + b)

        # ---- last layer: fold the (2C,X)->(X,C) output transpose into the dot
        #      (TN, weights pre-transposed in the wrapper) and split real/imag
        #      so both stores go straight to the (B, X, c_out) outputs.
        base = 5 + 2 * (num_layers - 2)
        wlr, wli = refs[base][...], refs[base + 1][...]      # (2*c_prev, c_out)
        blr, bli = refs[base + 2][...], refs[base + 3][...]  # (1, c_out)
        or_ref[0] = _dot(u, wlr, _TN) + blr
        oi_ref[0] = _dot(u, wli, _TN) + bli

    return kernel


# ---------------------------------------------------------------------------
# tiling / VMEM sizing
# ---------------------------------------------------------------------------
def _round_up(a, b):
    return (a + b - 1) // b * b


def _vmem_block_bytes(rows, cols):
    # f32 VMEM tiling pads the last dim to 128 lanes, second-minor to 8 sublanes.
    return _round_up(rows, 8) * _round_up(cols, 128) * 4


def _footprint_bytes(tx, sizes):
    c_in, c_out = sizes[0], sizes[-1]
    io = 2 * 2 * (_vmem_block_bytes(tx, c_in) + _vmem_block_bytes(tx, c_out))
    inter = sum(_vmem_block_bytes(2 * c, tx) for c in sizes[1:])
    return io + inter


def _choose_tile(Xp, B, sizes, budget_bytes=24 * 1024 * 1024):
    """Largest lane-aligned X tile that fits the VMEM budget; prefer >=4 grid
    steps so both v7x TensorCores get work."""
    for cand in (8192, 4096, 2048, 1024, 512, 256, 128):
        if Xp % cand != 0 or _footprint_bytes(cand, sizes) > budget_bytes:
            continue
        if B * (Xp // cand) >= 4 or cand == 128:
            return cand
    return 128


# ---------------------------------------------------------------------------
# forward wrapper
# ---------------------------------------------------------------------------
def nn_c_forward(u_real, u_imag, flat_params, sizes, *, activation=_split_relu):
    """NN_c forward.  u_real/u_imag: (B, X, c_in) float32 -> (vr, vi) each
    (B, X, c_out) float32."""
    B, X, c_in = u_real.shape
    assert c_in == sizes[0]
    c_out = sizes[-1]
    num_layers = len(sizes) - 1

    u_real = u_real.astype(jnp.float32)
    u_imag = u_imag.astype(jnp.float32)

    # Pad X up to a lane multiple so every tile is lane-aligned (only copies
    # when X is ragged; padded columns are sliced off at the end).
    Xp = _round_up(X, 128)
    if Xp != X:
        pad = ((0, 0), (0, Xp - X), (0, 0))
        u_real = jnp.pad(u_real, pad)
        u_imag = jnp.pad(u_imag, pad)

    tx = _choose_tile(Xp, B, sizes)
    grid = (B, Xp // tx)

    footprint = _footprint_bytes(tx, sizes)
    weight_bytes = sum(int(w.size) * 4 for w in flat_params)
    vmem_limit = int(min(48 * 1024 * 1024,
                         max(32 * 1024 * 1024,
                             2 * (footprint + 2 * weight_bytes))))

    in_specs = [pl.BlockSpec((1, tx, c_in), lambda b, xt: (b, xt, 0)),
                pl.BlockSpec((1, tx, c_in), lambda b, xt: (b, xt, 0))]
    for w in flat_params:                         # grid-invariant weights
        in_specs.append(pl.BlockSpec(w.shape, lambda b, xt: (0, 0)))

    out_specs = [pl.BlockSpec((1, tx, c_out), lambda b, xt: (b, xt, 0)),
                 pl.BlockSpec((1, tx, c_out), lambda b, xt: (b, xt, 0))]
    out_shape = [jax.ShapeDtypeStruct((B, Xp, c_out), jnp.float32),
                 jax.ShapeDtypeStruct((B, Xp, c_out), jnp.float32)]

    out_r, out_i = pl.pallas_call(
        _make_kernel(num_layers, activation),
        grid=grid,
        in_specs=in_specs,
        out_specs=out_specs,
        out_shape=out_shape,
        compiler_params=pltpu.CompilerParams(
            dimension_semantics=("parallel", "parallel"),
            vmem_limit_bytes=vmem_limit),
    )(u_real, u_imag, *flat_params)

    if Xp != X:
        out_r = out_r[:, :X, :]
        out_i = out_i[:, :X, :]
    return out_r, out_i


# ---------------------------------------------------------------------------
# parameter init (mirrors torch NN_c.np_c_layer_params) + hoisted re-packing
# ---------------------------------------------------------------------------
def init_params(key, sizes):
    params = []
    for m, n in zip(sizes[:-1], sizes[1:]):
        key, k0, k1, k2, k3 = jax.random.split(key, 5)
        params.append(dict(
            ar=jax.random.normal(k0, (m, n), dtype=jnp.float32) / m,
            ai=jax.random.normal(k1, (m, n), dtype=jnp.float32) / m,
            br=jax.random.normal(k2, (n,), dtype=jnp.float32),
            bi=jax.random.normal(k3, (1, n), dtype=jnp.float32),
        ))
    return params


def prep_params(params):
    """Hoisted, one-time re-packing of the complex weights into the exact
    shapes the fused kernel consumes (all layout work done outside the kernel).

    Lane-dense layer form:  [vr; vi] = [[ar^T, -ai^T], [ai^T, ar^T]] @ [ur; ui] + [br; bi]
    """
    L = len(params)
    if L == 1:
        p = params[0]
        n = p["ar"].shape[1]
        return [p["ar"].astype(jnp.float32), p["ai"].astype(jnp.float32),
                p["br"].reshape(1, n).astype(jnp.float32),
                p["bi"].reshape(1, n).astype(jnp.float32)]

    flat = []
    # first layer: real/imag input weights split (input transpose folds into NT dot)
    p = params[0]
    n = p["ar"].shape[1]
    flat.append(jnp.concatenate([p["ar"].T, p["ai"].T], axis=0).astype(jnp.float32))
    flat.append(jnp.concatenate([-p["ai"].T, p["ar"].T], axis=0).astype(jnp.float32))
    flat.append(jnp.concatenate([p["br"].reshape(n, 1),
                                 p["bi"].reshape(n, 1)], axis=0).astype(jnp.float32))
    # hidden layers: full stacked complex block matrix, column bias
    for p in params[1:-1]:
        n = p["ar"].shape[1]
        ar_t, ai_t = p["ar"].T, p["ai"].T
        flat.append(jnp.block([[ar_t, -ai_t], [ai_t, ar_t]]).astype(jnp.float32))
        flat.append(jnp.concatenate([p["br"].reshape(n, 1),
                                     p["bi"].reshape(n, 1)], axis=0).astype(jnp.float32))
    # last layer: pre-transposed for the TN dot, split real/imag, row biases
    p = params[-1]
    n = p["ar"].shape[1]
    flat.append(jnp.concatenate([p["ar"], -p["ai"]], axis=0).astype(jnp.float32))
    flat.append(jnp.concatenate([p["ai"], p["ar"]], axis=0).astype(jnp.float32))
    flat.append(p["br"].reshape(1, n).astype(jnp.float32))
    flat.append(p["bi"].reshape(1, n).astype(jnp.float32))
    return flat


# ---------------------------------------------------------------------------
# pure-JAX reference (complex), matching the torch forward exactly
# ---------------------------------------------------------------------------
def nn_c_reference(u_real, u_imag, params, act):
    U = (u_real + 1j * u_imag).astype(jnp.complex64)
    n = len(params)
    for i, p in enumerate(params):
        A = p["ar"] + 1j * p["ai"]
        b = p["br"] + 1j * p["bi"]          # (n,) + (1,n) -> (1,n)
        U = jnp.einsum("bxc,cd->bxd", U, A)
        U = U + b
        if i < n - 1:
            U = act(jnp.real(U)) + 1j * act(jnp.imag(U))
    return U


# ---------------------------------------------------------------------------
if __name__ == "__main__":
    key = jax.random.PRNGKey(0)
    B, X = 2, 16
    sizes = [4, 8, 8, 4]                     # small shapes for the demo

    k_p, k_r, k_i = jax.random.split(key, 3)
    params = init_params(k_p, sizes)
    u_real = jax.random.normal(k_r, (B, X, sizes[0]), dtype=jnp.float32)
    u_imag = jax.random.normal(k_i, (B, X, sizes[0]), dtype=jnp.float32)

    flat = prep_params(params)
    vr, vi = nn_c_forward(u_real, u_imag, flat, sizes)
    jax.block_until_ready((vr, vi))

    ref = nn_c_reference(u_real, u_imag, params, jax.nn.relu)
    assert vr.shape == (B, X, sizes[-1]) and vi.shape == (B, X, sizes[-1])
    assert vr.dtype == jnp.float32 and vi.dtype == jnp.float32
    assert jnp.allclose(vr, jnp.real(ref), atol=1e-3, rtol=1e-3)
    assert jnp.allclose(vi, jnp.imag(ref), atol=1e-3, rtol=1e-3)
    print("KERNEL_OK")
</pallas_src>

<mosaic_0001>
module attributes {stable_mosaic.version = 11 : i64} {
  func.func @kernel(%arg0: i32, %arg1: i32, %arg2: memref<1x128x4xf32, #tpu.memory_space<vmem>>, %arg3: memref<1x128x4xf32, #tpu.memory_space<vmem>>, %arg4: memref<16x4xf32, #tpu.memory_space<vmem>>, %arg5: memref<16x4xf32, #tpu.memory_space<vmem>>, %arg6: memref<16x1xf32, #tpu.memory_space<vmem>>, %arg7: memref<16x16xf32, #tpu.memory_space<vmem>>, %arg8: memref<16x1xf32, #tpu.memory_space<vmem>>, %arg9: memref<16x4xf32, #tpu.memory_space<vmem>>, %arg10: memref<16x4xf32, #tpu.memory_space<vmem>>, %arg11: memref<1x4xf32, #tpu.memory_space<vmem>>, %arg12: memref<1x4xf32, #tpu.memory_space<vmem>>, %arg13: memref<1x128x4xf32, #tpu.memory_space<vmem>>, %arg14: memref<1x128x4xf32, #tpu.memory_space<vmem>>) attributes {dimension_semantics = [#tpu.dimension_semantics<parallel>, #tpu.dimension_semantics<parallel>], iteration_bounds = array<i64: 2, 1>, scalar_prefetch = 0 : i64, scratch_operands = 0 : i64, tpu.core_type = #tpu.core_type<tc>, window_params = [{transform_indices = @transform_0, window_bounds = array<i64: 1, 128, 4>}, {transform_indices = @transform_1, window_bounds = array<i64: 1, 128, 4>}, {pipeline_mode = #tpu.pipeline_mode<synchronous>, transform_indices = @transform_2, window_bounds = array<i64: 16, 4>}, {pipeline_mode = #tpu.pipeline_mode<synchronous>, transform_indices = @transform_3, window_bounds = array<i64: 16, 4>}, {pipeline_mode = #tpu.pipeline_mode<synchronous>, transform_indices = @transform_4, window_bounds = array<i64: 16, 1>}, {pipeline_mode = #tpu.pipeline_mode<synchronous>, transform_indices = @transform_5, window_bounds = array<i64: 16, 16>}, {pipeline_mode = #tpu.pipeline_mode<synchronous>, transform_indices = @transform_6, window_bounds = array<i64: 16, 1>}, {pipeline_mode = #tpu.pipeline_mode<synchronous>, transform_indices = @transform_7, window_bounds = array<i64: 16, 4>}, {pipeline_mode = #tpu.pipeline_mode<synchronous>, transform_indices = @transform_8, window_bounds = array<i64: 16, 4>}, {pipeline_mode = #tpu.pipeline_mode<synchronous>, transform_indices = @transform_9, window_bounds = array<i64: 1, 4>}, {pipeline_mode = #tpu.pipeline_mode<synchronous>, transform_indices = @transform_10, window_bounds = array<i64: 1, 4>}, {transform_indices = @transform_11, window_bounds = array<i64: 1, 128, 4>}, {transform_indices = @transform_12, window_bounds = array<i64: 1, 128, 4>}]} {
    %c0 = arith.constant 0 : index
    %c0_0 = arith.constant 0 : index
    %0 = vector.load %arg4[%c0, %c0_0] : memref<16x4xf32, #tpu.memory_space<vmem>>, vector<16x4xf32>
    %c0_1 = arith.constant 0 : index
    %c0_2 = arith.constant 0 : index
    %1 = vector.load %arg5[%c0_1, %c0_2] : memref<16x4xf32, #tpu.memory_space<vmem>>, vector<16x4xf32>
    %c0_3 = arith.constant 0 : index
    %c0_4 = arith.constant 0 : index
    %2 = vector.load %arg6[%c0_3, %c0_4] : memref<16x1xf32, #tpu.memory_space<vmem>>, vector<16x1xf32>
    %c0_5 = arith.constant 0 : index
    %c0_6 = arith.constant 0 : index
    %c0_7 = arith.constant 0 : index
    %3 = vector.load %arg2[%c0_5, %c0_6, %c0_7] : memref<1x128x4xf32, #tpu.memory_space<vmem>>, vector<1x128x4xf32>
    %4 = vector.shape_cast %3 : vector<1x128x4xf32> to vector<128x4xf32>
    %cst = arith.constant dense<0.000000e+00> : vector<16x128xf32>
    %5 = tpu.matmul %0, %4, %cst {dimension_numbers = #tpu.dot_dimension_numbers<[1], [1], [0], [0], [0, 0, 1, 0], [], []>, precision = #tpu.contract_precision<fp32>} : vector<16x4xf32>, vector<128x4xf32>, vector<16x128xf32> -> vector<16x128xf32>
    %c0_8 = arith.constant 0 : index
    %c0_9 = arith.constant 0 : index
    %c0_10 = arith.constant 0 : index
    %6 = vector.load %arg3[%c0_8, %c0_9, %c0_10] : memref<1x128x4xf32, #tpu.memory_space<vmem>>, vector<1x128x4xf32>
    %7 = vector.shape_cast %6 : vector<1x128x4xf32> to vector<128x4xf32>
    %cst_11 = arith.constant dense<0.000000e+00> : vector<16x128xf32>
    %8 = tpu.matmul %1, %7, %cst_11 {dimension_numbers = #tpu.dot_dimension_numbers<[1], [1], [0], [0], [0, 0, 1, 0], [], []>, precision = #tpu.contract_precision<fp32>} : vector<16x4xf32>, vector<128x4xf32>, vector<16x128xf32> -> vector<16x128xf32>
    %9 = arith.addf %5, %8 : vector<16x128xf32>
    %10 = vector.broadcast %2 : vector<16x1xf32> to vector<16x128xf32>
    %11 = arith.addf %9, %10 : vector<16x128xf32>
    %cst_12 = arith.constant 0.000000e+00 : f32
    %12 = vector.broadcast %cst_12 : f32 to vector<16x128xf32>
    %13 = arith.maximumf %11, %12 : vector<16x128xf32>
    %c0_13 = arith.constant 0 : index
    %c0_14 = arith.constant 0 : index
    %14 = vector.load %arg7[%c0_13, %c0_14] : memref<16x16xf32, #tpu.memory_space<vmem>>, vector<16x16xf32>
    %c0_15 = arith.constant 0 : index
    %c0_16 = arith.constant 0 : index
    %15 = vector.load %arg8[%c0_15, %c0_16] : memref<16x1xf32, #tpu.memory_space<vmem>>, vector<16x1xf32>
    %cst_17 = arith.constant dense<0.000000e+00> : vector<16x128xf32>
    %16 = tpu.matmul %14, %13, %cst_17 {dimension_numbers = #tpu.dot_dimension_numbers<[1], [0], [0], [1], [0, 0, 1, 1], [], []>, precision = #tpu.contract_precision<fp32>} : vector<16x16xf32>, vector<16x128xf32>, vector<16x128xf32> -> vector<16x128xf32>
    %17 = vector.broadcast %15 : vector<16x1xf32> to vector<16x128xf32>
    %18 = arith.addf %16, %17 : vector<16x128xf32>
    %cst_18 = arith.constant 0.000000e+00 : f32
    %19 = vector.broadcast %cst_18 : f32 to vector<16x128xf32>
    %20 = arith.maximumf %18, %19 : vector<16x128xf32>
    %c0_19 = arith.constant 0 : index
    %c0_20 = arith.constant 0 : index
    %21 = vector.load %arg9[%c0_19, %c0_20] : memref<16x4xf32, #tpu.memory_space<vmem>>, vector<16x4xf32>
    %c0_21 = arith.constant 0 : index
    %c0_22 = arith.constant 0 : index
    %22 = vector.load %arg10[%c0_21, %c0_22] : memref<16x4xf32, #tpu.memory_space<vmem>>, vector<16x4xf32>
    %c0_23 = arith.constant 0 : index
    %c0_24 = arith.constant 0 : index
    %23 = vector.load %arg11[%c0_23, %c0_24] : memref<1x4xf32, #tpu.memory_space<vmem>>, vector<1x4xf32>
    %c0_25 = arith.constant 0 : index
    %c0_26 = arith.constant 0 : index
    %24 = vector.load %arg12[%c0_25, %c0_26] : memref<1x4xf32, #tpu.memory_space<vmem>>, vector<1x4xf32>
    %cst_27 = arith.constant dense<0.000000e+00> : vector<128x4xf32>
    %25 = tpu.matmul %20, %21, %cst_27 {dimension_numbers = #tpu.dot_dimension_numbers<[0], [0], [1], [1], [0, 1, 1, 1], [], []>, precision = #tpu.contract_precision<fp32>} : vector<16x128xf32>, vector<16x4xf32>, vector<128x4xf32> -> vector<128x4xf32>
    %26 = vector.broadcast %23 : vector<1x4xf32> to vector<128x4xf32>
    %27 = arith.addf %25, %26 : vector<128x4xf32>
    %c0_28 = arith.constant 0 : index
    %c0_29 = arith.constant 0 : index
    %c0_30 = arith.constant 0 : index
    %28 = vector.load %arg13[%c0_28, %c0_29, %c0_30] : memref<1x128x4xf32, #tpu.memory_space<vmem>>, vector<1x128x4xf32>
    %29 = vector.shape_cast %28 : vector<1x128x4xf32> to vector<128x4xf32>
    %30 = vector.shape_cast %27 : vector<128x4xf32> to vector<1x128x4xf32>
    tpu.vector_store %arg13[%c0_28, %c0_29, %c0_30], %30 {strides = array<i32>} : memref<1x128x4xf32, #tpu.memory_space<vmem>>, vector<1x128x4xf32>,
    %cst_31 = arith.constant dense<0.000000e+00> : vector<128x4xf32>
    %31 = tpu.matmul %20, %22, %cst_31 {dimension_numbers = #tpu.dot_dimension_numbers<[0], [0], [1], [1], [0, 1, 1, 1], [], []>, precision = #tpu.contract_precision<fp32>} : vector<16x128xf32>, vector<16x4xf32>, vector<128x4xf32> -> vector<128x4xf32>
    %32 = vector.broadcast %24 : vector<1x4xf32> to vector<128x4xf32>
    %33 = arith.addf %31, %32 : vector<128x4xf32>
    %c0_32 = arith.constant 0 : index
    %c0_33 = arith.constant 0 : index
    %c0_34 = arith.constant 0 : index
    %34 = vector.load %arg14[%c0_32, %c0_33, %c0_34] : memref<1x128x4xf32, #tpu.memory_space<vmem>>, vector<1x128x4xf32>
    %35 = vector.shape_cast %34 : vector<1x128x4xf32> to vector<128x4xf32>
    %36 = vector.shape_cast %33 : vector<128x4xf32> to vector<1x128x4xf32>
    tpu.vector_store %arg14[%c0_32, %c0_33, %c0_34], %36 {strides = array<i32>} : memref<1x128x4xf32, #tpu.memory_space<vmem>>, vector<1x128x4xf32>,
    return
  }
  func.func @transform_0(%arg0: i32, %arg1: i32) -> (i32, i32, i32) {
    %c0_i32 = arith.constant 0 : i32
    %c0_i32_0 = arith.constant 0 : i32
    return %arg0, %arg1, %c0_i32 : i32, i32, i32
  }
  func.func @transform_1(%arg0: i32, %arg1: i32) -> (i32, i32, i32) {
    %c0_i32 = arith.constant 0 : i32
    %c0_i32_0 = arith.constant 0 : i32
    return %arg0, %arg1, %c0_i32 : i32, i32, i32
  }
  func.func @transform_2(%arg0: i32, %arg1: i32) -> (i32, i32) {
    %c0_i32 = arith.constant 0 : i32
    %c0_i32_0 = arith.constant 0 : i32
    %c0_i32_1 = arith.constant 0 : i32
    return %c0_i32, %c0_i32_0 : i32, i32
  }
  func.func @transform_3(%arg0: i32, %arg1: i32) -> (i32, i32) {
    %c0_i32 = arith.constant 0 : i32
    %c0_i32_0 = arith.constant 0 : i32
    %c0_i32_1 = arith.constant 0 : i32
    return %c0_i32, %c0_i32_0 : i32, i32
  }
  func.func @transform_4(%arg0: i32, %arg1: i32) -> (i32, i32) {
    %c0_i32 = arith.constant 0 : i32
    %c0_i32_0 = arith.constant 0 : i32
    %c0_i32_1 = arith.constant 0 : i32
    return %c0_i32, %c0_i32_0 : i32, i32
  }
  func.func @transform_5(%arg0: i32, %arg1: i32) -> (i32, i32) {
    %c0_i32 = arith.constant 0 : i32
    %c0_i32_0 = arith.constant 0 : i32
    %c0_i32_1 = arith.constant 0 : i32
    return %c0_i32, %c0_i32_0 : i32, i32
  }
  func.func @transform_6(%arg0: i32, %arg1: i32) -> (i32, i32) {
    %c0_i32 = arith.constant 0 : i32
    %c0_i32_0 = arith.constant 0 : i32
    %c0_i32_1 = arith.constant 0 : i32
    return %c0_i32, %c0_i32_0 : i32, i32
  }
  func.func @transform_7(%arg0: i32, %arg1: i32) -> (i32, i32) {
    %c0_i32 = arith.constant 0 : i32
    %c0_i32_0 = arith.constant 0 : i32
    %c0_i32_1 = arith.constant 0 : i32
    return %c0_i32, %c0_i32_0 : i32, i32
  }
  func.func @transform_8(%arg0: i32, %arg1: i32) -> (i32, i32) {
    %c0_i32 = arith.constant 0 : i32
    %c0_i32_0 = arith.constant 0 : i32
    %c0_i32_1 = arith.constant 0 : i32
    return %c0_i32, %c0_i32_0 : i32, i32
  }
  func.func @transform_9(%arg0: i32, %arg1: i32) -> (i32, i32) {
    %c0_i32 = arith.constant 0 : i32
    %c0_i32_0 = arith.constant 0 : i32
    %c0_i32_1 = arith.constant 0 : i32
    return %c0_i32, %c0_i32_0 : i32, i32
  }
  func.func @transform_10(%arg0: i32, %arg1: i32) -> (i32, i32) {
    %c0_i32 = arith.constant 0 : i32
    %c0_i32_0 = arith.constant 0 : i32
    %c0_i32_1 = arith.constant 0 : i32
    return %c0_i32, %c0_i32_0 : i32, i32
  }
  func.func @transform_11(%arg0: i32, %arg1: i32) -> (i32, i32, i32) {
    %c0_i32 = arith.constant 0 : i32
    %c0_i32_0 = arith.constant 0 : i32
    return %arg0, %arg1, %c0_i32 : i32, i32, i32
  }
  func.func @transform_12(%arg0: i32, %arg1: i32) -> (i32, i32, i32) {
    %c0_i32 = arith.constant 0 : i32
    %c0_i32_0 = arith.constant 0 : i32
    return %arg0, %arg1, %c0_i32 : i32, i32, i32
  }
}

</mosaic_0001>

<llo_original>
// kernel: tpu_custom_call.1
$region0: #{tpu_custom_call.1}
  #allocation0 [shape = 'u32[]', space=smem, size = 0x4, offset = 0x4, fixed_abs, tag = 'smem constant byte address 0x4 - core index']
  #allocation1 [shape = 'u32[144,128]{1,0:T(1,128)}', space=vmem, size = 0x12000, scoped, tag = 'internal scratch']
  %s0 = inlined_call_operand.vmem [shape: f32[2,128,4], index: 0, kind: input, shape index: {}]
  %s1 = inlined_call_operand.vmem [shape: f32[2,128,4], index: 1, kind: input, shape index: {}]
  %s2 = inlined_call_operand.vmem [shape: f32[16,4], index: 2, kind: input, shape index: {}]
  %s3 = inlined_call_operand.vmem [shape: f32[16,4], index: 3, kind: input, shape index: {}]
  %s4 = inlined_call_operand.vmem [shape: f32[16,1], index: 4, kind: input, shape index: {}]
  %s5 = inlined_call_operand.vmem [shape: f32[16,16], index: 5, kind: input, shape index: {}]
  %s6 = inlined_call_operand.vmem [shape: f32[16,1], index: 6, kind: input, shape index: {}]
  %s7 = inlined_call_operand.vmem [shape: f32[16,4], index: 7, kind: input, shape index: {}]
  %s8 = inlined_call_operand.vmem [shape: f32[16,4], index: 8, kind: input, shape index: {}]
  %s9 = inlined_call_operand.vmem [shape: f32[1,4], index: 9, kind: input, shape index: {}]
  %s10 = inlined_call_operand.vmem [shape: f32[1,4], index: 10, kind: input, shape index: {}]
  %s11 = inlined_call_operand.vmem [shape: f32[2,128,4], index: 11, kind: output, shape index: {0}]
  %s12 = inlined_call_operand.vmem [shape: f32[2,128,4], index: 12, kind: output, shape index: {1}]
  %13 = xla_tuple %s11, %s12
  %s14 = sld [smem:[#allocation0]]
  $region85: #{tpu_custom_call.1} parent=0
    _
  %s16 = ssub.s32 1, %s14
  %s17 = scalar_select 0, %s16, %s14
  loop: start=0, step=1, limit=4
  $region2: #{tpu_custom_call.1} parent=0 // loop_pre_header
    _
  $region3: #{tpu_custom_call.1} parent=0 // loop_header
    %s19 = sphi 0, %s23
    %p20 = scmp.ge.s32.totalorder %s19, 4
    %s26 = sphi 0, %s38
    %s27 = sphi 0, %s34
    %s28 = sphi 0, %s26
    %s29 = sphi 0, %s27
    %s30 = sphi 0, %s28
    %s31 = sphi 0, %s29
    %s43 = sphi 0, %s45
    %s46 = sphi 0, %s43
    %s47 = sphi 0, %s46
    %s63 = sphi 0, %s47
    %s71 = sphi 0, %s73
    %s74 = sphi 0, %s71
    %s75 = sphi 0, %s74
    %s91 = sphi 0, %s75
    %s95 = sphi 0, %s95
    %s97 = sphi 0, %s95
    %s98 = sphi 0, %s97
    %s112 = sphi 0, %s98
    %s116 = sphi 0, %s116
    %s118 = sphi 0, %s116
    %s119 = sphi 0, %s118
    %s133 = sphi 0, %s119
    %s137 = sphi 0, %s137
    %s139 = sphi 0, %s137
    %s140 = sphi 0, %s139
    %s154 = sphi 0, %s140
    %s158 = sphi 0, %s158
    %s160 = sphi 0, %s158
    %s161 = sphi 0, %s160
    %s175 = sphi 0, %s161
    %s179 = sphi 0, %s179
    %s181 = sphi 0, %s179
    %s182 = sphi 0, %s181
    %s196 = sphi 0, %s182
    %s200 = sphi 0, %s200
    %s202 = sphi 0, %s200
    %s203 = sphi 0, %s202
    %s217 = sphi 0, %s203
    %s221 = sphi 0, %s221
    %s223 = sphi 0, %s221
    %s224 = sphi 0, %s223
    %s238 = sphi 0, %s224
    %s242 = sphi 0, %s242
    %s244 = sphi 0, %s242
    %s245 = sphi 0, %s244
    %s259 = sphi 0, %s245
    %s263 = sphi 0, %s263
    %s265 = sphi 0, %s263
    %s266 = sphi 0, %s265
    %s280 = sphi 0, %s266
    %s288 = sphi 0, %s290
    %s291 = sphi 0, %s288
    %s292 = sphi 0, %s291
    %s308 = sphi 0, %s292
    %s316 = sphi 0, %s318
    %s319 = sphi 0, %s316
    %s320 = sphi 0, %s319
    %s336 = sphi 0, %s320
  $region4: #{tpu_custom_call.1} parent=0 // loop_header_branch
    %22 = sbr.rel (%p20) target = $region8
  $region5: #{tpu_custom_call.1} parent=0 // loop_body
    %s24 = ssub.s32 %s19, 1
    %s25 = ssub.s32 %s19, 2
    %s32 = sadd.s32 1, %s27
    %p33 = scmp.ge.s32.totalorder %s32, 1
    %s34 = scalar_select %p33, 0, %s32
    %s35 = sadd.s32 1, %s26
    %s36 = scalar_select %p33, %s35, %s26
    %p37 = scmp.ge.s32.totalorder %s36, 2
    %s38 = scalar_select %p37, 0, %s36
    %s39 = ssub.s32 %s26, %s38
    %s40 = ssub.s32 %s27, %s34
    %s41 = sor.u32 %s39, %s40
    %p42 = scmp.eq.s32.totalorder %s41, 0
    %s44 = sadd.s32 %s43, 1
    %s45 = scalar_select %p42, %s43, %s44
    %p48 = pneg %p42
    %p49 = scmp.eq.s32.totalorder %s19, 1
    %p50 = por %p48, %p49
    %p51 = scmp.ne.s32.totalorder %s43, %s46
    %p52 = scmp.eq.s32.totalorder %s19, 0
    %p53 = por %p51, %p52
    %p54 = scmp.ne.s32.totalorder %s43, %s46
    %p55 = scmp.eq.s32.totalorder %s24, 1
    %p56 = por %p54, %p55
    %p57 = scmp.ne.s32.totalorder %s46, %s47
    %p58 = scmp.eq.s32.totalorder %s24, 0
    %p59 = por %p57, %p58
    %p60 = scmp.ne.s32.totalorder %s46, %s47
    %p61 = scmp.eq.s32.totalorder %s25, 1
    %p62 = por %p60, %p61
    %p64 = scmp.ne.s32.totalorder %s47, %s63
    %p65 = scmp.eq.s32.totalorder %s25, 0
    %p66 = por %p64, %p65
    %s67 = ssub.s32 %s26, %s38
    %s68 = ssub.s32 %s27, %s34
    %s69 = sor.u32 %s67, %s68
    %p70 = scmp.eq.s32.totalorder %s69, 0
    %s72 = sadd.s32 %s71, 1
    %s73 = scalar_select %p70, %s71, %s72
    %p76 = pneg %p70
    %p77 = scmp.eq.s32.totalorder %s19, 1
    %p78 = por %p76, %p77
    %p79 = scmp.ne.s32.totalorder %s71, %s74
    %p80 = scmp.eq.s32.totalorder %s19, 0
    %p81 = por %p79, %p80
    %p82 = scmp.ne.s32.totalorder %s71, %s74
    %p83 = scmp.eq.s32.totalorder %s24, 1
    %p84 = por %p82, %p83
    %p85 = scmp.ne.s32.totalorder %s74, %s75
    %p86 = scmp.eq.s32.totalorder %s24, 0
    %p87 = por %p85, %p86
    %p88 = scmp.ne.s32.totalorder %s74, %s75
    %p89 = scmp.eq.s32.totalorder %s25, 1
    %p90 = por %p88, %p89
    %p92 = scmp.ne.s32.totalorder %s75, %s91
    %p93 = scmp.eq.s32.totalorder %s25, 0
    %p94 = por %p92, %p93
    %s96 = sadd.s32 %s95, 1
    %p99 = scmp.eq.s32.totalorder %s19, 1
    %p100 = scmp.ne.s32.totalorder %s95, %s97
    %p101 = scmp.eq.s32.totalorder %s19, 0
    %p102 = por %p100, %p101
    %p103 = scmp.ne.s32.totalorder %s95, %s97
    %p104 = scmp.eq.s32.totalorder %s24, 1
    %p105 = por %p103, %p104
    %p106 = scmp.ne.s32.totalorder %s97, %s98
    %p107 = scmp.eq.s32.totalorder %s24, 0
    %p108 = por %p106, %p107
    %p109 = scmp.ne.s32.totalorder %s97, %s98
    %p110 = scmp.eq.s32.totalorder %s25, 1
    %p111 = por %p109, %p110
    %p113 = scmp.ne.s32.totalorder %s98, %s112
    %p114 = scmp.eq.s32.totalorder %s25, 0
    %p115 = por %p113, %p114
    %s117 = sadd.s32 %s116, 1
    %p120 = scmp.eq.s32.totalorder %s19, 1
    %p121 = scmp.ne.s32.totalorder %s116, %s118
    %p122 = scmp.eq.s32.totalorder %s19, 0
    %p123 = por %p121, %p122
    %p124 = scmp.ne.s32.totalorder %s116, %s118
    %p125 = scmp.eq.s32.totalorder %s24, 1
    %p126 = por %p124, %p125
    %p127 = scmp.ne.s32.totalorder %s118, %s119
    %p128 = scmp.eq.s32.totalorder %s24, 0
    %p129 = por %p127, %p128
    %p130 = scmp.ne.s32.totalorder %s118, %s119
    %p131 = scmp.eq.s32.totalorder %s25, 1
    %p132 = por %p130, %p131
    %p134 = scmp.ne.s32.totalorder %s119, %s133
    %p135 = scmp.eq.s32.totalorder %s25, 0
    %p136 = por %p134, %p135
    %s138 = sadd.s32 %s137, 1
    %p141 = scmp.eq.s32.totalorder %s19, 1
    %p142 = scmp.ne.s32.totalorder %s137, %s139
    %p143 = scmp.eq.s32.totalorder %s19, 0
    %p144 = por %p142, %p143
    %p145 = scmp.ne.s32.totalorder %s137, %s139
    %p146 = scmp.eq.s32.totalorder %s24, 1
    %p147 = por %p145, %p146
    %p148 = scmp.ne.s32.totalorder %s139, %s140
    %p149 = scmp.eq.s32.totalorder %s24, 0
    %p150 = por %p148, %p149
    %p151 = scmp.ne.s32.totalorder %s139, %s140
    %p152 = scmp.eq.s32.totalorder %s25, 1
    %p153 = por %p151, %p152
    %p155 = scmp.ne.s32.totalorder %s140, %s154
    %p156 = scmp.eq.s32.totalorder %s25, 0
    %p157 = por %p155, %p156
    %s159 = sadd.s32 %s158, 1
    %p162 = scmp.eq.s32.totalorder %s19, 1
    %p163 = scmp.ne.s32.totalorder %s158, %s160
    %p164 = scmp.eq.s32.totalorder %s19, 0
    %p165 = por %p163, %p164
    %p166 = scmp.ne.s32.totalorder %s158, %s160
    %p167 = scmp.eq.s32.totalorder %s24, 1
    %p168 = por %p166, %p167
    %p169 = scmp.ne.s32.totalorder %s160, %s161
    %p170 = scmp.eq.s32.totalorder %s24, 0
    %p171 = por %p169, %p170
    %p172 = scmp.ne.s32.totalorder %s160, %s161
    %p173 = scmp.eq.s32.totalorder %s25, 1
    %p174 = por %p172, %p173
    %p176 = scmp.ne.s32.totalorder %s161, %s175
    %p177 = scmp.eq.s32.totalorder %s25, 0
    %p178 = por %p176, %p177
    %s180 = sadd.s32 %s179, 1
    %p183 = scmp.eq.s32.totalorder %s19, 1
    %p184 = scmp.ne.s32.totalorder %s179, %s181
    %p185 = scmp.eq.s32.totalorder %s19, 0
    %p186 = por %p184, %p185
    %p187 = scmp.ne.s32.totalorder %s179, %s181
    %p188 = scmp.eq.s32.totalorder %s24, 1
    %p189 = por %p187, %p188
    %p190 = scmp.ne.s32.totalorder %s181, %s182
    %p191 = scmp.eq.s32.totalorder %s24, 0
    %p192 = por %p190, %p191
    %p193 = scmp.ne.s32.totalorder %s181, %s182
    %p194 = scmp.eq.s32.totalorder %s25, 1
    %p195 = por %p193, %p194
    %p197 = scmp.ne.s32.totalorder %s182, %s196
    %p198 = scmp.eq.s32.totalorder %s25, 0
    %p199 = por %p197, %p198
    %s201 = sadd.s32 %s200, 1
    %p204 = scmp.eq.s32.totalorder %s19, 1
    %p205 = scmp.ne.s32.totalorder %s200, %s202
    %p206 = scmp.eq.s32.totalorder %s19, 0
    %p207 = por %p205, %p206
    %p208 = scmp.ne.s32.totalorder %s200, %s202
    %p209 = scmp.eq.s32.totalorder %s24, 1
    %p210 = por %p208, %p209
    %p211 = scmp.ne.s32.totalorder %s202, %s203
    %p212 = scmp.eq.s32.totalorder %s24, 0
    %p213 = por %p211, %p212
    %p214 = scmp.ne.s32.totalorder %s202, %s203
    %p215 = scmp.eq.s32.totalorder %s25, 1
    %p216 = por %p214, %p215
    %p218 = scmp.ne.s32.totalorder %s203, %s217
    %p219 = scmp.eq.s32.totalorder %s25, 0
    %p220 = por %p218, %p219
    %s222 = sadd.s32 %s221, 1
    %p225 = scmp.eq.s32.totalorder %s19, 1
    %p226 = scmp.ne.s32.totalorder %s221, %s223
    %p227 = scmp.eq.s32.totalorder %s19, 0
    %p228 = por %p226, %p227
    %p229 = scmp.ne.s32.totalorder %s221, %s223
    %p230 = scmp.eq.s32.totalorder %s24, 1
    %p231 = por %p229, %p230
    %p232 = scmp.ne.s32.totalorder %s223, %s224
    %p233 = scmp.eq.s32.totalorder %s24, 0
    %p234 = por %p232, %p233
    %p235 = scmp.ne.s32.totalorder %s223, %s224
    %p236 = scmp.eq.s32.totalorder %s25, 1
    %p237 = por %p235, %p236
    %p239 = scmp.ne.s32.totalorder %s224, %s238
    %p240 = scmp.eq.s32.totalorder %s25, 0
    %p241 = por %p239, %p240
    %s243 = sadd.s32 %s242, 1
    %p246 = scmp.eq.s32.totalorder %s19, 1
    %p247 = scmp.ne.s32.totalorder %s242, %s244
    %p248 = scmp.eq.s32.totalorder %s19, 0
    %p249 = por %p247, %p248
    %p250 = scmp.ne.s32.totalorder %s242, %s244
    %p251 = scmp.eq.s32.totalorder %s24, 1
    %p252 = por %p250, %p251
    %p253 = scmp.ne.s32.totalorder %s244, %s245
    %p254 = scmp.eq.s32.totalorder %s24, 0
    %p255 = por %p253, %p254
    %p256 = scmp.ne.s32.totalorder %s244, %s245
    %p257 = scmp.eq.s32.totalorder %s25, 1
    %p258 = por %p256, %p257
    %p260 = scmp.ne.s32.totalorder %s245, %s259
    %p261 = scmp.eq.s32.totalorder %s25, 0
    %p262 = por %p260, %p261
    %s264 = sadd.s32 %s263, 1
    %p267 = scmp.eq.s32.totalorder %s19, 1
    %p268 = scmp.ne.s32.totalorder %s263, %s265
    %p269 = scmp.eq.s32.totalorder %s19, 0
    %p270 = por %p268, %p269
    %p271 = scmp.ne.s32.totalorder %s263, %s265
    %p272 = scmp.eq.s32.totalorder %s24, 1
    %p273 = por %p271, %p272
    %p274 = scmp.ne.s32.totalorder %s265, %s266
    %p275 = scmp.eq.s32.totalorder %s24, 0
    %p276 = por %p274, %p275
    %p277 = scmp.ne.s32.totalorder %s265, %s266
    %p278 = scmp.eq.s32.totalorder %s25, 1
    %p279 = por %p277, %p278
    %p281 = scmp.ne.s32.totalorder %s266, %s280
    %p282 = scmp.eq.s32.totalorder %s25, 0
    %p283 = por %p281, %p282
    %s284 = ssub.s32 %s26, %s38
    %s285 = ssub.s32 %s27, %s34
    %s286 = sor.u32 %s284, %s285
    %p287 = scmp.eq.s32.totalorder %s286, 0
    %s289 = sadd.s32 %s288, 1
    %s290 = scalar_select %p287, %s288, %s289
    %p293 = pneg %p287
    %p294 = scmp.eq.s32.totalorder %s19, 1
    %p295 = por %p293, %p294
    %p296 = scmp.ne.s32.totalorder %s288, %s291
    %p297 = scmp.eq.s32.totalorder %s19, 0
    %p298 = por %p296, %p297
    %p299 = scmp.ne.s32.totalorder %s288, %s291
    %p300 = scmp.eq.s32.totalorder %s24, 1
    %p301 = por %p299, %p300
    %p302 = scmp.ne.s32.totalorder %s291, %s292
    %p303 = scmp.eq.s32.totalorder %s24, 0
    %p304 = por %p302, %p303
    %p305 = scmp.ne.s32.totalorder %s291, %s292
    %p306 = scmp.eq.s32.totalorder %s25, 1
    %p307 = por %p305, %p306
    %p309 = scmp.ne.s32.totalorder %s292, %s308
    %p310 = scmp.eq.s32.totalorder %s25, 0
    %p311 = por %p309, %p310
    %s312 = ssub.s32 %s26, %s38
    %s313 = ssub.s32 %s27, %s34
    %s314 = sor.u32 %s312, %s313
    %p315 = scmp.eq.s32.totalorder %s314, 0
    %s317 = sadd.s32 %s316, 1
    %s318 = scalar_select %p315, %s316, %s317
    %p321 = pneg %p315
    %p322 = scmp.eq.s32.totalorder %s19, 1
    %p323 = por %p321, %p322
    %p324 = scmp.ne.s32.totalorder %s316, %s319
    %p325 = scmp.eq.s32.totalorder %s19, 0
    %p326 = por %p324, %p325
    %p327 = scmp.ne.s32.totalorder %s316, %s319
    %p328 = scmp.eq.s32.totalorder %s24, 1
    %p329 = por %p327, %p328
    %p330 = scmp.ne.s32.totalorder %s319, %s320
    %p331 = scmp.eq.s32.totalorder %s24, 0
    %p332 = por %p330, %p331
    %p333 = scmp.ne.s32.totalorder %s319, %s320
    %p334 = scmp.eq.s32.totalorder %s25, 1
    %p335 = por %p333, %p334
    %p337 = scmp.ne.s32.totalorder %s320, %s336
    %p338 = scmp.eq.s32.totalorder %s25, 0
    %p339 = por %p337, %p338
    %p340 = scmp.le.s32.totalorder 1, %s19
    %p341 = scmp.lt.s32.totalorder %s19, 3
    %p342 = pnand %p340, %p341
    %p343 = pneg %p342
    // Predicated region
    $region9: #{tpu_custom_call.1} parent=5 // pred_check
      _
    $region10: #{tpu_custom_call.1} parent=5 // pred_check_branch
      %345 = sbr.rel (%p342) target = $region12
    $region11: #{tpu_custom_call.1} parent=5 // pred_region
      %s346 = ssub.s32 %s19, 1
      // Predicated region
      $region13: #{tpu_custom_call.1} parent=11 // pred_check
        %p347 = pneg %p108
      $region14: #{tpu_custom_call.1} parent=11 // pred_check_branch
        %349 = sbr.rel (%p347) target = $region16
      $region15: #{tpu_custom_call.1} parent=11 // pred_region
        _
      $region16: #{tpu_custom_call.1} parent=11 // pred_fallthru
        _
      // Predicated region
      $region17: #{tpu_custom_call.1} parent=11 // pred_check
        %p350 = pneg %p129
      $region18: #{tpu_custom_call.1} parent=11 // pred_check_branch
        %352 = sbr.rel (%p350) target = $region20
      $region19: #{tpu_custom_call.1} parent=11 // pred_region
        _
      $region20: #{tpu_custom_call.1} parent=11 // pred_fallthru
        _
      // Predicated region
      $region21: #{tpu_custom_call.1} parent=11 // pred_check
        %p353 = pneg %p150
      $region22: #{tpu_custom_call.1} parent=11 // pred_check_branch
        %355 = sbr.rel (%p353) target = $region24
      $region23: #{tpu_custom_call.1} parent=11 // pred_region
        _
      $region24: #{tpu_custom_call.1} parent=11 // pred_fallthru
        _
      // Predicated region
      $region25: #{tpu_custom_call.1} parent=11 // pred_check
        %p356 = pneg %p171
      $region26: #{tpu_custom_call.1} parent=11 // pred_check_branch
        %358 = sbr.rel (%p356) target = $region28
      $region27: #{tpu_custom_call.1} parent=11 // pred_region
        _
      $region28: #{tpu_custom_call.1} parent=11 // pred_fallthru
        _
      // Predicated region
      $region29: #{tpu_custom_call.1} parent=11 // pred_check
        %p359 = pneg %p192
      $region30: #{tpu_custom_call.1} parent=11 // pred_check_branch
        %361 = sbr.rel (%p359) target = $region32
      $region31: #{tpu_custom_call.1} parent=11 // pred_region
        _
      $region32: #{tpu_custom_call.1} parent=11 // pred_fallthru
        _
      // Predicated region
      $region33: #{tpu_custom_call.1} parent=11 // pred_check
        %p362 = pneg %p213
      $region34: #{tpu_custom_call.1} parent=11 // pred_check_branch
        %364 = sbr.rel (%p362) target = $region36
      $region35: #{tpu_custom_call.1} parent=11 // pred_region
        _
      $region36: #{tpu_custom_call.1} parent=11 // pred_fallthru
        _
      // Predicated region
      $region37: #{tpu_custom_call.1} parent=11 // pred_check
        %p365 = pneg %p234
      $region38: #{tpu_custom_call.1} parent=11 // pred_check_branch
        %367 = sbr.rel (%p365) target = $region40
      $region39: #{tpu_custom_call.1} parent=11 // pred_region
        _
      $region40: #{tpu_custom_call.1} parent=11 // pred_fallthru
        _
      // Predicated region
      $region41: #{tpu_custom_call.1} parent=11 // pred_check
        %p368 = pneg %p255
      $region42: #{tpu_custom_call.1} parent=11 // pred_check_branch
        %370 = sbr.rel (%p368) target = $region44
      $region43: #{tpu_custom_call.1} parent=11 // pred_region
        _
      $region44: #{tpu_custom_call.1} parent=11 // pred_fallthru
        _
      // Predicated region
      $region45: #{tpu_custom_call.1} parent=11 // pred_check
        %p371 = pneg %p276
      $region46: #{tpu_custom_call.1} parent=11 // pred_check_branch
        %373 = sbr.rel (%p371) target = $region48
      $region47: #{tpu_custom_call.1} parent=11 // pred_region
        _
      $region48: #{tpu_custom_call.1} parent=11 // pred_fallthru
        _
    $region12: #{tpu_custom_call.1} parent=5 // pred_fallthru
      _
    %p374 = scmp.lt.s32.totalorder %s19, 2
    // Predicated region
    $region49: #{tpu_custom_call.1} parent=5 // pred_check
      %p375 = pneg %p374
    $region50: #{tpu_custom_call.1} parent=5 // pred_check_branch
      %377 = sbr.rel (%p375) target = $region52
    $region51: #{tpu_custom_call.1} parent=5 // pred_region
      // Predicated region
      $region53: #{tpu_custom_call.1} parent=51 // pred_check
        %p378 = pneg %p53
      $region54: #{tpu_custom_call.1} parent=51 // pred_check_branch
        %380 = sbr.rel (%p378) target = $region56
      $region55: #{tpu_custom_call.1} parent=51 // pred_region
        %s381 = smul.u32 16, %s27
        %p382 = scmp.lt.s32.totalorder %s26, 1
        %s383 = scalar_select %p382, %s26, 1
        %p384 = scmp.lt.s32.totalorder %s381, 15
        %s385 = scalar_select %p384, %s381, 15
        %s386 = smul.addr %s383, 16
        %s387 = sadd.s32 %s385, %s386
        %s388 = smul.addr %s387, 8
        %s389 = scalar_lea.vmem %s0, %s388
        %s390 = smul.u32 16, %s27
      $region56: #{tpu_custom_call.1} parent=51 // pred_fallthru
        _
      // Predicated region
      $region57: #{tpu_custom_call.1} parent=51 // pred_check
        %p391 = pneg %p81
      $region58: #{tpu_custom_call.1} parent=51 // pred_check_branch
        %393 = sbr.rel (%p391) target = $region60
      $region59: #{tpu_custom_call.1} parent=51 // pred_region
        %s394 = smul.u32 16, %s27
        %p395 = scmp.lt.s32.totalorder %s26, 1
        %s396 = scalar_select %p395, %s26, 1
        %p397 = scmp.lt.s32.totalorder %s394, 15
        %s398 = scalar_select %p397, %s394, 15
        %s399 = smul.addr %s396, 16
        %s400 = sadd.s32 %s398, %s399
        %s401 = smul.addr %s400, 8
        %s402 = scalar_lea.vmem %s1, %s401
        %s403 = smul.u32 16, %s27
      $region60: #{tpu_custom_call.1} parent=51 // pred_fallthru
        _
    $region52: #{tpu_custom_call.1} parent=5 // pred_fallthru
      _
    %p404 = scmp.le.s32.totalorder 1, %s19
    %p405 = scmp.lt.s32.totalorder %s19, 3
    %p406 = pnand %p404, %p405
    %p407 = pneg %p406
    // Predicated region
    $region61: #{tpu_custom_call.1} parent=5 // pred_check
      _
    $region62: #{tpu_custom_call.1} parent=5 // pred_check_branch
      %409 = sbr.rel (%p406) target = $region64
    $region63: #{tpu_custom_call.1} parent=5 // pred_region
      %s410 = ssub.s32 %s19, 1
      %s411 = smul.u32 16, %s29
      %p412 = scmp.lt.s32.totalorder %s28, 1
      %s413 = scalar_select %p412, %s28, 1
      %p414 = scmp.lt.s32.totalorder %s411, 15
      %s415 = scalar_select %p414, %s411, 15
      %s416 = smul.addr %s413, 16
      %s417 = sadd.s32 %s415, %s416
      %s418 = smul.addr %s417, 8
      %s419 = scalar_lea.vmem %s0, %s418
      %p420 = pneg %p59
      %p421 = pneg %p56
      %s422 = smul.u32 16, %s29
      %p423 = scmp.lt.s32.totalorder %s28, 1
      %s424 = scalar_select %p423, %s28, 1
      %p425 = scmp.lt.s32.totalorder %s422, 15
      %s426 = scalar_select %p425, %s422, 15
      %s427 = smul.addr %s424, 16
      %s428 = sadd.s32 %s426, %s427
      %s429 = smul.addr %s428, 8
      %s430 = scalar_lea.vmem %s1, %s429
      %p431 = pneg %p87
      %p432 = pneg %p84
      %p433 = pneg %p108
      %p434 = pneg %p105
      %p435 = pneg %p129
      %p436 = pneg %p126
      %p437 = pneg %p150
      %p438 = pneg %p147
      %p439 = pneg %p171
      %p440 = pneg %p168
      %p441 = pneg %p192
      %p442 = pneg %p189
      %p443 = pneg %p213
      %p444 = pneg %p210
      %p445 = pneg %p234
      %p446 = pneg %p231
      %p447 = pneg %p255
      %p448 = pneg %p252
      %p449 = pneg %p276
      %p450 = pneg %p273
      %p451 = pneg %p304
      %p452 = pneg %p301
      %s453 = smul.u32 16, %s29
      %p454 = scmp.lt.s32.totalorder %s28, 1
      %s455 = scalar_select %p454, %s28, 1
      %p456 = scmp.lt.s32.totalorder %s453, 15
      %s457 = scalar_select %p456, %s453, 15
      %s458 = smul.addr %s455, 16
      %s459 = sadd.s32 %s457, %s458
      %s460 = smul.addr %s459, 8
      %s461 = scalar_lea.vmem %s11, %s460
      %p462 = pneg %p332
      %p463 = pneg %p329
      %s464 = smul.u32 16, %s29
      %p465 = scmp.lt.s32.totalorder %s28, 1
      %s466 = scalar_select %p465, %s28, 1
      %p467 = scmp.lt.s32.totalorder %s464, 15
      %s468 = scalar_select %p467, %s464, 15
      %s469 = smul.addr %s466, 16
      %s470 = sadd.s32 %s468, %s469
      %s471 = smul.addr %s470, 8
      %s472 = scalar_lea.vmem %s12, %s471
      %s473 = smul.u32 16, %s29
      %p474 = scmp.lt.s32.totalorder %s28, 1
      %s475 = scalar_select %p474, %s28, 1
      %p476 = scmp.lt.s32.totalorder %s473, 15
      %s477 = scalar_select %p476, %s473, 15
      %s478 = smul.addr %s475, 16
      %s479 = sadd.s32 %s477, %s478
      %s480 = smul.addr %s479, 8
      %s481 = scalar_lea.vmem %s0, %s480
      %s482 = smul.u32 16, %s29
      %s483 = smul.u32 16, %s29
      %p484 = scmp.lt.s32.totalorder %s28, 1
      %s485 = scalar_select %p484, %s28, 1
      %p486 = scmp.lt.s32.totalorder %s483, 15
      %s487 = scalar_select %p486, %s483, 15
      %s488 = smul.addr %s485, 16
      %s489 = sadd.s32 %s487, %s488
      %s490 = smul.addr %s489, 8
      %s491 = scalar_lea.vmem %s1, %s490
      %s492 = smul.u32 16, %s29
      %s493 = smul.u32 16, %s29
      %p494 = scmp.lt.s32.totalorder %s28, 1
      %s495 = scalar_select %p494, %s28, 1
      %p496 = scmp.lt.s32.totalorder %s493, 15
      %s497 = scalar_select %p496, %s493, 15
      %s498 = smul.addr %s495, 16
      %s499 = sadd.s32 %s497, %s498
      %s500 = smul.addr %s499, 8
      %s501 = scalar_lea.vmem %s11, %s500
      %s502 = smul.u32 16, %s29
      %s503 = smul.u32 16, %s29
      %p504 = scmp.lt.s32.totalorder %s28, 1
      %s505 = scalar_select %p504, %s28, 1
      %p506 = scmp.lt.s32.totalorder %s503, 15
      %s507 = scalar_select %p506, %s503, 15
      %s508 = smul.addr %s505, 16
      %s509 = sadd.s32 %s507, %s508
      %s510 = smul.addr %s509, 8
      %s511 = scalar_lea.vmem %s12, %s510
      %s512 = smul.u32 16, %s29
      %v513 = vld [vmem:[%s2] sm:$0xff]
      %v514 = vld [vmem:[%s2 + $0x8] sm:$0xff]
      %v515 = vld [vmem:[%s3] sm:$0xff]
      %v516 = vld [vmem:[%s3 + $0x8] sm:$0xff]
      %v517 = vld [vmem:[%s4] sm:$0xff]
      %v518 = vld [vmem:[%s4 + $0x8] sm:$0xff]
      %v519 = vld [vmem:[%s481] sm:$0xff]
      %v520 = vld [vmem:[%s481 + $0x8] sm:$0xff]
      %v521 = vld [vmem:[%s481 + $0x10] sm:$0xff]
      %v522 = vld [vmem:[%s481 + $0x18] sm:$0xff]
      %v523 = vld [vmem:[%s481 + $0x20] sm:$0xff]
      %v524 = vld [vmem:[%s481 + $0x28] sm:$0xff]
      %v525 = vld [vmem:[%s481 + $0x30] sm:$0xff]
      %v526 = vld [vmem:[%s481 + $0x38] sm:$0xff]
      %v527 = vld [vmem:[%s481 + $0x40] sm:$0xff]
      %v528 = vld [vmem:[%s481 + $0x48] sm:$0xff]
      %v529 = vld [vmem:[%s481 + $0x50] sm:$0xff]
      %v530 = vld [vmem:[%s481 + $0x58] sm:$0xff]
      %v531 = vld [vmem:[%s481 + $0x60] sm:$0xff]
      %v532 = vld [vmem:[%s481 + $0x68] sm:$0xff]
      %v533 = vld [vmem:[%s481 + $0x70] sm:$0xff]
      %v534 = vld [vmem:[%s481 + $0x78] sm:$0xff]
      %v535 = vld [vmem:[%s491] sm:$0xff]
      %v536 = vld [vmem:[%s491 + $0x8] sm:$0xff]
      %v537 = vld [vmem:[%s491 + $0x10] sm:$0xff]
      %v538 = vld [vmem:[%s491 + $0x18] sm:$0xff]
      %v539 = vld [vmem:[%s491 + $0x20] sm:$0xff]
      %v540 = vld [vmem:[%s491 + $0x28] sm:$0xff]
      %v541 = vld [vmem:[%s491 + $0x30] sm:$0xff]
      %v542 = vld [vmem:[%s491 + $0x38] sm:$0xff]
      %v543 = vld [vmem:[%s491 + $0x40] sm:$0xff]
      %v544 = vld [vmem:[%s491 + $0x48] sm:$0xff]
      %v545 = vld [vmem:[%s491 + $0x50] sm:$0xff]
      %v546 = vld [vmem:[%s491 + $0x58] sm:$0xff]
      %v547 = vld [vmem:[%s491 + $0x60] sm:$0xff]
      %v548 = vld [vmem:[%s491 + $0x68] sm:$0xff]
      %v549 = vld [vmem:[%s491 + $0x70] sm:$0xff]
      %v550 = vld [vmem:[%s491 + $0x78] sm:$0xff]
      %vm551 = vcmask 31744
      %v553 = vsel %vm551, %v515, 0
      %v556 = vsel %vm551, %v516, 0
      %v559 = vsel %vm551, %v535, 0
      %v562 = vsel %vm551, %v536, 0
      %v565 = vsel %vm551, %v537, 0
      %v568 = vsel %vm551, %v538, 0
      %v571 = vsel %vm551, %v539, 0
      %v574 = vsel %vm551, %v540, 0
      %v577 = vsel %vm551, %v541, 0
      %v580 = vsel %vm551, %v542, 0
      %v583 = vsel %vm551, %v543, 0
      %v586 = vsel %vm551, %v544, 0
      %v589 = vsel %vm551, %v545, 0
      %v592 = vsel %vm551, %v546, 0
      %v595 = vsel %vm551, %v547, 0
      %v598 = vsel %vm551, %v548, 0
      %v601 = vsel %vm551, %v549, 0
      %v604 = vsel %vm551, %v550, 0
      %606 = vmatprep.subr.mxu0 0.0
      %v607 = vand.u32 %v559, 4294901760
      %608 = vmatpush1.xpose.msra.mxu0 %v607
      %609 = vmatprep.subr.mxu0 0.0
      %v610 = vand.u32 %v562, 4294901760
      %611 = vmatpush1.xpose.msra.mxu0 %v610
      %612 = vmatprep.subr.mxu0 0.0
      %v613 = vand.u32 %v565, 4294901760
      %614 = vmatpush1.xpose.msra.mxu0 %v613
      %615 = vmatprep.subr.mxu0 0.0
      %v616 = vand.u32 %v568, 4294901760
      %617 = vmatpush1.xpose.msra.mxu0 %v616
      %618 = vmatprep.subr.mxu0 0.0
      %v619 = vand.u32 %v571, 4294901760
      %620 = vmatpush1.xpose.msra.mxu0 %v619
      %621 = vmatprep.subr.mxu0 0.0
      %v622 = vand.u32 %v574, 4294901760
      %623 = vmatpush1.xpose.msra.mxu0 %v622
      %624 = vmatprep.subr.mxu0 0.0
      %v625 = vand.u32 %v577, 4294901760
      %626 = vmatpush1.xpose.msra.mxu0 %v625
      %627 = vmatprep.subr.mxu0 0.0
      %v628 = vand.u32 %v580, 4294901760
      %629 = vmatpush1.xpose.msra.mxu0 %v628
      %630 = vmatprep.subr.mxu0 0.0
      %v631 = vand.u32 %v583, 4294901760
      %632 = vmatpush1.xpose.msra.mxu0 %v631
      %633 = vmatprep.subr.mxu0 0.0
      %v634 = vand.u32 %v586, 4294901760
      %635 = vmatpush1.xpose.msra.mxu0 %v634
      %636 = vmatprep.subr.mxu0 0.0
      %v637 = vand.u32 %v589, 4294901760
      %638 = vmatpush1.xpose.msra.mxu0 %v637
      %639 = vmatprep.subr.mxu0 0.0
      %v640 = vand.u32 %v592, 4294901760
      %641 = vmatpush1.xpose.msra.mxu0 %v640
      %642 = vmatprep.subr.mxu0 0.0
      %v643 = vand.u32 %v595, 4294901760
      %644 = vmatpush1.xpose.msra.mxu0 %v643
      %645 = vmatprep.subr.mxu0 0.0
      %v646 = vand.u32 %v598, 4294901760
      %647 = vmatpush1.xpose.msra.mxu0 %v646
      %648 = vmatprep.subr.mxu0 0.0
      %v649 = vand.u32 %v601, 4294901760
      %650 = vmatpush1.xpose.msra.mxu0 %v649
      %651 = vmatprep.subr.mxu0 0.0
      %v652 = vand.u32 %v604, 4294901760
      %653 = vmatpush1.xpose.msra.mxu0 %v652
      %654 = vmatprep.subr.mxu0 0.0
      %655 = vmatpush1.xpose.msra.mxu0 0.0
      %656 = vmatprep.subr.mxu0 0.0
      %657 = vmatpush1.xpose.msra.mxu0 0.0
      %658 = vmatprep.subr.mxu0 0.0
      %659 = vmatpush1.xpose.msra.mxu0 0.0
      %660 = vmatprep.subr.mxu0 0.0
      %661 = vmatpush1.xpose.msra.mxu0 0.0
      %662 = vmatprep.subr.mxu0 0.0
      %663 = vmatpush1.xpose.msra.mxu0 0.0
      %664 = vmatprep.subr.mxu0 0.0
      %665 = vmatpush1.xpose.msra.mxu0 0.0
      %666 = vmatprep.subr.mxu0 0.0
      %667 = vmatpush1.xpose.msra.mxu0 0.0
      %668 = vmatprep.subr.mxu0 0.0
      %669 = vmatpush1.xpose.msra.mxu0 0.0
      %670 = vmatprep.subr.mxu0 0.0
      %671 = vmatpush1.xpose.msra.mxu0 0.0
      %672 = vmatprep.subr.mxu0 0.0
      %673 = vmatpush1.xpose.msra.mxu0 0.0
      %674 = vmatprep.subr.mxu0 0.0
      %675 = vmatpush1.xpose.msra.mxu0 0.0
      %676 = vmatprep.subr.mxu0 0.0
      %677 = vmatpush1.xpose.msra.mxu0 0.0
      %678 = vmatprep.subr.mxu0 0.0
      %679 = vmatpush1.xpose.msra.mxu0 0.0
      %680 = vmatprep.subr.mxu0 0.0
      %681 = vmatpush1.xpose.msra.mxu0 0.0
      %682 = vmatprep.subr.mxu0 0.0
      %683 = vmatpush1.xpose.msra.mxu0 0.0
      %684 = vmatprep.subr.mxu0 0.0
      %685 = vmatpush1.xpose.msra.mxu0 0.0
      %686 = vmatprep.mubr.f32.mxu0 0.0
      %v687 = vand.u32 %v553, 4294901760
      %v688 = vsub.f32 %v553, %v687
      %v689 = vand.u32 %v688, 4294901760
      %v690 = vsub.f32 %v688, %v689
      %v691 = vand.u32 %v690, 4294901760
      %692 = vmatmul.mubr.f32.gmra.mrb[0].mxu0 %v691
      %v693 = vpop.f32.mrb[0].mxu0
      %v694 = vadd.f32 0.0, %v693
      %v695 = vpop.f32.mrb[0].mxu0
      %696 = vmatprep.mubr.f32.mxu0 0.0
      %v697 = vand.u32 %v556, 4294901760
      %v698 = vsub.f32 %v556, %v697
      %v699 = vand.u32 %v698, 4294901760
      %v700 = vsub.f32 %v698, %v699
      %v701 = vand.u32 %v700, 4294901760
      %702 = vmatmul.mubr.f32.gmra.mrb[0].mxu0 %v701
      %v703 = vpop.f32.mrb[0].mxu0
      %v704 = vadd.f32 0.0, %v703
      %v705 = vpop.f32.mrb[0].mxu0
      %706 = vdwg.mxu0
      %707 = vmatprep.subr.mxu0 0.0
      %v708 = vand.u32 %v559, 4294901760
      %v709 = vsub.f32 %v559, %v708
      %v710 = vand.u32 %v709, 4294901760
      %v711 = vsub.f32 %v709, %v710
      %v712 = vand.u32 %v711, 4294901760
      %713 = vmatpush1.xpose.msra.mxu0 %v712
      %714 = vmatprep.subr.mxu0 0.0
      %v715 = vand.u32 %v562, 4294901760
      %v716 = vsub.f32 %v562, %v715
      %v717 = vand.u32 %v716, 4294901760
      %v718 = vsub.f32 %v716, %v717
      %v719 = vand.u32 %v718, 4294901760
      %720 = vmatpush1.xpose.msra.mxu0 %v719
      %721 = vmatprep.subr.mxu0 0.0
      %v722 = vand.u32 %v565, 4294901760
      %v723 = vsub.f32 %v565, %v722
      %v724 = vand.u32 %v723, 4294901760
      %v725 = vsub.f32 %v723, %v724
      %v726 = vand.u32 %v725, 4294901760
      %727 = vmatpush1.xpose.msra.mxu0 %v726
      %728 = vmatprep.subr.mxu0 0.0
      %v729 = vand.u32 %v568, 4294901760
      %v730 = vsub.f32 %v568, %v729
      %v731 = vand.u32 %v730, 4294901760
      %v732 = vsub.f32 %v730, %v731
      %v733 = vand.u32 %v732, 4294901760
      %734 = vmatpush1.xpose.msra.mxu0 %v733
      %735 = vmatprep.subr.mxu0 0.0
      %v736 = vand.u32 %v571, 4294901760
      %v737 = vsub.f32 %v571, %v736
      %v738 = vand.u32 %v737, 4294901760
      %v739 = vsub.f32 %v737, %v738
      %v740 = vand.u32 %v739, 4294901760
      %741 = vmatpush1.xpose.msra.mxu0 %v740
      %742 = vmatprep.subr.mxu0 0.0
      %v743 = vand.u32 %v574, 4294901760
      %v744 = vsub.f32 %v574, %v743
      %v745 = vand.u32 %v744, 4294901760
      %v746 = vsub.f32 %v744, %v745
      %v747 = vand.u32 %v746, 4294901760
      %748 = vmatpush1.xpose.msra.mxu0 %v747
      %749 = vmatprep.subr.mxu0 0.0
      %v750 = vand.u32 %v577, 4294901760
      %v751 = vsub.f32 %v577, %v750
      %v752 = vand.u32 %v751, 4294901760
      %v753 = vsub.f32 %v751, %v752
      %v754 = vand.u32 %v753, 4294901760
      %755 = vmatpush1.xpose.msra.mxu0 %v754
      %756 = vmatprep.subr.mxu0 0.0
      %v757 = vand.u32 %v580, 4294901760
      %v758 = vsub.f32 %v580, %v757
      %v759 = vand.u32 %v758, 4294901760
      %v760 = vsub.f32 %v758, %v759
      %v761 = vand.u32 %v760, 4294901760
      %762 = vmatpush1.xpose.msra.mxu0 %v761
      %763 = vmatprep.subr.mxu0 0.0
      %v764 = vand.u32 %v583, 4294901760
      %v765 = vsub.f32 %v583, %v764
      %v766 = vand.u32 %v765, 4294901760
      %v767 = vsub.f32 %v765, %v766
      %v768 = vand.u32 %v767, 4294901760
      %769 = vmatpush1.xpose.msra.mxu0 %v768
      %770 = vmatprep.subr.mxu0 0.0
      %v771 = vand.u32 %v586, 4294901760
      %v772 = vsub.f32 %v586, %v771
      %v773 = vand.u32 %v772, 4294901760
      %v774 = vsub.f32 %v772, %v773
      %v775 = vand.u32 %v774, 4294901760
      %776 = vmatpush1.xpose.msra.mxu0 %v775
      %777 = vmatprep.subr.mxu0 0.0
      %v778 = vand.u32 %v589, 4294901760
      %v779 = vsub.f32 %v589, %v778
      %v780 = vand.u32 %v779, 4294901760
      %v781 = vsub.f32 %v779, %v780
      %v782 = vand.u32 %v781, 4294901760
      %783 = vmatpush1.xpose.msra.mxu0 %v782
      %784 = vmatprep.subr.mxu0 0.0
      %v785 = vand.u32 %v592, 4294901760
      %v786 = vsub.f32 %v592, %v785
      %v787 = vand.u32 %v786, 4294901760
      %v788 = vsub.f32 %v786, %v787
      %v789 = vand.u32 %v788, 4294901760
      %790 = vmatpush1.xpose.msra.mxu0 %v789
      %791 = vmatprep.subr.mxu0 0.0
      %v792 = vand.u32 %v595, 4294901760
      %v793 = vsub.f32 %v595, %v792
      %v794 = vand.u32 %v793, 4294901760
      %v795 = vsub.f32 %v793, %v794
      %v796 = vand.u32 %v795, 4294901760
      %797 = vmatpush1.xpose.msra.mxu0 %v796
      %798 = vmatprep.subr.mxu0 0.0
      %v799 = vand.u32 %v598, 4294901760
      %v800 = vsub.f32 %v598, %v799
      %v801 = vand.u32 %v800, 4294901760
      %v802 = vsub.f32 %v800, %v801
      %v803 = vand.u32 %v802, 4294901760
      %804 = vmatpush1.xpose.msra.mxu0 %v803
      %805 = vmatprep.subr.mxu0 0.0
      %v806 = vand.u32 %v601, 4294901760
      %v807 = vsub.f32 %v601, %v806
      %v808 = vand.u32 %v807, 4294901760
      %v809 = vsub.f32 %v807, %v808
      %v810 = vand.u32 %v809, 4294901760
      %811 = vmatpush1.xpose.msra.mxu0 %v810
      %812 = vmatprep.subr.mxu0 0.0
      %v813 = vand.u32 %v604, 4294901760
      %v814 = vsub.f32 %v604, %v813
      %v815 = vand.u32 %v814, 4294901760
      %v816 = vsub.f32 %v814, %v815
      %v817 = vand.u32 %v816, 4294901760
      %818 = vmatpush1.xpose.msra.mxu0 %v817
      %819 = vmatprep.subr.mxu0 0.0
      %820 = vmatpush1.xpose.msra.mxu0 0.0
      %821 = vmatprep.subr.mxu0 0.0
      %822 = vmatpush1.xpose.msra.mxu0 0.0
      %823 = vmatprep.subr.mxu0 0.0
      %824 = vmatpush1.xpose.msra.mxu0 0.0
      %825 = vmatprep.subr.mxu0 0.0
      %826 = vmatpush1.xpose.msra.mxu0 0.0
      %827 = vmatprep.subr.mxu0 0.0
      %828 = vmatpush1.xpose.msra.mxu0 0.0
      %829 = vmatprep.subr.mxu0 0.0
      %830 = vmatpush1.xpose.msra.mxu0 0.0
      %831 = vmatprep.subr.mxu0 0.0
      %832 = vmatpush1.xpose.msra.mxu0 0.0
      %833 = vmatprep.subr.mxu0 0.0
      %834 = vmatpush1.xpose.msra.mxu0 0.0
      %835 = vmatprep.subr.mxu0 0.0
      %836 = vmatpush1.xpose.msra.mxu0 0.0
      %837 = vmatprep.subr.mxu0 0.0
      %838 = vmatpush1.xpose.msra.mxu0 0.0
      %839 = vmatprep.subr.mxu0 0.0
      %840 = vmatpush1.xpose.msra.mxu0 0.0
      %841 = vmatprep.subr.mxu0 0.0
      %842 = vmatpush1.xpose.msra.mxu0 0.0
      %843 = vmatprep.subr.mxu0 0.0
      %844 = vmatpush1.xpose.msra.mxu0 0.0
      %845 = vmatprep.subr.mxu0 0.0
      %846 = vmatpush1.xpose.msra.mxu0 0.0
      %847 = vmatprep.subr.mxu0 0.0
      %848 = vmatpush1.xpose.msra.mxu0 0.0
      %849 = vmatprep.subr.mxu0 0.0
      %850 = vmatpush1.xpose.msra.mxu0 0.0
      %851 = vmatprep.mubr.f32.mxu0 0.0
      %v852 = vand.u32 %v553, 4294901760
      %853 = vmatmul.mubr.f32.gmra.mrb[0].mxu0 %v852
      %v854 = vpop.f32.mrb[0].mxu0
      %v855 = vadd.f32 %v694, %v854
      %v856 = vpop.f32.mrb[0].mxu0
      %857 = vmatprep.mubr.f32.mxu0 0.0
      %v858 = vand.u32 %v556, 4294901760
      %859 = vmatmul.mubr.f32.gmra.mrb[0].mxu0 %v858
      %v860 = vpop.f32.mrb[0].mxu0
      %v861 = vadd.f32 %v704, %v860
      %v862 = vpop.f32.mrb[0].mxu0
      %863 = vdwg.mxu0
      %864 = vmatprep.subr.mxu0 0.0
      %v865 = vand.u32 %v559, 4294901760
      %v866 = vsub.f32 %v559, %v865
      %867 = vmatpush1.xpose.msra.mxu0 %v866
      %868 = vmatprep.subr.mxu0 0.0
      %v869 = vand.u32 %v562, 4294901760
      %v870 = vsub.f32 %v562, %v869
      %871 = vmatpush1.xpose.msra.mxu0 %v870
      %872 = vmatprep.subr.mxu0 0.0
      %v873 = vand.u32 %v565, 4294901760
      %v874 = vsub.f32 %v565, %v873
      %875 = vmatpush1.xpose.msra.mxu0 %v874
      %876 = vmatprep.subr.mxu0 0.0
      %v877 = vand.u32 %v568, 4294901760
      %v878 = vsub.f32 %v568, %v877
      %879 = vmatpush1.xpose.msra.mxu0 %v878
      %880 = vmatprep.subr.mxu0 0.0
      %v881 = vand.u32 %v571, 4294901760
      %v882 = vsub.f32 %v571, %v881
      %883 = vmatpush1.xpose.msra.mxu0 %v882
      %884 = vmatprep.subr.mxu0 0.0
      %v885 = vand.u32 %v574, 4294901760
      %v886 = vsub.f32 %v574, %v885
      %887 = vmatpush1.xpose.msra.mxu0 %v886
      %888 = vmatprep.subr.mxu0 0.0
      %v889 = vand.u32 %v577, 4294901760
      %v890 = vsub.f32 %v577, %v889
      %891 = vmatpush1.xpose.msra.mxu0 %v890
      %892 = vmatprep.subr.mxu0 0.0
      %v893 = vand.u32 %v580, 4294901760
      %v894 = vsub.f32 %v580, %v893
      %895 = vmatpush1.xpose.msra.mxu0 %v894
      %896 = vmatprep.subr.mxu0 0.0
      %v897 = vand.u32 %v583, 4294901760
      %v898 = vsub.f32 %v583, %v897
      %899 = vmatpush1.xpose.msra.mxu0 %v898
      %900 = vmatprep.subr.mxu0 0.0
      %v901 = vand.u32 %v586, 4294901760
      %v902 = vsub.f32 %v586, %v901
      %903 = vmatpush1.xpose.msra.mxu0 %v902
      %904 = vmatprep.subr.mxu0 0.0
      %v905 = vand.u32 %v589, 4294901760
      %v906 = vsub.f32 %v589, %v905
      %907 = vmatpush1.xpose.msra.mxu0 %v906
      %908 = vmatprep.subr.mxu0 0.0
      %v909 = vand.u32 %v592, 4294901760
      %v910 = vsub.f32 %v592, %v909
      %911 = vmatpush1.xpose.msra.mxu0 %v910
      %912 = vmatprep.subr.mxu0 0.0
      %v913 = vand.u32 %v595, 4294901760
      %v914 = vsub.f32 %v595, %v913
      %915 = vmatpush1.xpose.msra.mxu0 %v914
      %916 = vmatprep.subr.mxu0 0.0
      %v917 = vand.u32 %v598, 4294901760
      %v918 = vsub.f32 %v598, %v917
      %919 = vmatpush1.xpose.msra.mxu0 %v918
      %920 = vmatprep.subr.mxu0 0.0
      %v921 = vand.u32 %v601, 4294901760
      %v922 = vsub.f32 %v601, %v921
      %923 = vmatpush1.xpose.msra.mxu0 %v922
      %924 = vmatprep.subr.mxu0 0.0
      %v925 = vand.u32 %v604, 4294901760
      %v926 = vsub.f32 %v604, %v925
      %927 = vmatpush1.xpose.msra.mxu0 %v926
      %928 = vmatprep.subr.mxu0 0.0
      %929 = vmatpush1.xpose.msra.mxu0 0.0
      %930 = vmatprep.subr.mxu0 0.0
      %931 = vmatpush1.xpose.msra.mxu0 0.0
      %932 = vmatprep.subr.mxu0 0.0
      %933 = vmatpush1.xpose.msra.mxu0 0.0
      %934 = vmatprep.subr.mxu0 0.0
      %935 = vmatpush1.xpose.msra.mxu0 0.0
      %936 = vmatprep.subr.mxu0 0.0
      %937 = vmatpush1.xpose.msra.mxu0 0.0
      %938 = vmatprep.subr.mxu0 0.0
      %939 = vmatpush1.xpose.msra.mxu0 0.0
      %940 = vmatprep.subr.mxu0 0.0
      %941 = vmatpush1.xpose.msra.mxu0 0.0
      %942 = vmatprep.subr.mxu0 0.0
      %943 = vmatpush1.xpose.msra.mxu0 0.0
      %944 = vmatprep.subr.mxu0 0.0
      %945 = vmatpush1.xpose.msra.mxu0 0.0
      %946 = vmatprep.subr.mxu0 0.0
      %947 = vmatpush1.xpose.msra.mxu0 0.0
      %948 = vmatprep.subr.mxu0 0.0
      %949 = vmatpush1.xpose.msra.mxu0 0.0
      %950 = vmatprep.subr.mxu0 0.0
      %951 = vmatpush1.xpose.msra.mxu0 0.0
      %952 = vmatprep.subr.mxu0 0.0
      %953 = vmatpush1.xpose.msra.mxu0 0.0
      %954 = vmatprep.subr.mxu0 0.0
      %955 = vmatpush1.xpose.msra.mxu0 0.0
      %956 = vmatprep.subr.mxu0 0.0
      %957 = vmatpush1.xpose.msra.mxu0 0.0
      %958 = vmatprep.subr.mxu0 0.0
      %959 = vmatpush1.xpose.msra.mxu0 0.0
      %960 = vmatprep.mubr.f32.mxu0 0.0
      %v961 = vand.u32 %v553, 4294901760
      %v962 = vsub.f32 %v553, %v961
      %963 = vmatmul.mubr.f32.gmra.mrb[0].mxu0 %v962
      %v964 = vpop.f32.mrb[0].mxu0
      %v965 = vadd.f32 %v855, %v964
      %v966 = vpop.f32.mrb[0].mxu0
      %967 = vmatprep.mubr.f32.mxu0 0.0
      %v968 = vand.u32 %v556, 4294901760
      %v969 = vsub.f32 %v556, %v968
      %970 = vmatmul.mubr.f32.gmra.mrb[0].mxu0 %v969
      %v971 = vpop.f32.mrb[0].mxu0
      %v972 = vadd.f32 %v861, %v971
      %v973 = vpop.f32.mrb[0].mxu0
      %974 = vdwg.mxu0
      %975 = vmatprep.subr.mxu0 0.0
      %v976 = vand.u32 %v559, 4294901760
      %977 = vmatpush1.xpose.msra.mxu0 %v976
      %978 = vmatprep.subr.mxu0 0.0
      %v979 = vand.u32 %v562, 4294901760
      %980 = vmatpush1.xpose.msra.mxu0 %v979
      %981 = vmatprep.subr.mxu0 0.0
      %v982 = vand.u32 %v565, 4294901760
      %983 = vmatpush1.xpose.msra.mxu0 %v982
      %984 = vmatprep.subr.mxu0 0.0
      %v985 = vand.u32 %v568, 4294901760
      %986 = vmatpush1.xpose.msra.mxu0 %v985
      %987 = vmatprep.subr.mxu0 0.0
      %v988 = vand.u32 %v571, 4294901760
      %989 = vmatpush1.xpose.msra.mxu0 %v988
      %990 = vmatprep.subr.mxu0 0.0
      %v991 = vand.u32 %v574, 4294901760
      %992 = vmatpush1.xpose.msra.mxu0 %v991
      %993 = vmatprep.subr.mxu0 0.0
      %v994 = vand.u32 %v577, 4294901760
      %995 = vmatpush1.xpose.msra.mxu0 %v994
      %996 = vmatprep.subr.mxu0 0.0
      %v997 = vand.u32 %v580, 4294901760
      %998 = vmatpush1.xpose.msra.mxu0 %v997
      %999 = vmatprep.subr.mxu0 0.0
      %v1000 = vand.u32 %v583, 4294901760
      %1001 = vmatpush1.xpose.msra.mxu0 %v1000
      %1002 = vmatprep.subr.mxu0 0.0
      %v1003 = vand.u32 %v586, 4294901760
      %1004 = vmatpush1.xpose.msra.mxu0 %v1003
      %1005 = vmatprep.subr.mxu0 0.0
      %v1006 = vand.u32 %v589, 4294901760
      %1007 = vmatpush1.xpose.msra.mxu0 %v1006
      %1008 = vmatprep.subr.mxu0 0.0
      %v1009 = vand.u32 %v592, 4294901760
      %1010 = vmatpush1.xpose.msra.mxu0 %v1009
      %1011 = vmatprep.subr.mxu0 0.0
      %v1012 = vand.u32 %v595, 4294901760
      %1013 = vmatpush1.xpose.msra.mxu0 %v1012
      %1014 = vmatprep.subr.mxu0 0.0
      %v1015 = vand.u32 %v598, 4294901760
      %1016 = vmatpush1.xpose.msra.mxu0 %v1015
      %1017 = vmatprep.subr.mxu0 0.0
      %v1018 = vand.u32 %v601, 4294901760
      %1019 = vmatpush1.xpose.msra.mxu0 %v1018
      %1020 = vmatprep.subr.mxu0 0.0
      %v1021 = vand.u32 %v604, 4294901760
      %1022 = vmatpush1.xpose.msra.mxu0 %v1021
      %1023 = vmatprep.subr.mxu0 0.0
      %1024 = vmatpush1.xpose.msra.mxu0 0.0
      %1025 = vmatprep.subr.mxu0 0.0
      %1026 = vmatpush1.xpose.msra.mxu0 0.0
      %1027 = vmatprep.subr.mxu0 0.0
      %1028 = vmatpush1.xpose.msra.mxu0 0.0
      %1029 = vmatprep.subr.mxu0 0.0
      %1030 = vmatpush1.xpose.msra.mxu0 0.0
      %1031 = vmatprep.subr.mxu0 0.0
      %1032 = vmatpush1.xpose.msra.mxu0 0.0
      %1033 = vmatprep.subr.mxu0 0.0
      %1034 = vmatpush1.xpose.msra.mxu0 0.0
      %1035 = vmatprep.subr.mxu0 0.0
      %1036 = vmatpush1.xpose.msra.mxu0 0.0
      %1037 = vmatprep.subr.mxu0 0.0
      %1038 = vmatpush1.xpose.msra.mxu0 0.0
      %1039 = vmatprep.subr.mxu0 0.0
      %1040 = vmatpush1.xpose.msra.mxu0 0.0
      %1041 = vmatprep.subr.mxu0 0.0
      %1042 = vmatpush1.xpose.msra.mxu0 0.0
      %1043 = vmatprep.subr.mxu0 0.0
      %1044 = vmatpush1.xpose.msra.mxu0 0.0
      %1045 = vmatprep.subr.mxu0 0.0
      %1046 = vmatpush1.xpose.msra.mxu0 0.0
      %1047 = vmatprep.subr.mxu0 0.0
      %1048 = vmatpush1.xpose.msra.mxu0 0.0
      %1049 = vmatprep.subr.mxu0 0.0
      %1050 = vmatpush1.xpose.msra.mxu0 0.0
      %1051 = vmatprep.subr.mxu0 0.0
      %1052 = vmatpush1.xpose.msra.mxu0 0.0
      %1053 = vmatprep.subr.mxu0 0.0
      %1054 = vmatpush1.xpose.msra.mxu0 0.0
      %1055 = vmatprep.mubr.f32.mxu0 0.0
      %v1056 = vand.u32 %v553, 4294901760
      %v1057 = vsub.f32 %v553, %v1056
      %v1058 = vand.u32 %v1057, 4294901760
      %1059 = vmatmul.mubr.f32.gmra.mrb[0].mxu0 %v1058
      %v1060 = vpop.f32.mrb[0].mxu0
      %v1061 = vadd.f32 %v965, %v1060
      %v1062 = vpop.f32.mrb[0].mxu0
      %1063 = vmatprep.mubr.f32.mxu0 0.0
      %v1064 = vand.u32 %v556, 4294901760
      %v1065 = vsub.f32 %v556, %v1064
      %v1066 = vand.u32 %v1065, 4294901760
      %1067 = vmatmul.mubr.f32.gmra.mrb[0].mxu0 %v1066
      %v1068 = vpop.f32.mrb[0].mxu0
      %v1069 = vadd.f32 %v972, %v1068
      %v1070 = vpop.f32.mrb[0].mxu0
      %1071 = vdwg.mxu0
      %1072 = vmatprep.subr.mxu0 0.0
      %v1073 = vand.u32 %v559, 4294901760
      %v1074 = vsub.f32 %v559, %v1073
      %v1075 = vand.u32 %v1074, 4294901760
      %1076 = vmatpush1.xpose.msra.mxu0 %v1075
      %1077 = vmatprep.subr.mxu0 0.0
      %v1078 = vand.u32 %v562, 4294901760
      %v1079 = vsub.f32 %v562, %v1078
      %v1080 = vand.u32 %v1079, 4294901760
      %1081 = vmatpush1.xpose.msra.mxu0 %v1080
      %1082 = vmatprep.subr.mxu0 0.0
      %v1083 = vand.u32 %v565, 4294901760
      %v1084 = vsub.f32 %v565, %v1083
      %v1085 = vand.u32 %v1084, 4294901760
      %1086 = vmatpush1.xpose.msra.mxu0 %v1085
      %1087 = vmatprep.subr.mxu0 0.0
      %v1088 = vand.u32 %v568, 4294901760
      %v1089 = vsub.f32 %v568, %v1088
      %v1090 = vand.u32 %v1089, 4294901760
      %1091 = vmatpush1.xpose.msra.mxu0 %v1090
      %1092 = vmatprep.subr.mxu0 0.0
      %v1093 = vand.u32 %v571, 4294901760
      %v1094 = vsub.f32 %v571, %v1093
      %v1095 = vand.u32 %v1094, 4294901760
      %1096 = vmatpush1.xpose.msra.mxu0 %v1095
      %1097 = vmatprep.subr.mxu0 0.0
      %v1098 = vand.u32 %v574, 4294901760
      %v1099 = vsub.f32 %v574, %v1098
      %v1100 = vand.u32 %v1099, 4294901760
      %1101 = vmatpush1.xpose.msra.mxu0 %v1100
      %1102 = vmatprep.subr.mxu0 0.0
      %v1103 = vand.u32 %v577, 4294901760
      %v1104 = vsub.f32 %v577, %v1103
      %v1105 = vand.u32 %v1104, 4294901760
      %1106 = vmatpush1.xpose.msra.mxu0 %v1105
      %1107 = vmatprep.subr.mxu0 0.0
      %v1108 = vand.u32 %v580, 4294901760
      %v1109 = vsub.f32 %v580, %v1108
      %v1110 = vand.u32 %v1109, 4294901760
      %1111 = vmatpush1.xpose.msra.mxu0 %v1110
      %1112 = vmatprep.subr.mxu0 0.0
      %v1113 = vand.u32 %v583, 4294901760
      %v1114 = vsub.f32 %v583, %v1113
      %v1115 = vand.u32 %v1114, 4294901760
      %1116 = vmatpush1.xpose.msra.mxu0 %v1115
      %1117 = vmatprep.subr.mxu0 0.0
      %v1118 = vand.u32 %v586, 4294901760
      %v1119 = vsub.f32 %v586, %v1118
      %v1120 = vand.u32 %v1119, 4294901760
      %1121 = vmatpush1.xpose.msra.mxu0 %v1120
      %1122 = vmatprep.subr.mxu0 0.0
      %v1123 = vand.u32 %v589, 4294901760
      %v1124 = vsub.f32 %v589, %v1123
      %v1125 = vand.u32 %v1124, 4294901760
      %1126 = vmatpush1.xpose.msra.mxu0 %v1125
      %1127 = vmatprep.subr.mxu0 0.0
      %v1128 = vand.u32 %v592, 4294901760
      %v1129 = vsub.f32 %v592, %v1128
      %v1130 = vand.u32 %v1129, 4294901760
      %1131 = vmatpush1.xpose.msra.mxu0 %v1130
      %1132 = vmatprep.subr.mxu0 0.0
      %v1133 = vand.u32 %v595, 4294901760
      %v1134 = vsub.f32 %v595, %v1133
      %v1135 = vand.u32 %v1134, 4294901760
      %1136 = vmatpush1.xpose.msra.mxu0 %v1135
      %1137 = vmatprep.subr.mxu0 0.0
      %v1138 = vand.u32 %v598, 4294901760
      %v1139 = vsub.f32 %v598, %v1138
      %v1140 = vand.u32 %v1139, 4294901760
      %1141 = vmatpush1.xpose.msra.mxu0 %v1140
      %1142 = vmatprep.subr.mxu0 0.0
      %v1143 = vand.u32 %v601, 4294901760
      %v1144 = vsub.f32 %v601, %v1143
      %v1145 = vand.u32 %v1144, 4294901760
      %1146 = vmatpush1.xpose.msra.mxu0 %v1145
      %1147 = vmatprep.subr.mxu0 0.0
      %v1148 = vand.u32 %v604, 4294901760
      %v1149 = vsub.f32 %v604, %v1148
      %v1150 = vand.u32 %v1149, 4294901760
      %1151 = vmatpush1.xpose.msra.mxu0 %v1150
      %1152 = vmatprep.subr.mxu0 0.0
      %1153 = vmatpush1.xpose.msra.mxu0 0.0
      %1154 = vmatprep.subr.mxu0 0.0
      %1155 = vmatpush1.xpose.msra.mxu0 0.0
      %1156 = vmatprep.subr.mxu0 0.0
      %1157 = vmatpush1.xpose.msra.mxu0 0.0
      %1158 = vmatprep.subr.mxu0 0.0
      %1159 = vmatpush1.xpose.msra.mxu0 0.0
      %1160 = vmatprep.subr.mxu0 0.0
      %1161 = vmatpush1.xpose.msra.mxu0 0.0
      %1162 = vmatprep.subr.mxu0 0.0
      %1163 = vmatpush1.xpose.msra.mxu0 0.0
      %1164 = vmatprep.subr.mxu0 0.0
      %1165 = vmatpush1.xpose.msra.mxu0 0.0
      %1166 = vmatprep.subr.mxu0 0.0
      %1167 = vmatpush1.xpose.msra.mxu0 0.0
      %1168 = vmatprep.subr.mxu0 0.0
      %1169 = vmatpush1.xpose.msra.mxu0 0.0
      %1170 = vmatprep.subr.mxu0 0.0
      %1171 = vmatpush1.xpose.msra.mxu0 0.0
      %1172 = vmatprep.subr.mxu0 0.0
      %1173 = vmatpush1.xpose.msra.mxu0 0.0
      %1174 = vmatprep.subr.mxu0 0.0
      %1175 = vmatpush1.xpose.msra.mxu0 0.0
      %1176 = vmatprep.subr.mxu0 0.0
      %1177 = vmatpush1.xpose.msra.mxu0 0.0
      %1178 = vmatprep.subr.mxu0 0.0
      %1179 = vmatpush1.xpose.msra.mxu0 0.0
      %1180 = vmatprep.subr.mxu0 0.0
      %1181 = vmatpush1.xpose.msra.mxu0 0.0
      %1182 = vmatprep.subr.mxu0 0.0
      %1183 = vmatpush1.xpose.msra.mxu0 0.0
      %1184 = vmatprep.mubr.f32.mxu0 0.0
      %v1185 = vand.u32 %v553, 4294901760
      %1186 = vmatmul.mubr.f32.gmra.mrb[0].mxu0 %v1185
      %v1187 = vpop.f32.mrb[0].mxu0
      %v1188 = vadd.f32 %v1061, %v1187
      %v1189 = vpop.f32.mrb[0].mxu0
      %1190 = vmatprep.mubr.f32.mxu0 0.0
      %v1191 = vand.u32 %v556, 4294901760
      %1192 = vmatmul.mubr.f32.gmra.mrb[0].mxu0 %v1191
      %v1193 = vpop.f32.mrb[0].mxu0
      %v1194 = vadd.f32 %v1069, %v1193
      %v1195 = vpop.f32.mrb[0].mxu0
      %1196 = vdwg.mxu0
      %1197 = vmatprep.subr.mxu0 0.0
      %v1198 = vand.u32 %v559, 4294901760
      %1199 = vmatpush1.xpose.msra.mxu0 %v1198
      %1200 = vmatprep.subr.mxu0 0.0
      %v1201 = vand.u32 %v562, 4294901760
      %1202 = vmatpush1.xpose.msra.mxu0 %v1201
      %1203 = vmatprep.subr.mxu0 0.0
      %v1204 = vand.u32 %v565, 4294901760
      %1205 = vmatpush1.xpose.msra.mxu0 %v1204
      %1206 = vmatprep.subr.mxu0 0.0
      %v1207 = vand.u32 %v568, 4294901760
      %1208 = vmatpush1.xpose.msra.mxu0 %v1207
      %1209 = vmatprep.subr.mxu0 0.0
      %v1210 = vand.u32 %v571, 4294901760
      %1211 = vmatpush1.xpose.msra.mxu0 %v1210
      %1212 = vmatprep.subr.mxu0 0.0
      %v1213 = vand.u32 %v574, 4294901760
      %1214 = vmatpush1.xpose.msra.mxu0 %v1213
      %1215 = vmatprep.subr.mxu0 0.0
      %v1216 = vand.u32 %v577, 4294901760
      %1217 = vmatpush1.xpose.msra.mxu0 %v1216
      %1218 = vmatprep.subr.mxu0 0.0
      %v1219 = vand.u32 %v580, 4294901760
      %1220 = vmatpush1.xpose.msra.mxu0 %v1219
      %1221 = vmatprep.subr.mxu0 0.0
      %v1222 = vand.u32 %v583, 4294901760
      %1223 = vmatpush1.xpose.msra.mxu0 %v1222
      %1224 = vmatprep.subr.mxu0 0.0
      %v1225 = vand.u32 %v586, 4294901760
      %1226 = vmatpush1.xpose.msra.mxu0 %v1225
      %1227 = vmatprep.subr.mxu0 0.0
      %v1228 = vand.u32 %v589, 4294901760
      %1229 = vmatpush1.xpose.msra.mxu0 %v1228
      %1230 = vmatprep.subr.mxu0 0.0
      %v1231 = vand.u32 %v592, 4294901760
      %1232 = vmatpush1.xpose.msra.mxu0 %v1231
      %1233 = vmatprep.subr.mxu0 0.0
      %v1234 = vand.u32 %v595, 4294901760
      %1235 = vmatpush1.xpose.msra.mxu0 %v1234
      %1236 = vmatprep.subr.mxu0 0.0
      %v1237 = vand.u32 %v598, 4294901760
      %1238 = vmatpush1.xpose.msra.mxu0 %v1237
      %1239 = vmatprep.subr.mxu0 0.0
      %v1240 = vand.u32 %v601, 4294901760
      %1241 = vmatpush1.xpose.msra.mxu0 %v1240
      %1242 = vmatprep.subr.mxu0 0.0
      %v1243 = vand.u32 %v604, 4294901760
      %1244 = vmatpush1.xpose.msra.mxu0 %v1243
      %1245 = vmatprep.subr.mxu0 0.0
      %1246 = vmatpush1.xpose.msra.mxu0 0.0
      %1247 = vmatprep.subr.mxu0 0.0
      %1248 = vmatpush1.xpose.msra.mxu0 0.0
      %1249 = vmatprep.subr.mxu0 0.0
      %1250 = vmatpush1.xpose.msra.mxu0 0.0
      %1251 = vmatprep.subr.mxu0 0.0
      %1252 = vmatpush1.xpose.msra.mxu0 0.0
      %1253 = vmatprep.subr.mxu0 0.0
      %1254 = vmatpush1.xpose.msra.mxu0 0.0
      %1255 = vmatprep.subr.mxu0 0.0
      %1256 = vmatpush1.xpose.msra.mxu0 0.0
      %1257 = vmatprep.subr.mxu0 0.0
      %1258 = vmatpush1.xpose.msra.mxu0 0.0
      %1259 = vmatprep.subr.mxu0 0.0
      %1260 = vmatpush1.xpose.msra.mxu0 0.0
      %1261 = vmatprep.subr.mxu0 0.0
      %1262 = vmatpush1.xpose.msra.mxu0 0.0
      %1263 = vmatprep.subr.mxu0 0.0
      %1264 = vmatpush1.xpose.msra.mxu0 0.0
      %1265 = vmatprep.subr.mxu0 0.0
      %1266 = vmatpush1.xpose.msra.mxu0 0.0
      %1267 = vmatprep.subr.mxu0 0.0
      %1268 = vmatpush1.xpose.msra.mxu0 0.0
      %1269 = vmatprep.subr.mxu0 0.0
      %1270 = vmatpush1.xpose.msra.mxu0 0.0
      %1271 = vmatprep.subr.mxu0 0.0
      %1272 = vmatpush1.xpose.msra.mxu0 0.0
      %1273 = vmatprep.subr.mxu0 0.0
      %1274 = vmatpush1.xpose.msra.mxu0 0.0
      %1275 = vmatprep.subr.mxu0 0.0
      %1276 = vmatpush1.xpose.msra.mxu0 0.0
      %1277 = vmatprep.mubr.f32.mxu0 0.0
      %v1278 = vand.u32 %v553, 4294901760
      %1279 = vmatmul.mubr.f32.gmra.mrb[0].mxu0 %v1278
      %v1280 = vpop.f32.mrb[0].mxu0
      %v1281 = vadd.f32 %v1188, %v1280
      %v1282 = vpop.f32.mrb[0].mxu0
      %1283 = vmatprep.mubr.f32.mxu0 0.0
      %v1284 = vand.u32 %v556, 4294901760
      %1285 = vmatmul.mubr.f32.gmra.mrb[0].mxu0 %v1284
      %v1286 = vpop.f32.mrb[0].mxu0
      %v1287 = vadd.f32 %v1194, %v1286
      %v1288 = vpop.f32.mrb[0].mxu0
      %1289 = vdwg.mxu0
      %v1291 = vsel %vm551, %v513, 0
      %v1294 = vsel %vm551, %v514, 0
      %v1297 = vsel %vm551, %v519, 0
      %v1300 = vsel %vm551, %v520, 0
      %v1303 = vsel %vm551, %v521, 0
      %v1306 = vsel %vm551, %v522, 0
      %v1309 = vsel %vm551, %v523, 0
      %v1312 = vsel %vm551, %v524, 0
      %v1315 = vsel %vm551, %v525, 0
      %v1318 = vsel %vm551, %v526, 0
      %v1321 = vsel %vm551, %v527, 0
      %v1324 = vsel %vm551, %v528, 0
      %v1327 = vsel %vm551, %v529, 0
      %v1330 = vsel %vm551, %v530, 0
      %v1333 = vsel %vm551, %v531, 0
      %v1336 = vsel %vm551, %v532, 0
      %v1339 = vsel %vm551, %v533, 0
      %v1342 = vsel %vm551, %v534, 0
      %1344 = vmatprep.subr.mxu0 0.0
      %v1345 = vand.u32 %v1297, 4294901760
      %1346 = vmatpush1.xpose.msra.mxu0 %v1345
      %1347 = vmatprep.subr.mxu0 0.0
      %v1348 = vand.u32 %v1300, 4294901760
      %1349 = vmatpush1.xpose.msra.mxu0 %v1348
      %1350 = vmatprep.subr.mxu0 0.0
      %v1351 = vand.u32 %v1303, 4294901760
      %1352 = vmatpush1.xpose.msra.mxu0 %v1351
      %1353 = vmatprep.subr.mxu0 0.0
      %v1354 = vand.u32 %v1306, 4294901760
      %1355 = vmatpush1.xpose.msra.mxu0 %v1354
      %1356 = vmatprep.subr.mxu0 0.0
      %v1357 = vand.u32 %v1309, 4294901760
      %1358 = vmatpush1.xpose.msra.mxu0 %v1357
      %1359 = vmatprep.subr.mxu0 0.0
      %v1360 = vand.u32 %v1312, 4294901760
      %1361 = vmatpush1.xpose.msra.mxu0 %v1360
      %1362 = vmatprep.subr.mxu0 0.0
      %v1363 = vand.u32 %v1315, 4294901760
      %1364 = vmatpush1.xpose.msra.mxu0 %v1363
      %1365 = vmatprep.subr.mxu0 0.0
      %v1366 = vand.u32 %v1318, 4294901760
      %1367 = vmatpush1.xpose.msra.mxu0 %v1366
      %1368 = vmatprep.subr.mxu0 0.0
      %v1369 = vand.u32 %v1321, 4294901760
      %1370 = vmatpush1.xpose.msra.mxu0 %v1369
      %1371 = vmatprep.subr.mxu0 0.0
      %v1372 = vand.u32 %v1324, 4294901760
      %1373 = vmatpush1.xpose.msra.mxu0 %v1372
      %1374 = vmatprep.subr.mxu0 0.0
      %v1375 = vand.u32 %v1327, 4294901760
      %1376 = vmatpush1.xpose.msra.mxu0 %v1375
      %1377 = vmatprep.subr.mxu0 0.0
      %v1378 = vand.u32 %v1330, 4294901760
      %1379 = vmatpush1.xpose.msra.mxu0 %v1378
      %1380 = vmatprep.subr.mxu0 0.0
      %v1381 = vand.u32 %v1333, 4294901760
      %1382 = vmatpush1.xpose.msra.mxu0 %v1381
      %1383 = vmatprep.subr.mxu0 0.0
      %v1384 = vand.u32 %v1336, 4294901760
      %1385 = vmatpush1.xpose.msra.mxu0 %v1384
      %1386 = vmatprep.subr.mxu0 0.0
      %v1387 = vand.u32 %v1339, 4294901760
      %1388 = vmatpush1.xpose.msra.mxu0 %v1387
      %1389 = vmatprep.subr.mxu0 0.0
      %v1390 = vand.u32 %v1342, 4294901760
      %1391 = vmatpush1.xpose.msra.mxu0 %v1390
      %1392 = vmatprep.subr.mxu0 0.0
      %1393 = vmatpush1.xpose.msra.mxu0 0.0
      %1394 = vmatprep.subr.mxu0 0.0
      %1395 = vmatpush1.xpose.msra.mxu0 0.0
      %1396 = vmatprep.subr.mxu0 0.0
      %1397 = vmatpush1.xpose.msra.mxu0 0.0
      %1398 = vmatprep.subr.mxu0 0.0
      %1399 = vmatpush1.xpose.msra.mxu0 0.0
      %1400 = vmatprep.subr.mxu0 0.0
      %1401 = vmatpush1.xpose.msra.mxu0 0.0
      %1402 = vmatprep.subr.mxu0 0.0
      %1403 = vmatpush1.xpose.msra.mxu0 0.0
      %1404 = vmatprep.subr.mxu0 0.0
      %1405 = vmatpush1.xpose.msra.mxu0 0.0
      %1406 = vmatprep.subr.mxu0 0.0
      %1407 = vmatpush1.xpose.msra.mxu0 0.0
      %1408 = vmatprep.subr.mxu0 0.0
      %1409 = vmatpush1.xpose.msra.mxu0 0.0
      %1410 = vmatprep.subr.mxu0 0.0
      %1411 = vmatpush1.xpose.msra.mxu0 0.0
      %1412 = vmatprep.subr.mxu0 0.0
      %1413 = vmatpush1.xpose.msra.mxu0 0.0
      %1414 = vmatprep.subr.mxu0 0.0
      %1415 = vmatpush1.xpose.msra.mxu0 0.0
      %1416 = vmatprep.subr.mxu0 0.0
      %1417 = vmatpush1.xpose.msra.mxu0 0.0
      %1418 = vmatprep.subr.mxu0 0.0
      %1419 = vmatpush1.xpose.msra.mxu0 0.0
      %1420 = vmatprep.subr.mxu0 0.0
      %1421 = vmatpush1.xpose.msra.mxu0 0.0
      %1422 = vmatprep.subr.mxu0 0.0
      %1423 = vmatpush1.xpose.msra.mxu0 0.0
      %1424 = vmatprep.mubr.f32.mxu0 0.0
      %v1425 = vand.u32 %v1291, 4294901760
      %v1426 = vsub.f32 %v1291, %v1425
      %v1427 = vand.u32 %v1426, 4294901760
      %v1428 = vsub.f32 %v1426, %v1427
      %v1429 = vand.u32 %v1428, 4294901760
      %1430 = vmatmul.mubr.f32.gmra.mrb[0].mxu0 %v1429
      %v1431 = vpop.f32.mrb[0].mxu0
      %v1432 = vadd.f32 %v1281, %v1431
      %v1433 = vpop.f32.mrb[0].mxu0
      %1434 = vmatprep.mubr.f32.mxu0 0.0
      %v1435 = vand.u32 %v1294, 4294901760
      %v1436 = vsub.f32 %v1294, %v1435
      %v1437 = vand.u32 %v1436, 4294901760
      %v1438 = vsub.f32 %v1436, %v1437
      %v1439 = vand.u32 %v1438, 4294901760
      %1440 = vmatmul.mubr.f32.gmra.mrb[0].mxu0 %v1439
      %v1441 = vpop.f32.mrb[0].mxu0
      %v1442 = vadd.f32 %v1287, %v1441
      %v1443 = vpop.f32.mrb[0].mxu0
      %1444 = vdwg.mxu0
      %1445 = vmatprep.subr.mxu0 0.0
      %v1446 = vand.u32 %v1297, 4294901760
      %v1447 = vsub.f32 %v1297, %v1446
      %v1448 = vand.u32 %v1447, 4294901760
      %v1449 = vsub.f32 %v1447, %v1448
      %v1450 = vand.u32 %v1449, 4294901760
      %1451 = vmatpush1.xpose.msra.mxu0 %v1450
      %1452 = vmatprep.subr.mxu0 0.0
      %v1453 = vand.u32 %v1300, 4294901760
      %v1454 = vsub.f32 %v1300, %v1453
      %v1455 = vand.u32 %v1454, 4294901760
      %v1456 = vsub.f32 %v1454, %v1455
      %v1457 = vand.u32 %v1456, 4294901760
      %1458 = vmatpush1.xpose.msra.mxu0 %v1457
      %1459 = vmatprep.subr.mxu0 0.0
      %v1460 = vand.u32 %v1303, 4294901760
      %v1461 = vsub.f32 %v1303, %v1460
      %v1462 = vand.u32 %v1461, 4294901760
      %v1463 = vsub.f32 %v1461, %v1462
      %v1464 = vand.u32 %v1463, 4294901760
      %1465 = vmatpush1.xpose.msra.mxu0 %v1464
      %1466 = vmatprep.subr.mxu0 0.0
      %v1467 = vand.u32 %v1306, 4294901760
      %v1468 = vsub.f32 %v1306, %v1467
      %v1469 = vand.u32 %v1468, 4294901760
      %v1470 = vsub.f32 %v1468, %v1469
      %v1471 = vand.u32 %v1470, 4294901760
      %1472 = vmatpush1.xpose.msra.mxu0 %v1471
      %1473 = vmatprep.subr.mxu0 0.0
      %v1474 = vand.u32 %v1309, 4294901760
      %v1475 = vsub.f32 %v1309, %v1474
      %v1476 = vand.u32 %v1475, 4294901760
      %v1477 = vsub.f32 %v1475, %v1476
      %v1478 = vand.u32 %v1477, 4294901760
      %1479 = vmatpush1.xpose.msra.mxu0 %v1478
      %1480 = vmatprep.subr.mxu0 0.0
      %v1481 = vand.u32 %v1312, 4294901760
      %v1482 = vsub.f32 %v1312, %v1481
      %v1483 = vand.u32 %v1482, 4294901760
      %v1484 = vsub.f32 %v1482, %v1483
      %v1485 = vand.u32 %v1484, 4294901760
      %1486 = vmatpush1.xpose.msra.mxu0 %v1485
      %1487 = vmatprep.subr.mxu0 0.0
      %v1488 = vand.u32 %v1315, 4294901760
      %v1489 = vsub.f32 %v1315, %v1488
      %v1490 = vand.u32 %v1489, 4294901760
      %v1491 = vsub.f32 %v1489, %v1490
      %v1492 = vand.u32 %v1491, 4294901760
      %1493 = vmatpush1.xpose.msra.mxu0 %v1492
      %1494 = vmatprep.subr.mxu0 0.0
      %v1495 = vand.u32 %v1318, 4294901760
      %v1496 = vsub.f32 %v1318, %v1495
      %v1497 = vand.u32 %v1496, 4294901760
      %v1498 = vsub.f32 %v1496, %v1497
      %v1499 = vand.u32 %v1498, 4294901760
      %1500 = vmatpush1.xpose.msra.mxu0 %v1499
      %1501 = vmatprep.subr.mxu0 0.0
      %v1502 = vand.u32 %v1321, 4294901760
      %v1503 = vsub.f32 %v1321, %v1502
      %v1504 = vand.u32 %v1503, 4294901760
      %v1505 = vsub.f32 %v1503, %v1504
      %v1506 = vand.u32 %v1505, 4294901760
      %1507 = vmatpush1.xpose.msra.mxu0 %v1506
      %1508 = vmatprep.subr.mxu0 0.0
      %v1509 = vand.u32 %v1324, 4294901760
      %v1510 = vsub.f32 %v1324, %v1509
      %v1511 = vand.u32 %v1510, 4294901760
      %v1512 = vsub.f32 %v1510, %v1511
      %v1513 = vand.u32 %v1512, 4294901760
      %1514 = vmatpush1.xpose.msra.mxu0 %v1513
      %1515 = vmatprep.subr.mxu0 0.0
      %v1516 = vand.u32 %v1327, 4294901760
      %v1517 = vsub.f32 %v1327, %v1516
      %v1518 = vand.u32 %v1517, 4294901760
      %v1519 = vsub.f32 %v1517, %v1518
      %v1520 = vand.u32 %v1519, 4294901760
      %1521 = vmatpush1.xpose.msra.mxu0 %v1520
      %1522 = vmatprep.subr.mxu0 0.0
      %v1523 = vand.u32 %v1330, 4294901760
      %v1524 = vsub.f32 %v1330, %v1523
      %v1525 = vand.u32 %v1524, 4294901760
      %v1526 = vsub.f32 %v1524, %v1525
      %v1527 = vand.u32 %v1526, 4294901760
      %1528 = vmatpush1.xpose.msra.mxu0 %v1527
      %1529 = vmatprep.subr.mxu0 0.0
      %v1530 = vand.u32 %v1333, 4294901760
      %v1531 = vsub.f32 %v1333, %v1530
      %v1532 = vand.u32 %v1531, 4294901760
      %v1533 = vsub.f32 %v1531, %v1532
      %v1534 = vand.u32 %v1533, 4294901760
      %1535 = vmatpush1.xpose.msra.mxu0 %v1534
      %1536 = vmatprep.subr.mxu0 0.0
      %v1537 = vand.u32 %v1336, 4294901760
      %v1538 = vsub.f32 %v1336, %v1537
      %v1539 = vand.u32 %v1538, 4294901760
      %v1540 = vsub.f32 %v1538, %v1539
      %v1541 = vand.u32 %v1540, 4294901760
      %1542 = vmatpush1.xpose.msra.mxu0 %v1541
      %1543 = vmatprep.subr.mxu0 0.0
      %v1544 = vand.u32 %v1339, 4294901760
      %v1545 = vsub.f32 %v1339, %v1544
      %v1546 = vand.u32 %v1545, 4294901760
      %v1547 = vsub.f32 %v1545, %v1546
      %v1548 = vand.u32 %v1547, 4294901760
      %1549 = vmatpush1.xpose.msra.mxu0 %v1548
      %1550 = vmatprep.subr.mxu0 0.0
      %v1551 = vand.u32 %v1342, 4294901760
      %v1552 = vsub.f32 %v1342, %v1551
      %v1553 = vand.u32 %v1552, 4294901760
      %v1554 = vsub.f32 %v1552, %v1553
      %v1555 = vand.u32 %v1554, 4294901760
      %1556 = vmatpush1.xpose.msra.mxu0 %v1555
      %1557 = vmatprep.subr.mxu0 0.0
      %1558 = vmatpush1.xpose.msra.mxu0 0.0
      %1559 = vmatprep.subr.mxu0 0.0
      %1560 = vmatpush1.xpose.msra.mxu0 0.0
      %1561 = vmatprep.subr.mxu0 0.0
      %1562 = vmatpush1.xpose.msra.mxu0 0.0
      %1563 = vmatprep.subr.mxu0 0.0
      %1564 = vmatpush1.xpose.msra.mxu0 0.0
      %1565 = vmatprep.subr.mxu0 0.0
      %1566 = vmatpush1.xpose.msra.mxu0 0.0
      %1567 = vmatprep.subr.mxu0 0.0
      %1568 = vmatpush1.xpose.msra.mxu0 0.0
      %1569 = vmatprep.subr.mxu0 0.0
      %1570 = vmatpush1.xpose.msra.mxu0 0.0
      %1571 = vmatprep.subr.mxu0 0.0
      %1572 = vmatpush1.xpose.msra.mxu0 0.0
      %1573 = vmatprep.subr.mxu0 0.0
      %1574 = vmatpush1.xpose.msra.mxu0 0.0
      %1575 = vmatprep.subr.mxu0 0.0
      %1576 = vmatpush1.xpose.msra.mxu0 0.0
      %1577 = vmatprep.subr.mxu0 0.0
      %1578 = vmatpush1.xpose.msra.mxu0 0.0
      %1579 = vmatprep.subr.mxu0 0.0
      %1580 = vmatpush1.xpose.msra.mxu0 0.0
      %1581 = vmatprep.subr.mxu0 0.0
      %1582 = vmatpush1.xpose.msra.mxu0 0.0
      %1583 = vmatprep.subr.mxu0 0.0
      %1584 = vmatpush1.xpose.msra.mxu0 0.0
      %1585 = vmatprep.subr.mxu0 0.0
      %1586 = vmatpush1.xpose.msra.mxu0 0.0
      %1587 = vmatprep.subr.mxu0 0.0
      %1588 = vmatpush1.xpose.msra.mxu0 0.0
      %1589 = vmatprep.mubr.f32.mxu0 0.0
      %v1590 = vand.u32 %v1291, 4294901760
      %1591 = vmatmul.mubr.f32.gmra.mrb[0].mxu0 %v1590
      %v1592 = vpop.f32.mrb[0].mxu0
      %v1593 = vadd.f32 %v1432, %v1592
      %v1594 = vpop.f32.mrb[0].mxu0
      %1595 = vmatprep.mubr.f32.mxu0 0.0
      %v1596 = vand.u32 %v1294, 4294901760
      %1597 = vmatmul.mubr.f32.gmra.mrb[0].mxu0 %v1596
      %v1598 = vpop.f32.mrb[0].mxu0
      %v1599 = vadd.f32 %v1442, %v1598
      %v1600 = vpop.f32.mrb[0].mxu0
      %1601 = vdwg.mxu0
      %1602 = vmatprep.subr.mxu0 0.0
      %v1603 = vand.u32 %v1297, 4294901760
      %v1604 = vsub.f32 %v1297, %v1603
      %1605 = vmatpush1.xpose.msra.mxu0 %v1604
      %1606 = vmatprep.subr.mxu0 0.0
      %v1607 = vand.u32 %v1300, 4294901760
      %v1608 = vsub.f32 %v1300, %v1607
      %1609 = vmatpush1.xpose.msra.mxu0 %v1608
      %1610 = vmatprep.subr.mxu0 0.0
      %v1611 = vand.u32 %v1303, 4294901760
      %v1612 = vsub.f32 %v1303, %v1611
      %1613 = vmatpush1.xpose.msra.mxu0 %v1612
      %1614 = vmatprep.subr.mxu0 0.0
      %v1615 = vand.u32 %v1306, 4294901760
      %v1616 = vsub.f32 %v1306, %v1615
      %1617 = vmatpush1.xpose.msra.mxu0 %v1616
      %1618 = vmatprep.subr.mxu0 0.0
      %v1619 = vand.u32 %v1309, 4294901760
      %v1620 = vsub.f32 %v1309, %v1619
      %1621 = vmatpush1.xpose.msra.mxu0 %v1620
      %1622 = vmatprep.subr.mxu0 0.0
      %v1623 = vand.u32 %v1312, 4294901760
      %v1624 = vsub.f32 %v1312, %v1623
      %1625 = vmatpush1.xpose.msra.mxu0 %v1624
      %1626 = vmatprep.subr.mxu0 0.0
      %v1627 = vand.u32 %v1315, 4294901760
      %v1628 = vsub.f32 %v1315, %v1627
      %1629 = vmatpush1.xpose.msra.mxu0 %v1628
      %1630 = vmatprep.subr.mxu0 0.0
      %v1631 = vand.u32 %v1318, 4294901760
      %v1632 = vsub.f32 %v1318, %v1631
      %1633 = vmatpush1.xpose.msra.mxu0 %v1632
      %1634 = vmatprep.subr.mxu0 0.0
      %v1635 = vand.u32 %v1321, 4294901760
      %v1636 = vsub.f32 %v1321, %v1635
      %1637 = vmatpush1.xpose.msra.mxu0 %v1636
      %1638 = vmatprep.subr.mxu0 0.0
      %v1639 = vand.u32 %v1324, 4294901760
      %v1640 = vsub.f32 %v1324, %v1639
      %1641 = vmatpush1.xpose.msra.mxu0 %v1640
      %1642 = vmatprep.subr.mxu0 0.0
      %v1643 = vand.u32 %v1327, 4294901760
      %v1644 = vsub.f32 %v1327, %v1643
      %1645 = vmatpush1.xpose.msra.mxu0 %v1644
      %1646 = vmatprep.subr.mxu0 0.0
      %v1647 = vand.u32 %v1330, 4294901760
      %v1648 = vsub.f32 %v1330, %v1647
      %1649 = vmatpush1.xpose.msra.mxu0 %v1648
      %1650 = vmatprep.subr.mxu0 0.0
      %v1651 = vand.u32 %v1333, 4294901760
      %v1652 = vsub.f32 %v1333, %v1651
      %1653 = vmatpush1.xpose.msra.mxu0 %v1652
      %1654 = vmatprep.subr.mxu0 0.0
      %v1655 = vand.u32 %v1336, 4294901760
      %v1656 = vsub.f32 %v1336, %v1655
      %1657 = vmatpush1.xpose.msra.mxu0 %v1656
      %1658 = vmatprep.subr.mxu0 0.0
      %v1659 = vand.u32 %v1339, 4294901760
      %v1660 = vsub.f32 %v1339, %v1659
      %1661 = vmatpush1.xpose.msra.mxu0 %v1660
      %1662 = vmatprep.subr.mxu0 0.0
      %v1663 = vand.u32 %v1342, 4294901760
      %v1664 = vsub.f32 %v1342, %v1663
      %1665 = vmatpush1.xpose.msra.mxu0 %v1664
      %1666 = vmatprep.subr.mxu0 0.0
      %1667 = vmatpush1.xpose.msra.mxu0 0.0
      %1668 = vmatprep.subr.mxu0 0.0
      %1669 = vmatpush1.xpose.msra.mxu0 0.0
      %1670 = vmatprep.subr.mxu0 0.0
      %1671 = vmatpush1.xpose.msra.mxu0 0.0
      %1672 = vmatprep.subr.mxu0 0.0
      %1673 = vmatpush1.xpose.msra.mxu0 0.0
      %1674 = vmatprep.subr.mxu0 0.0
      %1675 = vmatpush1.xpose.msra.mxu0 0.0
      %1676 = vmatprep.subr.mxu0 0.0
      %1677 = vmatpush1.xpose.msra.mxu0 0.0
      %1678 = vmatprep.subr.mxu0 0.0
      %1679 = vmatpush1.xpose.msra.mxu0 0.0
      %1680 = vmatprep.subr.mxu0 0.0
      %1681 = vmatpush1.xpose.msra.mxu0 0.0
      %1682 = vmatprep.subr.mxu0 0.0
      %1683 = vmatpush1.xpose.msra.mxu0 0.0
      %1684 = vmatprep.subr.mxu0 0.0
      %1685 = vmatpush1.xpose.msra.mxu0 0.0
      %1686 = vmatprep.subr.mxu0 0.0
      %1687 = vmatpush1.xpose.msra.mxu0 0.0
      %1688 = vmatprep.subr.mxu0 0.0
      %1689 = vmatpush1.xpose.msra.mxu0 0.0
      %1690 = vmatprep.subr.mxu0 0.0
      %1691 = vmatpush1.xpose.msra.mxu0 0.0
      %1692 = vmatprep.subr.mxu0 0.0
      %1693 = vmatpush1.xpose.msra.mxu0 0.0
      %1694 = vmatprep.subr.mxu0 0.0
      %1695 = vmatpush1.xpose.msra.mxu0 0.0
      %1696 = vmatprep.subr.mxu0 0.0
      %1697 = vmatpush1.xpose.msra.mxu0 0.0
      %1698 = vmatprep.mubr.f32.mxu0 0.0
      %v1699 = vand.u32 %v1291, 4294901760
      %v1700 = vsub.f32 %v1291, %v1699
      %1701 = vmatmul.mubr.f32.gmra.mrb[0].mxu0 %v1700
      %v1702 = vpop.f32.mrb[0].mxu0
      %v1703 = vadd.f32 %v1593, %v1702
      %v1704 = vpop.f32.mrb[0].mxu0
      %1705 = vmatprep.mubr.f32.mxu0 0.0
      %v1706 = vand.u32 %v1294, 4294901760
      %v1707 = vsub.f32 %v1294, %v1706
      %1708 = vmatmul.mubr.f32.gmra.mrb[0].mxu0 %v1707
      %v1709 = vpop.f32.mrb[0].mxu0
      %v1710 = vadd.f32 %v1599, %v1709
      %v1711 = vpop.f32.mrb[0].mxu0
      %1712 = vdwg.mxu0
      %1713 = vmatprep.subr.mxu0 0.0
      %v1714 = vand.u32 %v1297, 4294901760
      %1715 = vmatpush1.xpose.msra.mxu0 %v1714
      %1716 = vmatprep.subr.mxu0 0.0
      %v1717 = vand.u32 %v1300, 4294901760
      %1718 = vmatpush1.xpose.msra.mxu0 %v1717
      %1719 = vmatprep.subr.mxu0 0.0
      %v1720 = vand.u32 %v1303, 4294901760
      %1721 = vmatpush1.xpose.msra.mxu0 %v1720
      %1722 = vmatprep.subr.mxu0 0.0
      %v1723 = vand.u32 %v1306, 4294901760
      %1724 = vmatpush1.xpose.msra.mxu0 %v1723
      %1725 = vmatprep.subr.mxu0 0.0
      %v1726 = vand.u32 %v1309, 4294901760
      %1727 = vmatpush1.xpose.msra.mxu0 %v1726
      %1728 = vmatprep.subr.mxu0 0.0
      %v1729 = vand.u32 %v1312, 4294901760
      %1730 = vmatpush1.xpose.msra.mxu0 %v1729
      %1731 = vmatprep.subr.mxu0 0.0
      %v1732 = vand.u32 %v1315, 4294901760
      %1733 = vmatpush1.xpose.msra.mxu0 %v1732
      %1734 = vmatprep.subr.mxu0 0.0
      %v1735 = vand.u32 %v1318, 4294901760
      %1736 = vmatpush1.xpose.msra.mxu0 %v1735
      %1737 = vmatprep.subr.mxu0 0.0
      %v1738 = vand.u32 %v1321, 4294901760
      %1739 = vmatpush1.xpose.msra.mxu0 %v1738
      %1740 = vmatprep.subr.mxu0 0.0
      %v1741 = vand.u32 %v1324, 4294901760
      %1742 = vmatpush1.xpose.msra.mxu0 %v1741
      %1743 = vmatprep.subr.mxu0 0.0
      %v1744 = vand.u32 %v1327, 4294901760
      %1745 = vmatpush1.xpose.msra.mxu0 %v1744
      %1746 = vmatprep.subr.mxu0 0.0
      %v1747 = vand.u32 %v1330, 4294901760
      %1748 = vmatpush1.xpose.msra.mxu0 %v1747
      %1749 = vmatprep.subr.mxu0 0.0
      %v1750 = vand.u32 %v1333, 4294901760
      %1751 = vmatpush1.xpose.msra.mxu0 %v1750
      %1752 = vmatprep.subr.mxu0 0.0
      %v1753 = vand.u32 %v1336, 4294901760
      %1754 = vmatpush1.xpose.msra.mxu0 %v1753
      %1755 = vmatprep.subr.mxu0 0.0
      %v1756 = vand.u32 %v1339, 4294901760
      %1757 = vmatpush1.xpose.msra.mxu0 %v1756
      %1758 = vmatprep.subr.mxu0 0.0
      %v1759 = vand.u32 %v1342, 4294901760
      %1760 = vmatpush1.xpose.msra.mxu0 %v1759
      %1761 = vmatprep.subr.mxu0 0.0
      %1762 = vmatpush1.xpose.msra.mxu0 0.0
      %1763 = vmatprep.subr.mxu0 0.0
      %1764 = vmatpush1.xpose.msra.mxu0 0.0
      %1765 = vmatprep.subr.mxu0 0.0
      %1766 = vmatpush1.xpose.msra.mxu0 0.0
      %1767 = vmatprep.subr.mxu0 0.0
      %1768 = vmatpush1.xpose.msra.mxu0 0.0
      %1769 = vmatprep.subr.mxu0 0.0
      %1770 = vmatpush1.xpose.msra.mxu0 0.0
      %1771 = vmatprep.subr.mxu0 0.0
      %1772 = vmatpush1.xpose.msra.mxu0 0.0
      %1773 = vmatprep.subr.mxu0 0.0
      %1774 = vmatpush1.xpose.msra.mxu0 0.0
      %1775 = vmatprep.subr.mxu0 0.0
      %1776 = vmatpush1.xpose.msra.mxu0 0.0
      %1777 = vmatprep.subr.mxu0 0.0
      %1778 = vmatpush1.xpose.msra.mxu0 0.0
      %1779 = vmatprep.subr.mxu0 0.0
      %1780 = vmatpush1.xpose.msra.mxu0 0.0
      %1781 = vmatprep.subr.mxu0 0.0
      %1782 = vmatpush1.xpose.msra.mxu0 0.0
      %1783 = vmatprep.subr.mxu0 0.0
      %1784 = vmatpush1.xpose.msra.mxu0 0.0
      %1785 = vmatprep.subr.mxu0 0.0
      %1786 = vmatpush1.xpose.msra.mxu0 0.0
      %1787 = vmatprep.subr.mxu0 0.0
      %1788 = vmatpush1.xpose.msra.mxu0 0.0
      %1789 = vmatprep.subr.mxu0 0.0
      %1790 = vmatpush1.xpose.msra.mxu0 0.0
      %1791 = vmatprep.subr.mxu0 0.0
      %1792 = vmatpush1.xpose.msra.mxu0 0.0
      %1793 = vmatprep.mubr.f32.mxu0 0.0
      %v1794 = vand.u32 %v1291, 4294901760
      %v1795 = vsub.f32 %v1291, %v1794
      %v1796 = vand.u32 %v1795, 4294901760
      %1797 = vmatmul.mubr.f32.gmra.mrb[0].mxu0 %v1796
      %v1798 = vpop.f32.mrb[0].mxu0
      %v1799 = vadd.f32 %v1703, %v1798
      %v1800 = vpop.f32.mrb[0].mxu0
      %1801 = vmatprep.mubr.f32.mxu0 0.0
      %v1802 = vand.u32 %v1294, 4294901760
      %v1803 = vsub.f32 %v1294, %v1802
      %v1804 = vand.u32 %v1803, 4294901760
      %1805 = vmatmul.mubr.f32.gmra.mrb[0].mxu0 %v1804
      %v1806 = vpop.f32.mrb[0].mxu0
      %v1807 = vadd.f32 %v1710, %v1806
      %v1808 = vpop.f32.mrb[0].mxu0
      %1809 = vdwg.mxu0
      %1810 = vmatprep.subr.mxu0 0.0
      %v1811 = vand.u32 %v1297, 4294901760
      %v1812 = vsub.f32 %v1297, %v1811
      %v1813 = vand.u32 %v1812, 4294901760
      %1814 = vmatpush1.xpose.msra.mxu0 %v1813
      %1815 = vmatprep.subr.mxu0 0.0
      %v1816 = vand.u32 %v1300, 4294901760
      %v1817 = vsub.f32 %v1300, %v1816
      %v1818 = vand.u32 %v1817, 4294901760
      %1819 = vmatpush1.xpose.msra.mxu0 %v1818
      %1820 = vmatprep.subr.mxu0 0.0
      %v1821 = vand.u32 %v1303, 4294901760
      %v1822 = vsub.f32 %v1303, %v1821
      %v1823 = vand.u32 %v1822, 4294901760
      %1824 = vmatpush1.xpose.msra.mxu0 %v1823
      %1825 = vmatprep.subr.mxu0 0.0
      %v1826 = vand.u32 %v1306, 4294901760
      %v1827 = vsub.f32 %v1306, %v1826
      %v1828 = vand.u32 %v1827, 4294901760
      %1829 = vmatpush1.xpose.msra.mxu0 %v1828
      %1830 = vmatprep.subr.mxu0 0.0
      %v1831 = vand.u32 %v1309, 4294901760
      %v1832 = vsub.f32 %v1309, %v1831
      %v1833 = vand.u32 %v1832, 4294901760
      %1834 = vmatpush1.xpose.msra.mxu0 %v1833
      %1835 = vmatprep.subr.mxu0 0.0
      %v1836 = vand.u32 %v1312, 4294901760
      %v1837 = vsub.f32 %v1312, %v1836
      %v1838 = vand.u32 %v1837, 4294901760
      %1839 = vmatpush1.xpose.msra.mxu0 %v1838
      %1840 = vmatprep.subr.mxu0 0.0
      %v1841 = vand.u32 %v1315, 4294901760
      %v1842 = vsub.f32 %v1315, %v1841
      %v1843 = vand.u32 %v1842, 4294901760
      %1844 = vmatpush1.xpose.msra.mxu0 %v1843
      %1845 = vmatprep.subr.mxu0 0.0
      %v1846 = vand.u32 %v1318, 4294901760
      %v1847 = vsub.f32 %v1318, %v1846
      %v1848 = vand.u32 %v1847, 4294901760
      %1849 = vmatpush1.xpose.msra.mxu0 %v1848
      %1850 = vmatprep.subr.mxu0 0.0
      %v1851 = vand.u32 %v1321, 4294901760
      %v1852 = vsub.f32 %v1321, %v1851
      %v1853 = vand.u32 %v1852, 4294901760
      %1854 = vmatpush1.xpose.msra.mxu0 %v1853
      %1855 = vmatprep.subr.mxu0 0.0
      %v1856 = vand.u32 %v1324, 4294901760
      %v1857 = vsub.f32 %v1324, %v1856
      %v1858 = vand.u32 %v1857, 4294901760
      %1859 = vmatpush1.xpose.msra.mxu0 %v1858
      %1860 = vmatprep.subr.mxu0 0.0
      %v1861 = vand.u32 %v1327, 4294901760
      %v1862 = vsub.f32 %v1327, %v1861
      %v1863 = vand.u32 %v1862, 4294901760
      %1864 = vmatpush1.xpose.msra.mxu0 %v1863
      %1865 = vmatprep.subr.mxu0 0.0
      %v1866 = vand.u32 %v1330, 4294901760
      %v1867 = vsub.f32 %v1330, %v1866
      %v1868 = vand.u32 %v1867, 4294901760
      %1869 = vmatpush1.xpose.msra.mxu0 %v1868
      %1870 = vmatprep.subr.mxu0 0.0
      %v1871 = vand.u32 %v1333, 4294901760
      %v1872 = vsub.f32 %v1333, %v1871
      %v1873 = vand.u32 %v1872, 4294901760
      %1874 = vmatpush1.xpose.msra.mxu0 %v1873
      %1875 = vmatprep.subr.mxu0 0.0
      %v1876 = vand.u32 %v1336, 4294901760
      %v1877 = vsub.f32 %v1336, %v1876
      %v1878 = vand.u32 %v1877, 4294901760
      %1879 = vmatpush1.xpose.msra.mxu0 %v1878
      %1880 = vmatprep.subr.mxu0 0.0
      %v1881 = vand.u32 %v1339, 4294901760
      %v1882 = vsub.f32 %v1339, %v1881
      %v1883 = vand.u32 %v1882, 4294901760
      %1884 = vmatpush1.xpose.msra.mxu0 %v1883
      %1885 = vmatprep.subr.mxu0 0.0
      %v1886 = vand.u32 %v1342, 4294901760
      %v1887 = vsub.f32 %v1342, %v1886
      %v1888 = vand.u32 %v1887, 4294901760
      %1889 = vmatpush1.xpose.msra.mxu0 %v1888
      %1890 = vmatprep.subr.mxu0 0.0
      %1891 = vmatpush1.xpose.msra.mxu0 0.0
      %1892 = vmatprep.subr.mxu0 0.0
      %1893 = vmatpush1.xpose.msra.mxu0 0.0
      %1894 = vmatprep.subr.mxu0 0.0
      %1895 = vmatpush1.xpose.msra.mxu0 0.0
      %1896 = vmatprep.subr.mxu0 0.0
      %1897 = vmatpush1.xpose.msra.mxu0 0.0
      %1898 = vmatprep.subr.mxu0 0.0
      %1899 = vmatpush1.xpose.msra.mxu0 0.0
      %1900 = vmatprep.subr.mxu0 0.0
      %1901 = vmatpush1.xpose.msra.mxu0 0.0
      %1902 = vmatprep.subr.mxu0 0.0
      %1903 = vmatpush1.xpose.msra.mxu0 0.0
      %1904 = vmatprep.subr.mxu0 0.0
      %1905 = vmatpush1.xpose.msra.mxu0 0.0
      %1906 = vmatprep.subr.mxu0 0.0
      %1907 = vmatpush1.xpose.msra.mxu0 0.0
      %1908 = vmatprep.subr.mxu0 0.0
      %1909 = vmatpush1.xpose.msra.mxu0 0.0
      %1910 = vmatprep.subr.mxu0 0.0
      %1911 = vmatpush1.xpose.msra.mxu0 0.0
      %1912 = vmatprep.subr.mxu0 0.0
      %1913 = vmatpush1.xpose.msra.mxu0 0.0
      %1914 = vmatprep.subr.mxu0 0.0
      %1915 = vmatpush1.xpose.msra.mxu0 0.0
      %1916 = vmatprep.subr.mxu0 0.0
      %1917 = vmatpush1.xpose.msra.mxu0 0.0
      %1918 = vmatprep.subr.mxu0 0.0
      %1919 = vmatpush1.xpose.msra.mxu0 0.0
      %1920 = vmatprep.subr.mxu0 0.0
      %1921 = vmatpush1.xpose.msra.mxu0 0.0
      %1922 = vmatprep.mubr.f32.mxu0 0.0
      %v1923 = vand.u32 %v1291, 4294901760
      %1924 = vmatmul.mubr.f32.gmra.mrb[0].mxu0 %v1923
      %v1925 = vpop.f32.mrb[0].mxu0
      %v1926 = vadd.f32 %v1799, %v1925
      %v1927 = vpop.f32.mrb[0].mxu0
      %1928 = vmatprep.mubr.f32.mxu0 0.0
      %v1929 = vand.u32 %v1294, 4294901760
      %1930 = vmatmul.mubr.f32.gmra.mrb[0].mxu0 %v1929
      %v1931 = vpop.f32.mrb[0].mxu0
      %v1932 = vadd.f32 %v1807, %v1931
      %v1933 = vpop.f32.mrb[0].mxu0
      %1934 = vdwg.mxu0
      %1935 = vmatprep.subr.mxu0 0.0
      %v1936 = vand.u32 %v1297, 4294901760
      %1937 = vmatpush1.xpose.msra.mxu0 %v1936
      %1938 = vmatprep.subr.mxu0 0.0
      %v1939 = vand.u32 %v1300, 4294901760
      %1940 = vmatpush1.xpose.msra.mxu0 %v1939
      %1941 = vmatprep.subr.mxu0 0.0
      %v1942 = vand.u32 %v1303, 4294901760
      %1943 = vmatpush1.xpose.msra.mxu0 %v1942
      %1944 = vmatprep.subr.mxu0 0.0
      %v1945 = vand.u32 %v1306, 4294901760
      %1946 = vmatpush1.xpose.msra.mxu0 %v1945
      %1947 = vmatprep.subr.mxu0 0.0
      %v1948 = vand.u32 %v1309, 4294901760
      %1949 = vmatpush1.xpose.msra.mxu0 %v1948
      %1950 = vmatprep.subr.mxu0 0.0
      %v1951 = vand.u32 %v1312, 4294901760
      %1952 = vmatpush1.xpose.msra.mxu0 %v1951
      %1953 = vmatprep.subr.mxu0 0.0
      %v1954 = vand.u32 %v1315, 4294901760
      %1955 = vmatpush1.xpose.msra.mxu0 %v1954
      %1956 = vmatprep.subr.mxu0 0.0
      %v1957 = vand.u32 %v1318, 4294901760
      %1958 = vmatpush1.xpose.msra.mxu0 %v1957
      %1959 = vmatprep.subr.mxu0 0.0
      %v1960 = vand.u32 %v1321, 4294901760
      %1961 = vmatpush1.xpose.msra.mxu0 %v1960
      %1962 = vmatprep.subr.mxu0 0.0
      %v1963 = vand.u32 %v1324, 4294901760
      %1964 = vmatpush1.xpose.msra.mxu0 %v1963
      %1965 = vmatprep.subr.mxu0 0.0
      %v1966 = vand.u32 %v1327, 4294901760
      %1967 = vmatpush1.xpose.msra.mxu0 %v1966
      %1968 = vmatprep.subr.mxu0 0.0
      %v1969 = vand.u32 %v1330, 4294901760
      %1970 = vmatpush1.xpose.msra.mxu0 %v1969
      %1971 = vmatprep.subr.mxu0 0.0
      %v1972 = vand.u32 %v1333, 4294901760
      %1973 = vmatpush1.xpose.msra.mxu0 %v1972
      %1974 = vmatprep.subr.mxu0 0.0
      %v1975 = vand.u32 %v1336, 4294901760
      %1976 = vmatpush1.xpose.msra.mxu0 %v1975
      %1977 = vmatprep.subr.mxu0 0.0
      %v1978 = vand.u32 %v1339, 4294901760
      %1979 = vmatpush1.xpose.msra.mxu0 %v1978
      %1980 = vmatprep.subr.mxu0 0.0
      %v1981 = vand.u32 %v1342, 4294901760
      %1982 = vmatpush1.xpose.msra.mxu0 %v1981
      %1983 = vmatprep.subr.mxu0 0.0
      %1984 = vmatpush1.xpose.msra.mxu0 0.0
      %1985 = vmatprep.subr.mxu0 0.0
      %1986 = vmatpush1.xpose.msra.mxu0 0.0
      %1987 = vmatprep.subr.mxu0 0.0
      %1988 = vmatpush1.xpose.msra.mxu0 0.0
      %1989 = vmatprep.subr.mxu0 0.0
      %1990 = vmatpush1.xpose.msra.mxu0 0.0
      %1991 = vmatprep.subr.mxu0 0.0
      %1992 = vmatpush1.xpose.msra.mxu0 0.0
      %1993 = vmatprep.subr.mxu0 0.0
      %1994 = vmatpush1.xpose.msra.mxu0 0.0
      %1995 = vmatprep.subr.mxu0 0.0
      %1996 = vmatpush1.xpose.msra.mxu0 0.0
      %1997 = vmatprep.subr.mxu0 0.0
      %1998 = vmatpush1.xpose.msra.mxu0 0.0
      %1999 = vmatprep.subr.mxu0 0.0
      %2000 = vmatpush1.xpose.msra.mxu0 0.0
      %2001 = vmatprep.subr.mxu0 0.0
      %2002 = vmatpush1.xpose.msra.mxu0 0.0
      %2003 = vmatprep.subr.mxu0 0.0
      %2004 = vmatpush1.xpose.msra.mxu0 0.0
      %2005 = vmatprep.subr.mxu0 0.0
      %2006 = vmatpush1.xpose.msra.mxu0 0.0
      %2007 = vmatprep.subr.mxu0 0.0
      %2008 = vmatpush1.xpose.msra.mxu0 0.0
      %2009 = vmatprep.subr.mxu0 0.0
      %2010 = vmatpush1.xpose.msra.mxu0 0.0
      %2011 = vmatprep.subr.mxu0 0.0
      %2012 = vmatpush1.xpose.msra.mxu0 0.0
      %2013 = vmatprep.subr.mxu0 0.0
      %2014 = vmatpush1.xpose.msra.mxu0 0.0
      %2015 = vmatprep.mubr.f32.mxu0 0.0
      %v2016 = vand.u32 %v1291, 4294901760
      %2017 = vmatmul.mubr.f32.gmra.mrb[0].mxu0 %v2016
      %v2018 = vpop.f32.mrb[0].mxu0
      %v2019 = vadd.f32 %v1926, %v2018
      %v2020 = vpop.f32.mrb[0].mxu0
      %2021 = vmatprep.mubr.f32.mxu0 0.0
      %v2022 = vand.u32 %v1294, 4294901760
      %2023 = vmatmul.mubr.f32.gmra.mrb[0].mxu0 %v2022
      %v2024 = vpop.f32.mrb[0].mxu0
      %v2025 = vadd.f32 %v1932, %v2024
      %v2026 = vpop.f32.mrb[0].mxu0
      %2027 = vdwg.mxu0
      %2029 = vset.pattern.permute.xlu0 0
      %2030 = vperm.xlu0 %2029, %v517
      %v2031 = vpop.permute.xlu0 %2030
      %2034 = vset.pattern.permute.xlu0 0
      %2035 = vperm.xlu0 %2034, %v518
      %v2036 = vpop.permute.xlu0 %2035
      %v2038 = vadd.f32 %v2019, %v2031
      %v2039 = vadd.f32 %v2025, %v2036
      %v2040 = vmax.f32 %v2038, 0.0
      %v2041 = vmax.f32 %v2039, 0.0
      %v2042 = vld [vmem:[%s5] sm:$0xff]
      %v2043 = vld [vmem:[%s5 + $0x8] sm:$0xff]
      %v2044 = vld [vmem:[%s6] sm:$0xff]
      %v2045 = vld [vmem:[%s6 + $0x8] sm:$0xff]
      %2047 = vset.pattern.permute.xlu0 0
      %2048 = vperm.xlu0 %2047, %v2044
      %v2049 = vpop.permute.xlu0 %2048
      %2052 = vset.pattern.permute.xlu0 0
      %2053 = vperm.xlu0 %2052, %v2045
      %v2054 = vpop.permute.xlu0 %2053
      %vm2056 = vcmask 130048
      %v2058 = vsel %vm2056, %v2042, 0
      %v2061 = vsel %vm2056, %v2043, 0
      %2063 = vmatprep.subr.mxu0 0.0
      %v2064 = vand.u32 %v2040, 4294901760
      %2065 = vmatpush1.msra.mxu0 %v2064
      %2066 = vmatprep.subr.mxu0 0.0
      %v2067 = vand.u32 %v2041, 4294901760
      %2068 = vmatpush1.msra.mxu0 %v2067
      %2069 = vmatprep.subr.mxu0 0.0
      %2070 = vmatpush1.msra.mxu0 0.0
      %2071 = vmatprep.subr.mxu0 0.0
      %2072 = vmatpush1.msra.mxu0 0.0
      %2073 = vmatprep.subr.mxu0 0.0
      %2074 = vmatpush1.msra.mxu0 0.0
      %2075 = vmatprep.subr.mxu0 0.0
      %2076 = vmatpush1.msra.mxu0 0.0
      %2077 = vmatprep.subr.mxu0 0.0
      %2078 = vmatpush1.msra.mxu0 0.0
      %2079 = vmatprep.subr.mxu0 0.0
      %2080 = vmatpush1.msra.mxu0 0.0
      %2081 = vmatprep.subr.mxu0 0.0
      %2082 = vmatpush1.msra.mxu0 0.0
      %2083 = vmatprep.subr.mxu0 0.0
      %2084 = vmatpush1.msra.mxu0 0.0
      %2085 = vmatprep.subr.mxu0 0.0
      %2086 = vmatpush1.msra.mxu0 0.0
      %2087 = vmatprep.subr.mxu0 0.0
      %2088 = vmatpush1.msra.mxu0 0.0
      %2089 = vmatprep.subr.mxu0 0.0
      %2090 = vmatpush1.msra.mxu0 0.0
      %2091 = vmatprep.subr.mxu0 0.0
      %2092 = vmatpush1.msra.mxu0 0.0
      %2093 = vmatprep.subr.mxu0 0.0
      %2094 = vmatpush1.msra.mxu0 0.0
      %2095 = vmatprep.subr.mxu0 0.0
      %2096 = vmatpush1.msra.mxu0 0.0
      %2097 = vmatprep.subr.mxu0 0.0
      %2098 = vmatpush1.msra.mxu0 0.0
      %2099 = vmatprep.subr.mxu0 0.0
      %2100 = vmatpush1.msra.mxu0 0.0
      %2101 = vmatprep.subr.mxu0 0.0
      %2102 = vmatpush1.msra.mxu0 0.0
      %2103 = vmatprep.subr.mxu0 0.0
      %2104 = vmatpush1.msra.mxu0 0.0
      %2105 = vmatprep.subr.mxu0 0.0
      %2106 = vmatpush1.msra.mxu0 0.0
      %2107 = vmatprep.subr.mxu0 0.0
      %2108 = vmatpush1.msra.mxu0 0.0
      %2109 = vmatprep.subr.mxu0 0.0
      %2110 = vmatpush1.msra.mxu0 0.0
      %2111 = vmatprep.subr.mxu0 0.0
      %2112 = vmatpush1.msra.mxu0 0.0
      %2113 = vmatprep.subr.mxu0 0.0
      %2114 = vmatpush1.msra.mxu0 0.0
      %2115 = vmatprep.subr.mxu0 0.0
      %2116 = vmatpush1.msra.mxu0 0.0
      %2117 = vmatprep.subr.mxu0 0.0
      %2118 = vmatpush1.msra.mxu0 0.0
      %2119 = vmatprep.subr.mxu0 0.0
      %2120 = vmatpush1.msra.mxu0 0.0
      %2121 = vmatprep.subr.mxu0 0.0
      %2122 = vmatpush1.msra.mxu0 0.0
      %2123 = vmatprep.subr.mxu0 0.0
      %2124 = vmatpush1.msra.mxu0 0.0
      %2125 = vmatprep.subr.mxu0 0.0
      %2126 = vmatpush1.msra.mxu0 0.0
      %2127 = vmatprep.subr.mxu0 0.0
      %2128 = vmatpush1.msra.mxu0 0.0
      %2129 = vmatprep.mubr.f32.mxu0 0.0
      %v2130 = vand.u32 %v2058, 4294901760
      %v2131 = vsub.f32 %v2058, %v2130
      %v2132 = vand.u32 %v2131, 4294901760
      %v2133 = vsub.f32 %v2131, %v2132
      %v2134 = vand.u32 %v2133, 4294901760
      %2135 = vmatmul.mubr.f32.gmra.mrb[0].mxu0 %v2134
      %v2136 = vpop.f32.mrb[0].mxu0
      %v2137 = vadd.f32 %v2049, %v2136
      %v2138 = vpop.f32.mrb[0].mxu0
      %2139 = vmatprep.mubr.f32.mxu0 0.0
      %v2140 = vand.u32 %v2061, 4294901760
      %v2141 = vsub.f32 %v2061, %v2140
      %v2142 = vand.u32 %v2141, 4294901760
      %v2143 = vsub.f32 %v2141, %v2142
      %v2144 = vand.u32 %v2143, 4294901760
      %2145 = vmatmul.mubr.f32.gmra.mrb[0].mxu0 %v2144
      %v2146 = vpop.f32.mrb[0].mxu0
      %v2147 = vadd.f32 %v2054, %v2146
      %v2148 = vpop.f32.mrb[0].mxu0
      %2149 = vdwg.mxu0
      %2150 = vmatprep.subr.mxu0 0.0
      %v2151 = vand.u32 %v2040, 4294901760
      %v2152 = vsub.f32 %v2040, %v2151
      %v2153 = vand.u32 %v2152, 4294901760
      %v2154 = vsub.f32 %v2152, %v2153
      %v2155 = vand.u32 %v2154, 4294901760
      %2156 = vmatpush1.msra.mxu0 %v2155
      %2157 = vmatprep.subr.mxu0 0.0
      %v2158 = vand.u32 %v2041, 4294901760
      %v2159 = vsub.f32 %v2041, %v2158
      %v2160 = vand.u32 %v2159, 4294901760
      %v2161 = vsub.f32 %v2159, %v2160
      %v2162 = vand.u32 %v2161, 4294901760
      %2163 = vmatpush1.msra.mxu0 %v2162
      %2164 = vmatprep.subr.mxu0 0.0
      %2165 = vmatpush1.msra.mxu0 0.0
      %2166 = vmatprep.subr.mxu0 0.0
      %2167 = vmatpush1.msra.mxu0 0.0
      %2168 = vmatprep.subr.mxu0 0.0
      %2169 = vmatpush1.msra.mxu0 0.0
      %2170 = vmatprep.subr.mxu0 0.0
      %2171 = vmatpush1.msra.mxu0 0.0
      %2172 = vmatprep.subr.mxu0 0.0
      %2173 = vmatpush1.msra.mxu0 0.0
      %2174 = vmatprep.subr.mxu0 0.0
      %2175 = vmatpush1.msra.mxu0 0.0
      %2176 = vmatprep.subr.mxu0 0.0
      %2177 = vmatpush1.msra.mxu0 0.0
      %2178 = vmatprep.subr.mxu0 0.0
      %2179 = vmatpush1.msra.mxu0 0.0
      %2180 = vmatprep.subr.mxu0 0.0
      %2181 = vmatpush1.msra.mxu0 0.0
      %2182 = vmatprep.subr.mxu0 0.0
      %2183 = vmatpush1.msra.mxu0 0.0
      %2184 = vmatprep.subr.mxu0 0.0
      %2185 = vmatpush1.msra.mxu0 0.0
      %2186 = vmatprep.subr.mxu0 0.0
      %2187 = vmatpush1.msra.mxu0 0.0
      %2188 = vmatprep.subr.mxu0 0.0
      %2189 = vmatpush1.msra.mxu0 0.0
      %2190 = vmatprep.subr.mxu0 0.0
      %2191 = vmatpush1.msra.mxu0 0.0
      %2192 = vmatprep.subr.mxu0 0.0
      %2193 = vmatpush1.msra.mxu0 0.0
      %2194 = vmatprep.subr.mxu0 0.0
      %2195 = vmatpush1.msra.mxu0 0.0
      %2196 = vmatprep.subr.mxu0 0.0
      %2197 = vmatpush1.msra.mxu0 0.0
      %2198 = vmatprep.subr.mxu0 0.0
      %2199 = vmatpush1.msra.mxu0 0.0
      %2200 = vmatprep.subr.mxu0 0.0
      %2201 = vmatpush1.msra.mxu0 0.0
      %2202 = vmatprep.subr.mxu0 0.0
      %2203 = vmatpush1.msra.mxu0 0.0
      %2204 = vmatprep.subr.mxu0 0.0
      %2205 = vmatpush1.msra.mxu0 0.0
      %2206 = vmatprep.subr.mxu0 0.0
      %2207 = vmatpush1.msra.mxu0 0.0
      %2208 = vmatprep.subr.mxu0 0.0
      %2209 = vmatpush1.msra.mxu0 0.0
      %2210 = vmatprep.subr.mxu0 0.0
      %2211 = vmatpush1.msra.mxu0 0.0
      %2212 = vmatprep.subr.mxu0 0.0
      %2213 = vmatpush1.msra.mxu0 0.0
      %2214 = vmatprep.subr.mxu0 0.0
      %2215 = vmatpush1.msra.mxu0 0.0
      %2216 = vmatprep.subr.mxu0 0.0
      %2217 = vmatpush1.msra.mxu0 0.0
      %2218 = vmatprep.subr.mxu0 0.0
      %2219 = vmatpush1.msra.mxu0 0.0
      %2220 = vmatprep.subr.mxu0 0.0
      %2221 = vmatpush1.msra.mxu0 0.0
      %2222 = vmatprep.subr.mxu0 0.0
      %2223 = vmatpush1.msra.mxu0 0.0
      %2224 = vmatprep.mubr.f32.mxu0 0.0
      %v2225 = vand.u32 %v2058, 4294901760
      %2226 = vmatmul.mubr.f32.gmra.mrb[0].mxu0 %v2225
      %v2227 = vpop.f32.mrb[0].mxu0
      %v2228 = vadd.f32 %v2137, %v2227
      %v2229 = vpop.f32.mrb[0].mxu0
      %2230 = vmatprep.mubr.f32.mxu0 0.0
      %v2231 = vand.u32 %v2061, 4294901760
      %2232 = vmatmul.mubr.f32.gmra.mrb[0].mxu0 %v2231
      %v2233 = vpop.f32.mrb[0].mxu0
      %v2234 = vadd.f32 %v2147, %v2233
      %v2235 = vpop.f32.mrb[0].mxu0
      %2236 = vdwg.mxu0
      %2237 = vmatprep.subr.mxu0 0.0
      %v2238 = vand.u32 %v2040, 4294901760
      %v2239 = vsub.f32 %v2040, %v2238
      %2240 = vmatpush1.msra.mxu0 %v2239
      %2241 = vmatprep.subr.mxu0 0.0
      %v2242 = vand.u32 %v2041, 4294901760
      %v2243 = vsub.f32 %v2041, %v2242
      %2244 = vmatpush1.msra.mxu0 %v2243
      %2245 = vmatprep.subr.mxu0 0.0
      %2246 = vmatpush1.msra.mxu0 0.0
      %2247 = vmatprep.subr.mxu0 0.0
      %2248 = vmatpush1.msra.mxu0 0.0
      %2249 = vmatprep.subr.mxu0 0.0
      %2250 = vmatpush1.msra.mxu0 0.0
      %2251 = vmatprep.subr.mxu0 0.0
      %2252 = vmatpush1.msra.mxu0 0.0
      %2253 = vmatprep.subr.mxu0 0.0
      %2254 = vmatpush1.msra.mxu0 0.0
      %2255 = vmatprep.subr.mxu0 0.0
      %2256 = vmatpush1.msra.mxu0 0.0
      %2257 = vmatprep.subr.mxu0 0.0
      %2258 = vmatpush1.msra.mxu0 0.0
      %2259 = vmatprep.subr.mxu0 0.0
      %2260 = vmatpush1.msra.mxu0 0.0
      %2261 = vmatprep.subr.mxu0 0.0
      %2262 = vmatpush1.msra.mxu0 0.0
      %2263 = vmatprep.subr.mxu0 0.0
      %2264 = vmatpush1.msra.mxu0 0.0
      %2265 = vmatprep.subr.mxu0 0.0
      %2266 = vmatpush1.msra.mxu0 0.0
      %2267 = vmatprep.subr.mxu0 0.0
      %2268 = vmatpush1.msra.mxu0 0.0
      %2269 = vmatprep.subr.mxu0 0.0
      %2270 = vmatpush1.msra.mxu0 0.0
      %2271 = vmatprep.subr.mxu0 0.0
      %2272 = vmatpush1.msra.mxu0 0.0
      %2273 = vmatprep.subr.mxu0 0.0
      %2274 = vmatpush1.msra.mxu0 0.0
      %2275 = vmatprep.subr.mxu0 0.0
      %2276 = vmatpush1.msra.mxu0 0.0
      %2277 = vmatprep.subr.mxu0 0.0
      %2278 = vmatpush1.msra.mxu0 0.0
      %2279 = vmatprep.subr.mxu0 0.0
      %2280 = vmatpush1.msra.mxu0 0.0
      %2281 = vmatprep.subr.mxu0 0.0
      %2282 = vmatpush1.msra.mxu0 0.0
      %2283 = vmatprep.subr.mxu0 0.0
      %2284 = vmatpush1.msra.mxu0 0.0
      %2285 = vmatprep.subr.mxu0 0.0
      %2286 = vmatpush1.msra.mxu0 0.0
      %2287 = vmatprep.subr.mxu0 0.0
      %2288 = vmatpush1.msra.mxu0 0.0
      %2289 = vmatprep.subr.mxu0 0.0
      %2290 = vmatpush1.msra.mxu0 0.0
      %2291 = vmatprep.subr.mxu0 0.0
      %2292 = vmatpush1.msra.mxu0 0.0
      %2293 = vmatprep.subr.mxu0 0.0
      %2294 = vmatpush1.msra.mxu0 0.0
      %2295 = vmatprep.subr.mxu0 0.0
      %2296 = vmatpush1.msra.mxu0 0.0
      %2297 = vmatprep.subr.mxu0 0.0
      %2298 = vmatpush1.msra.mxu0 0.0
      %2299 = vmatprep.subr.mxu0 0.0
      %2300 = vmatpush1.msra.mxu0 0.0
      %2301 = vmatprep.subr.mxu0 0.0
      %2302 = vmatpush1.msra.mxu0 0.0
      %2303 = vmatprep.subr.mxu0 0.0
      %2304 = vmatpush1.msra.mxu0 0.0
      %2305 = vmatprep.mubr.f32.mxu0 0.0
      %v2306 = vand.u32 %v2058, 4294901760
      %v2307 = vsub.f32 %v2058, %v2306
      %2308 = vmatmul.mubr.f32.gmra.mrb[0].mxu0 %v2307
      %v2309 = vpop.f32.mrb[0].mxu0
      %v2310 = vadd.f32 %v2228, %v2309
      %v2311 = vpop.f32.mrb[0].mxu0
      %2312 = vmatprep.mubr.f32.mxu0 0.0
      %v2313 = vand.u32 %v2061, 4294901760
      %v2314 = vsub.f32 %v2061, %v2313
      %2315 = vmatmul.mubr.f32.gmra.mrb[0].mxu0 %v2314
      %v2316 = vpop.f32.mrb[0].mxu0
      %v2317 = vadd.f32 %v2234, %v2316
      %v2318 = vpop.f32.mrb[0].mxu0
      %2319 = vdwg.mxu0
      %2320 = vmatprep.subr.mxu0 0.0
      %v2321 = vand.u32 %v2040, 4294901760
      %2322 = vmatpush1.msra.mxu0 %v2321
      %2323 = vmatprep.subr.mxu0 0.0
      %v2324 = vand.u32 %v2041, 4294901760
      %2325 = vmatpush1.msra.mxu0 %v2324
      %2326 = vmatprep.subr.mxu0 0.0
      %2327 = vmatpush1.msra.mxu0 0.0
      %2328 = vmatprep.subr.mxu0 0.0
      %2329 = vmatpush1.msra.mxu0 0.0
      %2330 = vmatprep.subr.mxu0 0.0
      %2331 = vmatpush1.msra.mxu0 0.0
      %2332 = vmatprep.subr.mxu0 0.0
      %2333 = vmatpush1.msra.mxu0 0.0
      %2334 = vmatprep.subr.mxu0 0.0
      %2335 = vmatpush1.msra.mxu0 0.0
      %2336 = vmatprep.subr.mxu0 0.0
      %2337 = vmatpush1.msra.mxu0 0.0
      %2338 = vmatprep.subr.mxu0 0.0
      %2339 = vmatpush1.msra.mxu0 0.0
      %2340 = vmatprep.subr.mxu0 0.0
      %2341 = vmatpush1.msra.mxu0 0.0
      %2342 = vmatprep.subr.mxu0 0.0
      %2343 = vmatpush1.msra.mxu0 0.0
      %2344 = vmatprep.subr.mxu0 0.0
      %2345 = vmatpush1.msra.mxu0 0.0
      %2346 = vmatprep.subr.mxu0 0.0
      %2347 = vmatpush1.msra.mxu0 0.0
      %2348 = vmatprep.subr.mxu0 0.0
      %2349 = vmatpush1.msra.mxu0 0.0
      %2350 = vmatprep.subr.mxu0 0.0
      %2351 = vmatpush1.msra.mxu0 0.0
      %2352 = vmatprep.subr.mxu0 0.0
      %2353 = vmatpush1.msra.mxu0 0.0
      %2354 = vmatprep.subr.mxu0 0.0
      %2355 = vmatpush1.msra.mxu0 0.0
      %2356 = vmatprep.subr.mxu0 0.0
      %2357 = vmatpush1.msra.mxu0 0.0
      %2358 = vmatprep.subr.mxu0 0.0
      %2359 = vmatpush1.msra.mxu0 0.0
      %2360 = vmatprep.subr.mxu0 0.0
      %2361 = vmatpush1.msra.mxu0 0.0
      %2362 = vmatprep.subr.mxu0 0.0
      %2363 = vmatpush1.msra.mxu0 0.0
      %2364 = vmatprep.subr.mxu0 0.0
      %2365 = vmatpush1.msra.mxu0 0.0
      %2366 = vmatprep.subr.mxu0 0.0
      %2367 = vmatpush1.msra.mxu0 0.0
      %2368 = vmatprep.subr.mxu0 0.0
      %2369 = vmatpush1.msra.mxu0 0.0
      %2370 = vmatprep.subr.mxu0 0.0
      %2371 = vmatpush1.msra.mxu0 0.0
      %2372 = vmatprep.subr.mxu0 0.0
      %2373 = vmatpush1.msra.mxu0 0.0
      %2374 = vmatprep.subr.mxu0 0.0
      %2375 = vmatpush1.msra.mxu0 0.0
      %2376 = vmatprep.subr.mxu0 0.0
      %2377 = vmatpush1.msra.mxu0 0.0
      %2378 = vmatprep.subr.mxu0 0.0
      %2379 = vmatpush1.msra.mxu0 0.0
      %2380 = vmatprep.subr.mxu0 0.0
      %2381 = vmatpush1.msra.mxu0 0.0
      %2382 = vmatprep.subr.mxu0 0.0
      %2383 = vmatpush1.msra.mxu0 0.0
      %2384 = vmatprep.subr.mxu0 0.0
      %2385 = vmatpush1.msra.mxu0 0.0
      %2386 = vmatprep.mubr.f32.mxu0 0.0
      %v2387 = vand.u32 %v2058, 4294901760
      %v2388 = vsub.f32 %v2058, %v2387
      %v2389 = vand.u32 %v2388, 4294901760
      %2390 = vmatmul.mubr.f32.gmra.mrb[0].mxu0 %v2389
      %v2391 = vpop.f32.mrb[0].mxu0
      %v2392 = vadd.f32 %v2310, %v2391
      %v2393 = vpop.f32.mrb[0].mxu0
      %2394 = vmatprep.mubr.f32.mxu0 0.0
      %v2395 = vand.u32 %v2061, 4294901760
      %v2396 = vsub.f32 %v2061, %v2395
      %v2397 = vand.u32 %v2396, 4294901760
      %2398 = vmatmul.mubr.f32.gmra.mrb[0].mxu0 %v2397
      %v2399 = vpop.f32.mrb[0].mxu0
      %v2400 = vadd.f32 %v2317, %v2399
      %v2401 = vpop.f32.mrb[0].mxu0
      %2402 = vdwg.mxu0
      %2403 = vmatprep.subr.mxu0 0.0
      %v2404 = vand.u32 %v2040, 4294901760
      %v2405 = vsub.f32 %v2040, %v2404
      %v2406 = vand.u32 %v2405, 4294901760
      %2407 = vmatpush1.msra.mxu0 %v2406
      %2408 = vmatprep.subr.mxu0 0.0
      %v2409 = vand.u32 %v2041, 4294901760
      %v2410 = vsub.f32 %v2041, %v2409
      %v2411 = vand.u32 %v2410, 4294901760
      %2412 = vmatpush1.msra.mxu0 %v2411
      %2413 = vmatprep.subr.mxu0 0.0
      %2414 = vmatpush1.msra.mxu0 0.0
      %2415 = vmatprep.subr.mxu0 0.0
      %2416 = vmatpush1.msra.mxu0 0.0
      %2417 = vmatprep.subr.mxu0 0.0
      %2418 = vmatpush1.msra.mxu0 0.0
      %2419 = vmatprep.subr.mxu0 0.0
      %2420 = vmatpush1.msra.mxu0 0.0
      %2421 = vmatprep.subr.mxu0 0.0
      %2422 = vmatpush1.msra.mxu0 0.0
      %2423 = vmatprep.subr.mxu0 0.0
      %2424 = vmatpush1.msra.mxu0 0.0
      %2425 = vmatprep.subr.mxu0 0.0
      %2426 = vmatpush1.msra.mxu0 0.0
      %2427 = vmatprep.subr.mxu0 0.0
      %2428 = vmatpush1.msra.mxu0 0.0
      %2429 = vmatprep.subr.mxu0 0.0
      %2430 = vmatpush1.msra.mxu0 0.0
      %2431 = vmatprep.subr.mxu0 0.0
      %2432 = vmatpush1.msra.mxu0 0.0
      %2433 = vmatprep.subr.mxu0 0.0
      %2434 = vmatpush1.msra.mxu0 0.0
      %2435 = vmatprep.subr.mxu0 0.0
      %2436 = vmatpush1.msra.mxu0 0.0
      %2437 = vmatprep.subr.mxu0 0.0
      %2438 = vmatpush1.msra.mxu0 0.0
      %2439 = vmatprep.subr.mxu0 0.0
      %2440 = vmatpush1.msra.mxu0 0.0
      %2441 = vmatprep.subr.mxu0 0.0
      %2442 = vmatpush1.msra.mxu0 0.0
      %2443 = vmatprep.subr.mxu0 0.0
      %2444 = vmatpush1.msra.mxu0 0.0
      %2445 = vmatprep.subr.mxu0 0.0
      %2446 = vmatpush1.msra.mxu0 0.0
      %2447 = vmatprep.subr.mxu0 0.0
      %2448 = vmatpush1.msra.mxu0 0.0
      %2449 = vmatprep.subr.mxu0 0.0
      %2450 = vmatpush1.msra.mxu0 0.0
      %2451 = vmatprep.subr.mxu0 0.0
      %2452 = vmatpush1.msra.mxu0 0.0
      %2453 = vmatprep.subr.mxu0 0.0
      %2454 = vmatpush1.msra.mxu0 0.0
      %2455 = vmatprep.subr.mxu0 0.0
      %2456 = vmatpush1.msra.mxu0 0.0
      %2457 = vmatprep.subr.mxu0 0.0
      %2458 = vmatpush1.msra.mxu0 0.0
      %2459 = vmatprep.subr.mxu0 0.0
      %2460 = vmatpush1.msra.mxu0 0.0
      %2461 = vmatprep.subr.mxu0 0.0
      %2462 = vmatpush1.msra.mxu0 0.0
      %2463 = vmatprep.subr.mxu0 0.0
      %2464 = vmatpush1.msra.mxu0 0.0
      %2465 = vmatprep.subr.mxu0 0.0
      %2466 = vmatpush1.msra.mxu0 0.0
      %2467 = vmatprep.subr.mxu0 0.0
      %2468 = vmatpush1.msra.mxu0 0.0
      %2469 = vmatprep.subr.mxu0 0.0
      %2470 = vmatpush1.msra.mxu0 0.0
      %2471 = vmatprep.subr.mxu0 0.0
      %2472 = vmatpush1.msra.mxu0 0.0
      %2473 = vmatprep.mubr.f32.mxu0 0.0
      %v2474 = vand.u32 %v2058, 4294901760
      %2475 = vmatmul.mubr.f32.gmra.mrb[0].mxu0 %v2474
      %v2476 = vpop.f32.mrb[0].mxu0
      %v2477 = vadd.f32 %v2392, %v2476
      %v2478 = vpop.f32.mrb[0].mxu0
      %2479 = vmatprep.mubr.f32.mxu0 0.0
      %v2480 = vand.u32 %v2061, 4294901760
      %2481 = vmatmul.mubr.f32.gmra.mrb[0].mxu0 %v2480
      %v2482 = vpop.f32.mrb[0].mxu0
      %v2483 = vadd.f32 %v2400, %v2482
      %v2484 = vpop.f32.mrb[0].mxu0
      %2485 = vdwg.mxu0
      %2486 = vmatprep.subr.mxu0 0.0
      %v2487 = vand.u32 %v2040, 4294901760
      %2488 = vmatpush1.msra.mxu0 %v2487
      %2489 = vmatprep.subr.mxu0 0.0
      %v2490 = vand.u32 %v2041, 4294901760
      %2491 = vmatpush1.msra.mxu0 %v2490
      %2492 = vmatprep.subr.mxu0 0.0
      %2493 = vmatpush1.msra.mxu0 0.0
      %2494 = vmatprep.subr.mxu0 0.0
      %2495 = vmatpush1.msra.mxu0 0.0
      %2496 = vmatprep.subr.mxu0 0.0
      %2497 = vmatpush1.msra.mxu0 0.0
      %2498 = vmatprep.subr.mxu0 0.0
      %2499 = vmatpush1.msra.mxu0 0.0
      %2500 = vmatprep.subr.mxu0 0.0
      %2501 = vmatpush1.msra.mxu0 0.0
      %2502 = vmatprep.subr.mxu0 0.0
      %2503 = vmatpush1.msra.mxu0 0.0
      %2504 = vmatprep.subr.mxu0 0.0
      %2505 = vmatpush1.msra.mxu0 0.0
      %2506 = vmatprep.subr.mxu0 0.0
      %2507 = vmatpush1.msra.mxu0 0.0
      %2508 = vmatprep.subr.mxu0 0.0
      %2509 = vmatpush1.msra.mxu0 0.0
      %2510 = vmatprep.subr.mxu0 0.0
      %2511 = vmatpush1.msra.mxu0 0.0
      %2512 = vmatprep.subr.mxu0 0.0
      %2513 = vmatpush1.msra.mxu0 0.0
      %2514 = vmatprep.subr.mxu0 0.0
      %2515 = vmatpush1.msra.mxu0 0.0
      %2516 = vmatprep.subr.mxu0 0.0
      %2517 = vmatpush1.msra.mxu0 0.0
      %2518 = vmatprep.subr.mxu0 0.0
      %2519 = vmatpush1.msra.mxu0 0.0
      %2520 = vmatprep.subr.mxu0 0.0
      %2521 = vmatpush1.msra.mxu0 0.0
      %2522 = vmatprep.subr.mxu0 0.0
      %2523 = vmatpush1.msra.mxu0 0.0
      %2524 = vmatprep.subr.mxu0 0.0
      %2525 = vmatpush1.msra.mxu0 0.0
      %2526 = vmatprep.subr.mxu0 0.0
      %2527 = vmatpush1.msra.mxu0 0.0
      %2528 = vmatprep.subr.mxu0 0.0
      %2529 = vmatpush1.msra.mxu0 0.0
      %2530 = vmatprep.subr.mxu0 0.0
      %2531 = vmatpush1.msra.mxu0 0.0
      %2532 = vmatprep.subr.mxu0 0.0
      %2533 = vmatpush1.msra.mxu0 0.0
      %2534 = vmatprep.subr.mxu0 0.0
      %2535 = vmatpush1.msra.mxu0 0.0
      %2536 = vmatprep.subr.mxu0 0.0
      %2537 = vmatpush1.msra.mxu0 0.0
      %2538 = vmatprep.subr.mxu0 0.0
      %2539 = vmatpush1.msra.mxu0 0.0
      %2540 = vmatprep.subr.mxu0 0.0
      %2541 = vmatpush1.msra.mxu0 0.0
      %2542 = vmatprep.subr.mxu0 0.0
      %2543 = vmatpush1.msra.mxu0 0.0
      %2544 = vmatprep.subr.mxu0 0.0
      %2545 = vmatpush1.msra.mxu0 0.0
      %2546 = vmatprep.subr.mxu0 0.0
      %2547 = vmatpush1.msra.mxu0 0.0
      %2548 = vmatprep.subr.mxu0 0.0
      %2549 = vmatpush1.msra.mxu0 0.0
      %2550 = vmatprep.subr.mxu0 0.0
      %2551 = vmatpush1.msra.mxu0 0.0
      %2552 = vmatprep.mubr.f32.mxu0 0.0
      %v2553 = vand.u32 %v2058, 4294901760
      %2554 = vmatmul.mubr.f32.gmra.mrb[0].mxu0 %v2553
      %v2555 = vpop.f32.mrb[0].mxu0
      %v2556 = vadd.f32 %v2477, %v2555
      %v2557 = vpop.f32.mrb[0].mxu0
      %2558 = vmatprep.mubr.f32.mxu0 0.0
      %v2559 = vand.u32 %v2061, 4294901760
      %2560 = vmatmul.mubr.f32.gmra.mrb[0].mxu0 %v2559
      %v2561 = vpop.f32.mrb[0].mxu0
      %v2562 = vadd.f32 %v2483, %v2561
      %v2563 = vpop.f32.mrb[0].mxu0
      %2564 = vdwg.mxu0
      %v2565 = vmax.f32 %v2556, 0.0
      %v2566 = vmax.f32 %v2562, 0.0
      %v2567 = vld [vmem:[%s7] sm:$0xff]
      %v2568 = vld [vmem:[%s7 + $0x8] sm:$0xff]
      %v2569 = vld [vmem:[%s8] sm:$0xff]
      %v2570 = vld [vmem:[%s8 + $0x8] sm:$0xff]
      %v2571 = vld [vmem:[%s9] sm:$0x1]
      %v2572 = vld [vmem:[%s10] sm:$0x1]
      %v2574 = vlaneseq
      %v2575 = vshrl.u32 %v2574, 7
      %v2576 = vsub.s32 0, %v2575
      %v2577 = vrot.slane %v2571, %v2576
      %2579 = vxpose.xlu0.b32.start [1/16] %v2565, 128
      %2580 = vxpose.xlu0.b32.cont [2/16] %v2566, 128
      %2581 = vxpose.xlu0.b32.cont [3/16] 0.0, 128
      %2582 = vxpose.xlu0.b32.cont [4/16] 0.0, 128
      %2583 = vxpose.xlu0.b32.cont [5/16] 0.0, 128
      %2584 = vxpose.xlu0.b32.cont [6/16] 0.0, 128
      %2585 = vxpose.xlu0.b32.cont [7/16] 0.0, 128
      %2586 = vxpose.xlu0.b32.cont [8/16] 0.0, 128
      %2587 = vxpose.xlu0.b32.cont [9/16] 0.0, 128
      %2588 = vxpose.xlu0.b32.cont [10/16] 0.0, 128
      %2589 = vxpose.xlu0.b32.cont [11/16] 0.0, 128
      %2590 = vxpose.xlu0.b32.cont [12/16] 0.0, 128
      %2591 = vxpose.xlu0.b32.cont [13/16] 0.0, 128
      %2592 = vxpose.xlu0.b32.cont [14/16] 0.0, 128
      %2593 = vxpose.xlu0.b32.cont [15/16] 0.0, 128
      %2594 = vxpose.xlu0.b32.end [16/16] 0.0, 128
      %v2595 = vpop.trf.xlu0
      %v2596 = vpop.trf.xlu0
      %v2597 = vpop.trf.xlu0
      %v2598 = vpop.trf.xlu0
      %v2599 = vpop.trf.xlu0
      %v2600 = vpop.trf.xlu0
      %v2601 = vpop.trf.xlu0
      %v2602 = vpop.trf.xlu0
      %v2603 = vpop.trf.xlu0
      %v2604 = vpop.trf.xlu0
      %v2605 = vpop.trf.xlu0
      %v2606 = vpop.trf.xlu0
      %v2607 = vpop.trf.xlu0
      %v2608 = vpop.trf.xlu0
      %v2609 = vpop.trf.xlu0
      %v2610 = vpop.trf.xlu0
      %v2612 = vsel %vm2056, %v2595, 0
      %v2615 = vsel %vm2056, %v2596, 0
      %v2618 = vsel %vm2056, %v2597, 0
      %v2621 = vsel %vm2056, %v2598, 0
      %v2624 = vsel %vm2056, %v2599, 0
      %v2627 = vsel %vm2056, %v2600, 0
      %v2630 = vsel %vm2056, %v2601, 0
      %v2633 = vsel %vm2056, %v2602, 0
      %v2636 = vsel %vm2056, %v2603, 0
      %v2639 = vsel %vm2056, %v2604, 0
      %v2642 = vsel %vm2056, %v2605, 0
      %v2645 = vsel %vm2056, %v2606, 0
      %v2648 = vsel %vm2056, %v2607, 0
      %v2651 = vsel %vm2056, %v2608, 0
      %v2654 = vsel %vm2056, %v2609, 0
      %v2657 = vsel %vm2056, %v2610, 0
      %2659 = vmatprep.subr.mxu0 0.0
      %v2660 = vand.u32 %v2567, 4294901760
      %2661 = vmatpush1.msra.mxu0 %v2660
      %2662 = vmatprep.subr.mxu0 0.0
      %v2663 = vand.u32 %v2568, 4294901760
      %2664 = vmatpush1.msra.mxu0 %v2663
      %2665 = vmatprep.subr.mxu0 0.0
      %2666 = vmatpush1.msra.mxu0 0.0
      %2667 = vmatprep.subr.mxu0 0.0
      %2668 = vmatpush1.msra.mxu0 0.0
      %2669 = vmatprep.subr.mxu0 0.0
      %2670 = vmatpush1.msra.mxu0 0.0
      %2671 = vmatprep.subr.mxu0 0.0
      %2672 = vmatpush1.msra.mxu0 0.0
      %2673 = vmatprep.subr.mxu0 0.0
      %2674 = vmatpush1.msra.mxu0 0.0
      %2675 = vmatprep.subr.mxu0 0.0
      %2676 = vmatpush1.msra.mxu0 0.0
      %2677 = vmatprep.subr.mxu0 0.0
      %2678 = vmatpush1.msra.mxu0 0.0
      %2679 = vmatprep.subr.mxu0 0.0
      %2680 = vmatpush1.msra.mxu0 0.0
      %2681 = vmatprep.subr.mxu0 0.0
      %2682 = vmatpush1.msra.mxu0 0.0
      %2683 = vmatprep.subr.mxu0 0.0
      %2684 = vmatpush1.msra.mxu0 0.0
      %2685 = vmatprep.subr.mxu0 0.0
      %2686 = vmatpush1.msra.mxu0 0.0
      %2687 = vmatprep.subr.mxu0 0.0
      %2688 = vmatpush1.msra.mxu0 0.0
      %2689 = vmatprep.subr.mxu0 0.0
      %2690 = vmatpush1.msra.mxu0 0.0
      %2691 = vmatprep.subr.mxu0 0.0
      %2692 = vmatpush1.msra.mxu0 0.0
      %2693 = vmatprep.subr.mxu0 0.0
      %2694 = vmatpush1.msra.mxu0 0.0
      %2695 = vmatprep.subr.mxu0 0.0
      %2696 = vmatpush1.msra.mxu0 0.0
      %2697 = vmatprep.subr.mxu0 0.0
      %2698 = vmatpush1.msra.mxu0 0.0
      %2699 = vmatprep.subr.mxu0 0.0
      %2700 = vmatpush1.msra.mxu0 0.0
      %2701 = vmatprep.subr.mxu0 0.0
      %2702 = vmatpush1.msra.mxu0 0.0
      %2703 = vmatprep.subr.mxu0 0.0
      %2704 = vmatpush1.msra.mxu0 0.0
      %2705 = vmatprep.subr.mxu0 0.0
      %2706 = vmatpush1.msra.mxu0 0.0
      %2707 = vmatprep.subr.mxu0 0.0
      %2708 = vmatpush1.msra.mxu0 0.0
      %2709 = vmatprep.subr.mxu0 0.0
      %2710 = vmatpush1.msra.mxu0 0.0
      %2711 = vmatprep.subr.mxu0 0.0
      %2712 = vmatpush1.msra.mxu0 0.0
      %2713 = vmatprep.subr.mxu0 0.0
      %2714 = vmatpush1.msra.mxu0 0.0
      %2715 = vmatprep.subr.mxu0 0.0
      %2716 = vmatpush1.msra.mxu0 0.0
      %2717 = vmatprep.subr.mxu0 0.0
      %2718 = vmatpush1.msra.mxu0 0.0
      %2719 = vmatprep.subr.mxu0 0.0
      %2720 = vmatpush1.msra.mxu0 0.0
      %2721 = vmatprep.subr.mxu0 0.0
      %2722 = vmatpush1.msra.mxu0 0.0
      %2723 = vmatprep.subr.mxu0 0.0
      %2724 = vmatpush1.msra.mxu0 0.0
      %2725 = vmatprep.mubr.f32.mxu0 0.0
      %v2726 = vand.u32 %v2612, 4294901760
      %v2727 = vsub.f32 %v2612, %v2726
      %v2728 = vand.u32 %v2727, 4294901760
      %v2729 = vsub.f32 %v2727, %v2728
      %v2730 = vand.u32 %v2729, 4294901760
      %2731 = vmatmul.mubr.f32.gmra.mrb[0].mxu0 %v2730
      %v2732 = vpop.f32.mrb[0].mxu0
      %v2733 = vadd.f32 %v2577, %v2732
      %v2734 = vpop.f32.mrb[0].mxu0
      %2735 = vmatprep.mubr.f32.mxu0 0.0
      %v2736 = vand.u32 %v2615, 4294901760
      %v2737 = vsub.f32 %v2615, %v2736
      %v2738 = vand.u32 %v2737, 4294901760
      %v2739 = vsub.f32 %v2737, %v2738
      %v2740 = vand.u32 %v2739, 4294901760
      %2741 = vmatmul.mubr.f32.gmra.mrb[0].mxu0 %v2740
      %v2742 = vpop.f32.mrb[0].mxu0
      %v2743 = vadd.f32 %v2577, %v2742
      %v2744 = vpop.f32.mrb[0].mxu0
      %2745 = vmatprep.mubr.f32.mxu0 0.0
      %v2746 = vand.u32 %v2618, 4294901760
      %v2747 = vsub.f32 %v2618, %v2746
      %v2748 = vand.u32 %v2747, 4294901760
      %v2749 = vsub.f32 %v2747, %v2748
      %v2750 = vand.u32 %v2749, 4294901760
      %2751 = vmatmul.mubr.f32.gmra.mrb[0].mxu0 %v2750
      %v2752 = vpop.f32.mrb[0].mxu0
      %v2753 = vadd.f32 %v2577, %v2752
      %v2754 = vpop.f32.mrb[0].mxu0
      %2755 = vmatprep.mubr.f32.mxu0 0.0
      %v2756 = vand.u32 %v2621, 4294901760
      %v2757 = vsub.f32 %v2621, %v2756
      %v2758 = vand.u32 %v2757, 4294901760
      %v2759 = vsub.f32 %v2757, %v2758
      %v2760 = vand.u32 %v2759, 4294901760
      %2761 = vmatmul.mubr.f32.gmra.mrb[0].mxu0 %v2760
      %v2762 = vpop.f32.mrb[0].mxu0
      %v2763 = vadd.f32 %v2577, %v2762
      %v2764 = vpop.f32.mrb[0].mxu0
      %2765 = vmatprep.mubr.f32.mxu0 0.0
      %v2766 = vand.u32 %v2624, 4294901760
      %v2767 = vsub.f32 %v2624, %v2766
      %v2768 = vand.u32 %v2767, 4294901760
      %v2769 = vsub.f32 %v2767, %v2768
      %v2770 = vand.u32 %v2769, 4294901760
      %2771 = vmatmul.mubr.f32.gmra.mrb[0].mxu0 %v2770
      %v2772 = vpop.f32.mrb[0].mxu0
      %v2773 = vadd.f32 %v2577, %v2772
      %v2774 = vpop.f32.mrb[0].mxu0
      %2775 = vmatprep.mubr.f32.mxu0 0.0
      %v2776 = vand.u32 %v2627, 4294901760
      %v2777 = vsub.f32 %v2627, %v2776
      %v2778 = vand.u32 %v2777, 4294901760
      %v2779 = vsub.f32 %v2777, %v2778
      %v2780 = vand.u32 %v2779, 4294901760
      %2781 = vmatmul.mubr.f32.gmra.mrb[0].mxu0 %v2780
      %v2782 = vpop.f32.mrb[0].mxu0
      %v2783 = vadd.f32 %v2577, %v2782
      %v2784 = vpop.f32.mrb[0].mxu0
      %2785 = vmatprep.mubr.f32.mxu0 0.0
      %v2786 = vand.u32 %v2630, 4294901760
      %v2787 = vsub.f32 %v2630, %v2786
      %v2788 = vand.u32 %v2787, 4294901760
      %v2789 = vsub.f32 %v2787, %v2788
      %v2790 = vand.u32 %v2789, 4294901760
      %2791 = vmatmul.mubr.f32.gmra.mrb[0].mxu0 %v2790
      %v2792 = vpop.f32.mrb[0].mxu0
      %v2793 = vadd.f32 %v2577, %v2792
      %v2794 = vpop.f32.mrb[0].mxu0
      %2795 = vmatprep.mubr.f32.mxu0 0.0
      %v2796 = vand.u32 %v2633, 4294901760
      %v2797 = vsub.f32 %v2633, %v2796
      %v2798 = vand.u32 %v2797, 4294901760
      %v2799 = vsub.f32 %v2797, %v2798
      %v2800 = vand.u32 %v2799, 4294901760
      %2801 = vmatmul.mubr.f32.gmra.mrb[0].mxu0 %v2800
      %v2802 = vpop.f32.mrb[0].mxu0
      %v2803 = vadd.f32 %v2577, %v2802
      %v2804 = vpop.f32.mrb[0].mxu0
      %2805 = vmatprep.mubr.f32.mxu0 0.0
      %v2806 = vand.u32 %v2636, 4294901760
      %v2807 = vsub.f32 %v2636, %v2806
      %v2808 = vand.u32 %v2807, 4294901760
      %v2809 = vsub.f32 %v2807, %v2808
      %v2810 = vand.u32 %v2809, 4294901760
      %2811 = vmatmul.mubr.f32.gmra.mrb[0].mxu0 %v2810
      %v2812 = vpop.f32.mrb[0].mxu0
      %v2813 = vadd.f32 %v2577, %v2812
      %v2814 = vpop.f32.mrb[0].mxu0
      %2815 = vmatprep.mubr.f32.mxu0 0.0
      %v2816 = vand.u32 %v2639, 4294901760
      %v2817 = vsub.f32 %v2639, %v2816
      %v2818 = vand.u32 %v2817, 4294901760
      %v2819 = vsub.f32 %v2817, %v2818
      %v2820 = vand.u32 %v2819, 4294901760
      %2821 = vmatmul.mubr.f32.gmra.mrb[0].mxu0 %v2820
      %v2822 = vpop.f32.mrb[0].mxu0
      %v2823 = vadd.f32 %v2577, %v2822
      %v2824 = vpop.f32.mrb[0].mxu0
      %2825 = vmatprep.mubr.f32.mxu0 0.0
      %v2826 = vand.u32 %v2642, 4294901760
      %v2827 = vsub.f32 %v2642, %v2826
      %v2828 = vand.u32 %v2827, 4294901760
      %v2829 = vsub.f32 %v2827, %v2828
      %v2830 = vand.u32 %v2829, 4294901760
      %2831 = vmatmul.mubr.f32.gmra.mrb[0].mxu0 %v2830
      %v2832 = vpop.f32.mrb[0].mxu0
      %v2833 = vadd.f32 %v2577, %v2832
      %v2834 = vpop.f32.mrb[0].mxu0
      %2835 = vmatprep.mubr.f32.mxu0 0.0
      %v2836 = vand.u32 %v2645, 4294901760
      %v2837 = vsub.f32 %v2645, %v2836
      %v2838 = vand.u32 %v2837, 4294901760
      %v2839 = vsub.f32 %v2837, %v2838
      %v2840 = vand.u32 %v2839, 4294901760
      %2841 = vmatmul.mubr.f32.gmra.mrb[0].mxu0 %v2840
      %v2842 = vpop.f32.mrb[0].mxu0
      %v2843 = vadd.f32 %v2577, %v2842
      %v2844 = vpop.f32.mrb[0].mxu0
      %2845 = vmatprep.mubr.f32.mxu0 0.0
      %v2846 = vand.u32 %v2648, 4294901760
      %v2847 = vsub.f32 %v2648, %v2846
      %v2848 = vand.u32 %v2847, 4294901760
      %v2849 = vsub.f32 %v2847, %v2848
      %v2850 = vand.u32 %v2849, 4294901760
      %2851 = vmatmul.mubr.f32.gmra.mrb[0].mxu0 %v2850
      %v2852 = vpop.f32.mrb[0].mxu0
      %v2853 = vadd.f32 %v2577, %v2852
      %v2854 = vpop.f32.mrb[0].mxu0
      %2855 = vmatprep.mubr.f32.mxu0 0.0
      %v2856 = vand.u32 %v2651, 4294901760
      %v2857 = vsub.f32 %v2651, %v2856
      %v2858 = vand.u32 %v2857, 4294901760
      %v2859 = vsub.f32 %v2857, %v2858
      %v2860 = vand.u32 %v2859, 4294901760
      %2861 = vmatmul.mubr.f32.gmra.mrb[0].mxu0 %v2860
      %v2862 = vpop.f32.mrb[0].mxu0
      %v2863 = vadd.f32 %v2577, %v2862
      %v2864 = vpop.f32.mrb[0].mxu0
      %2865 = vmatprep.mubr.f32.mxu0 0.0
      %v2866 = vand.u32 %v2654, 4294901760
      %v2867 = vsub.f32 %v2654, %v2866
      %v2868 = vand.u32 %v2867, 4294901760
      %v2869 = vsub.f32 %v2867, %v2868
      %v2870 = vand.u32 %v2869, 4294901760
      %2871 = vmatmul.mubr.f32.gmra.mrb[0].mxu0 %v2870
      %v2872 = vpop.f32.mrb[0].mxu0
      %v2873 = vadd.f32 %v2577, %v2872
      %v2874 = vpop.f32.mrb[0].mxu0
      %2875 = vmatprep.mubr.f32.mxu0 0.0
      %v2876 = vand.u32 %v2657, 4294901760
      %v2877 = vsub.f32 %v2657, %v2876
      %v2878 = vand.u32 %v2877, 4294901760
      %v2879 = vsub.f32 %v2877, %v2878
      %v2880 = vand.u32 %v2879, 4294901760
      %2881 = vmatmul.mubr.f32.gmra.mrb[0].mxu0 %v2880
      %v2882 = vpop.f32.mrb[0].mxu0
      %v2883 = vadd.f32 %v2577, %v2882
      %v2884 = vpop.f32.mrb[0].mxu0
      %2885 = vdwg.mxu0
      %2886 = vmatprep.subr.mxu0 0.0
      %v2887 = vand.u32 %v2567, 4294901760
      %v2888 = vsub.f32 %v2567, %v2887
      %v2889 = vand.u32 %v2888, 4294901760
      %v2890 = vsub.f32 %v2888, %v2889
      %v2891 = vand.u32 %v2890, 4294901760
      %2892 = vmatpush1.msra.mxu0 %v2891
      %2893 = vmatprep.subr.mxu0 0.0
      %v2894 = vand.u32 %v2568, 4294901760
      %v2895 = vsub.f32 %v2568, %v2894
      %v2896 = vand.u32 %v2895, 4294901760
      %v2897 = vsub.f32 %v2895, %v2896
      %v2898 = vand.u32 %v2897, 4294901760
      %2899 = vmatpush1.msra.mxu0 %v2898
      %2900 = vmatprep.subr.mxu0 0.0
      %2901 = vmatpush1.msra.mxu0 0.0
      %2902 = vmatprep.subr.mxu0 0.0
      %2903 = vmatpush1.msra.mxu0 0.0
      %2904 = vmatprep.subr.mxu0 0.0
      %2905 = vmatpush1.msra.mxu0 0.0
      %2906 = vmatprep.subr.mxu0 0.0
      %2907 = vmatpush1.msra.mxu0 0.0
      %2908 = vmatprep.subr.mxu0 0.0
      %2909 = vmatpush1.msra.mxu0 0.0
      %2910 = vmatprep.subr.mxu0 0.0
      %2911 = vmatpush1.msra.mxu0 0.0
      %2912 = vmatprep.subr.mxu0 0.0
      %2913 = vmatpush1.msra.mxu0 0.0
      %2914 = vmatprep.subr.mxu0 0.0
      %2915 = vmatpush1.msra.mxu0 0.0
      %2916 = vmatprep.subr.mxu0 0.0
      %2917 = vmatpush1.msra.mxu0 0.0
      %2918 = vmatprep.subr.mxu0 0.0
      %2919 = vmatpush1.msra.mxu0 0.0
      %2920 = vmatprep.subr.mxu0 0.0
      %2921 = vmatpush1.msra.mxu0 0.0
      %2922 = vmatprep.subr.mxu0 0.0
      %2923 = vmatpush1.msra.mxu0 0.0
      %2924 = vmatprep.subr.mxu0 0.0
      %2925 = vmatpush1.msra.mxu0 0.0
      %2926 = vmatprep.subr.mxu0 0.0
      %2927 = vmatpush1.msra.mxu0 0.0
      %2928 = vmatprep.subr.mxu0 0.0
      %2929 = vmatpush1.msra.mxu0 0.0
      %2930 = vmatprep.subr.mxu0 0.0
      %2931 = vmatpush1.msra.mxu0 0.0
      %2932 = vmatprep.subr.mxu0 0.0
      %2933 = vmatpush1.msra.mxu0 0.0
      %2934 = vmatprep.subr.mxu0 0.0
      %2935 = vmatpush1.msra.mxu0 0.0
      %2936 = vmatprep.subr.mxu0 0.0
      %2937 = vmatpush1.msra.mxu0 0.0
      %2938 = vmatprep.subr.mxu0 0.0
      %2939 = vmatpush1.msra.mxu0 0.0
      %2940 = vmatprep.subr.mxu0 0.0
      %2941 = vmatpush1.msra.mxu0 0.0
      %2942 = vmatprep.subr.mxu0 0.0
      %2943 = vmatpush1.msra.mxu0 0.0
      %2944 = vmatprep.subr.mxu0 0.0
      %2945 = vmatpush1.msra.mxu0 0.0
      %2946 = vmatprep.subr.mxu0 0.0
      %2947 = vmatpush1.msra.mxu0 0.0
      %2948 = vmatprep.subr.mxu0 0.0
      %2949 = vmatpush1.msra.mxu0 0.0
      %2950 = vmatprep.subr.mxu0 0.0
      %2951 = vmatpush1.msra.mxu0 0.0
      %2952 = vmatprep.subr.mxu0 0.0
      %2953 = vmatpush1.msra.mxu0 0.0
      %2954 = vmatprep.subr.mxu0 0.0
      %2955 = vmatpush1.msra.mxu0 0.0
      %2956 = vmatprep.subr.mxu0 0.0
      %2957 = vmatpush1.msra.mxu0 0.0
      %2958 = vmatprep.subr.mxu0 0.0
      %2959 = vmatpush1.msra.mxu0 0.0
      %2960 = vmatprep.mubr.f32.mxu0 0.0
      %v2961 = vand.u32 %v2612, 4294901760
      %2962 = vmatmul.mubr.f32.gmra.mrb[0].mxu0 %v2961
      %v2963 = vpop.f32.mrb[0].mxu0
      %v2964 = vadd.f32 %v2733, %v2963
      %v2965 = vpop.f32.mrb[0].mxu0
      %2966 = vmatprep.mubr.f32.mxu0 0.0
      %v2967 = vand.u32 %v2615, 4294901760
      %2968 = vmatmul.mubr.f32.gmra.mrb[0].mxu0 %v2967
      %v2969 = vpop.f32.mrb[0].mxu0
      %v2970 = vadd.f32 %v2743, %v2969
      %v2971 = vpop.f32.mrb[0].mxu0
      %2972 = vmatprep.mubr.f32.mxu0 0.0
      %v2973 = vand.u32 %v2618, 4294901760
      %2974 = vmatmul.mubr.f32.gmra.mrb[0].mxu0 %v2973
      %v2975 = vpop.f32.mrb[0].mxu0
      %v2976 = vadd.f32 %v2753, %v2975
      %v2977 = vpop.f32.mrb[0].mxu0
      %2978 = vmatprep.mubr.f32.mxu0 0.0
      %v2979 = vand.u32 %v2621, 4294901760
      %2980 = vmatmul.mubr.f32.gmra.mrb[0].mxu0 %v2979
      %v2981 = vpop.f32.mrb[0].mxu0
      %v2982 = vadd.f32 %v2763, %v2981
      %v2983 = vpop.f32.mrb[0].mxu0
      %2984 = vmatprep.mubr.f32.mxu0 0.0
      %v2985 = vand.u32 %v2624, 4294901760
      %2986 = vmatmul.mubr.f32.gmra.mrb[0].mxu0 %v2985
      %v2987 = vpop.f32.mrb[0].mxu0
      %v2988 = vadd.f32 %v2773, %v2987
      %v2989 = vpop.f32.mrb[0].mxu0
      %2990 = vmatprep.mubr.f32.mxu0 0.0
      %v2991 = vand.u32 %v2627, 4294901760
      %2992 = vmatmul.mubr.f32.gmra.mrb[0].mxu0 %v2991
      %v2993 = vpop.f32.mrb[0].mxu0
      %v2994 = vadd.f32 %v2783, %v2993
      %v2995 = vpop.f32.mrb[0].mxu0
      %2996 = vmatprep.mubr.f32.mxu0 0.0
      %v2997 = vand.u32 %v2630, 4294901760
      %2998 = vmatmul.mubr.f32.gmra.mrb[0].mxu0 %v2997
      %v2999 = vpop.f32.mrb[0].mxu0
      %v3000 = vadd.f32 %v2793, %v2999
      %v3001 = vpop.f32.mrb[0].mxu0
      %3002 = vmatprep.mubr.f32.mxu0 0.0
      %v3003 = vand.u32 %v2633, 4294901760
      %3004 = vmatmul.mubr.f32.gmra.mrb[0].mxu0 %v3003
      %v3005 = vpop.f32.mrb[0].mxu0
      %v3006 = vadd.f32 %v2803, %v3005
      %v3007 = vpop.f32.mrb[0].mxu0
      %3008 = vmatprep.mubr.f32.mxu0 0.0
      %v3009 = vand.u32 %v2636, 4294901760
      %3010 = vmatmul.mubr.f32.gmra.mrb[0].mxu0 %v3009
      %v3011 = vpop.f32.mrb[0].mxu0
      %v3012 = vadd.f32 %v2813, %v3011
      %v3013 = vpop.f32.mrb[0].mxu0
      %3014 = vmatprep.mubr.f32.mxu0 0.0
      %v3015 = vand.u32 %v2639, 4294901760
      %3016 = vmatmul.mubr.f32.gmra.mrb[0].mxu0 %v3015
      %v3017 = vpop.f32.mrb[0].mxu0
      %v3018 = vadd.f32 %v2823, %v3017
      %v3019 = vpop.f32.mrb[0].mxu0
      %3020 = vmatprep.mubr.f32.mxu0 0.0
      %v3021 = vand.u32 %v2642, 4294901760
      %3022 = vmatmul.mubr.f32.gmra.mrb[0].mxu0 %v3021
      %v3023 = vpop.f32.mrb[0].mxu0
      %v3024 = vadd.f32 %v2833, %v3023
      %v3025 = vpop.f32.mrb[0].mxu0
      %3026 = vmatprep.mubr.f32.mxu0 0.0
      %v3027 = vand.u32 %v2645, 4294901760
      %3028 = vmatmul.mubr.f32.gmra.mrb[0].mxu0 %v3027
      %v3029 = vpop.f32.mrb[0].mxu0
      %v3030 = vadd.f32 %v2843, %v3029
      %v3031 = vpop.f32.mrb[0].mxu0
      %3032 = vmatprep.mubr.f32.mxu0 0.0
      %v3033 = vand.u32 %v2648, 4294901760
      %3034 = vmatmul.mubr.f32.gmra.mrb[0].mxu0 %v3033
      %v3035 = vpop.f32.mrb[0].mxu0
      %v3036 = vadd.f32 %v2853, %v3035
      %v3037 = vpop.f32.mrb[0].mxu0
      %3038 = vmatprep.mubr.f32.mxu0 0.0
      %v3039 = vand.u32 %v2651, 4294901760
      %3040 = vmatmul.mubr.f32.gmra.mrb[0].mxu0 %v3039
      %v3041 = vpop.f32.mrb[0].mxu0
      %v3042 = vadd.f32 %v2863, %v3041
      %v3043 = vpop.f32.mrb[0].mxu0
      %3044 = vmatprep.mubr.f32.mxu0 0.0
      %v3045 = vand.u32 %v2654, 4294901760
      %3046 = vmatmul.mubr.f32.gmra.mrb[0].mxu0 %v3045
      %v3047 = vpop.f32.mrb[0].mxu0
      %v3048 = vadd.f32 %v2873, %v3047
      %v3049 = vpop.f32.mrb[0].mxu0
      %3050 = vmatprep.mubr.f32.mxu0 0.0
      %v3051 = vand.u32 %v2657, 4294901760
      %3052 = vmatmul.mubr.f32.gmra.mrb[0].mxu0 %v3051
      %v3053 = vpop.f32.mrb[0].mxu0
      %v3054 = vadd.f32 %v2883, %v3053
      %v3055 = vpop.f32.mrb[0].mxu0
      %3056 = vdwg.mxu0
      %3057 = vmatprep.subr.mxu0 0.0
      %v3058 = vand.u32 %v2567, 4294901760
      %v3059 = vsub.f32 %v2567, %v3058
      %3060 = vmatpush1.msra.mxu0 %v3059
      %3061 = vmatprep.subr.mxu0 0.0
      %v3062 = vand.u32 %v2568, 4294901760
      %v3063 = vsub.f32 %v2568, %v3062
      %3064 = vmatpush1.msra.mxu0 %v3063
      %3065 = vmatprep.subr.mxu0 0.0
      %3066 = vmatpush1.msra.mxu0 0.0
      %3067 = vmatprep.subr.mxu0 0.0
      %3068 = vmatpush1.msra.mxu0 0.0
      %3069 = vmatprep.subr.mxu0 0.0
      %3070 = vmatpush1.msra.mxu0 0.0
      %3071 = vmatprep.subr.mxu0 0.0
      %3072 = vmatpush1.msra.mxu0 0.0
      %3073 = vmatprep.subr.mxu0 0.0
      %3074 = vmatpush1.msra.mxu0 0.0
      %3075 = vmatprep.subr.mxu0 0.0
      %3076 = vmatpush1.msra.mxu0 0.0
      %3077 = vmatprep.subr.mxu0 0.0
      %3078 = vmatpush1.msra.mxu0 0.0
      %3079 = vmatprep.subr.mxu0 0.0
      %3080 = vmatpush1.msra.mxu0 0.0
      %3081 = vmatprep.subr.mxu0 0.0
      %3082 = vmatpush1.msra.mxu0 0.0
      %3083 = vmatprep.subr.mxu0 0.0
      %3084 = vmatpush1.msra.mxu0 0.0
      %3085 = vmatprep.subr.mxu0 0.0
      %3086 = vmatpush1.msra.mxu0 0.0
      %3087 = vmatprep.subr.mxu0 0.0
      %3088 = vmatpush1.msra.mxu0 0.0
      %3089 = vmatprep.subr.mxu0 0.0
      %3090 = vmatpush1.msra.mxu0 0.0
      %3091 = vmatprep.subr.mxu0 0.0
      %3092 = vmatpush1.msra.mxu0 0.0
      %3093 = vmatprep.subr.mxu0 0.0
      %3094 = vmatpush1.msra.mxu0 0.0
      %3095 = vmatprep.subr.mxu0 0.0
      %3096 = vmatpush1.msra.mxu0 0.0
      %3097 = vmatprep.subr.mxu0 0.0
      %3098 = vmatpush1.msra.mxu0 0.0
      %3099 = vmatprep.subr.mxu0 0.0
      %3100 = vmatpush1.msra.mxu0 0.0
      %3101 = vmatprep.subr.mxu0 0.0
      %3102 = vmatpush1.msra.mxu0 0.0
      %3103 = vmatprep.subr.mxu0 0.0
      %3104 = vmatpush1.msra.mxu0 0.0
      %3105 = vmatprep.subr.mxu0 0.0
      %3106 = vmatpush1.msra.mxu0 0.0
      %3107 = vmatprep.subr.mxu0 0.0
      %3108 = vmatpush1.msra.mxu0 0.0
      %3109 = vmatprep.subr.mxu0 0.0
      %3110 = vmatpush1.msra.mxu0 0.0
      %3111 = vmatprep.subr.mxu0 0.0
      %3112 = vmatpush1.msra.mxu0 0.0
      %3113 = vmatprep.subr.mxu0 0.0
      %3114 = vmatpush1.msra.mxu0 0.0
      %3115 = vmatprep.subr.mxu0 0.0
      %3116 = vmatpush1.msra.mxu0 0.0
      %3117 = vmatprep.subr.mxu0 0.0
      %3118 = vmatpush1.msra.mxu0 0.0
      %3119 = vmatprep.subr.mxu0 0.0
      %3120 = vmatpush1.msra.mxu0 0.0
      %3121 = vmatprep.subr.mxu0 0.0
      %3122 = vmatpush1.msra.mxu0 0.0
      %3123 = vmatprep.subr.mxu0 0.0
      %3124 = vmatpush1.msra.mxu0 0.0
      %3125 = vmatprep.mubr.f32.mxu0 0.0
      %v3126 = vand.u32 %v2612, 4294901760
      %v3127 = vsub.f32 %v2612, %v3126
      %3128 = vmatmul.mubr.f32.gmra.mrb[0].mxu0 %v3127
      %v3129 = vpop.f32.mrb[0].mxu0
      %v3130 = vadd.f32 %v2964, %v3129
      %v3131 = vpop.f32.mrb[0].mxu0
      %3132 = vmatprep.mubr.f32.mxu0 0.0
      %v3133 = vand.u32 %v2615, 4294901760
      %v3134 = vsub.f32 %v2615, %v3133
      %3135 = vmatmul.mubr.f32.gmra.mrb[0].mxu0 %v3134
      %v3136 = vpop.f32.mrb[0].mxu0
      %v3137 = vadd.f32 %v2970, %v3136
      %v3138 = vpop.f32.mrb[0].mxu0
      %3139 = vmatprep.mubr.f32.mxu0 0.0
      %v3140 = vand.u32 %v2618, 4294901760
      %v3141 = vsub.f32 %v2618, %v3140
      %3142 = vmatmul.mubr.f32.gmra.mrb[0].mxu0 %v3141
      %v3143 = vpop.f32.mrb[0].mxu0
      %v3144 = vadd.f32 %v2976, %v3143
      %v3145 = vpop.f32.mrb[0].mxu0
      %3146 = vmatprep.mubr.f32.mxu0 0.0
      %v3147 = vand.u32 %v2621, 4294901760
      %v3148 = vsub.f32 %v2621, %v3147
      %3149 = vmatmul.mubr.f32.gmra.mrb[0].mxu0 %v3148
      %v3150 = vpop.f32.mrb[0].mxu0
      %v3151 = vadd.f32 %v2982, %v3150
      %v3152 = vpop.f32.mrb[0].mxu0
      %3153 = vmatprep.mubr.f32.mxu0 0.0
      %v3154 = vand.u32 %v2624, 4294901760
      %v3155 = vsub.f32 %v2624, %v3154
      %3156 = vmatmul.mubr.f32.gmra.mrb[0].mxu0 %v3155
      %v3157 = vpop.f32.mrb[0].mxu0
      %v3158 = vadd.f32 %v2988, %v3157
      %v3159 = vpop.f32.mrb[0].mxu0
      %3160 = vmatprep.mubr.f32.mxu0 0.0
      %v3161 = vand.u32 %v2627, 4294901760
      %v3162 = vsub.f32 %v2627, %v3161
      %3163 = vmatmul.mubr.f32.gmra.mrb[0].mxu0 %v3162
      %v3164 = vpop.f32.mrb[0].mxu0
      %v3165 = vadd.f32 %v2994, %v3164
      %v3166 = vpop.f32.mrb[0].mxu0
      %3167 = vmatprep.mubr.f32.mxu0 0.0
      %v3168 = vand.u32 %v2630, 4294901760
      %v3169 = vsub.f32 %v2630, %v3168
      %3170 = vmatmul.mubr.f32.gmra.mrb[0].mxu0 %v3169
      %v3171 = vpop.f32.mrb[0].mxu0
      %v3172 = vadd.f32 %v3000, %v3171
      %v3173 = vpop.f32.mrb[0].mxu0
      %3174 = vmatprep.mubr.f32.mxu0 0.0
      %v3175 = vand.u32 %v2633, 4294901760
      %v3176 = vsub.f32 %v2633, %v3175
      %3177 = vmatmul.mubr.f32.gmra.mrb[0].mxu0 %v3176
      %v3178 = vpop.f32.mrb[0].mxu0
      %v3179 = vadd.f32 %v3006, %v3178
      %v3180 = vpop.f32.mrb[0].mxu0
      %3181 = vmatprep.mubr.f32.mxu0 0.0
      %v3182 = vand.u32 %v2636, 4294901760
      %v3183 = vsub.f32 %v2636, %v3182
      %3184 = vmatmul.mubr.f32.gmra.mrb[0].mxu0 %v3183
      %v3185 = vpop.f32.mrb[0].mxu0
      %v3186 = vadd.f32 %v3012, %v3185
      %v3187 = vpop.f32.mrb[0].mxu0
      %3188 = vmatprep.mubr.f32.mxu0 0.0
      %v3189 = vand.u32 %v2639, 4294901760
      %v3190 = vsub.f32 %v2639, %v3189
      %3191 = vmatmul.mubr.f32.gmra.mrb[0].mxu0 %v3190
      %v3192 = vpop.f32.mrb[0].mxu0
      %v3193 = vadd.f32 %v3018, %v3192
      %v3194 = vpop.f32.mrb[0].mxu0
      %3195 = vmatprep.mubr.f32.mxu0 0.0
      %v3196 = vand.u32 %v2642, 4294901760
      %v3197 = vsub.f32 %v2642, %v3196
      %3198 = vmatmul.mubr.f32.gmra.mrb[0].mxu0 %v3197
      %v3199 = vpop.f32.mrb[0].mxu0
      %v3200 = vadd.f32 %v3024, %v3199
      %v3201 = vpop.f32.mrb[0].mxu0
      %3202 = vmatprep.mubr.f32.mxu0 0.0
      %v3203 = vand.u32 %v2645, 4294901760
      %v3204 = vsub.f32 %v2645, %v3203
      %3205 = vmatmul.mubr.f32.gmra.mrb[0].mxu0 %v3204
      %v3206 = vpop.f32.mrb[0].mxu0
      %v3207 = vadd.f32 %v3030, %v3206
      %v3208 = vpop.f32.mrb[0].mxu0
      %3209 = vmatprep.mubr.f32.mxu0 0.0
      %v3210 = vand.u32 %v2648, 4294901760
      %v3211 = vsub.f32 %v2648, %v3210
      %3212 = vmatmul.mubr.f32.gmra.mrb[0].mxu0 %v3211
      %v3213 = vpop.f32.mrb[0].mxu0
      %v3214 = vadd.f32 %v3036, %v3213
      %v3215 = vpop.f32.mrb[0].mxu0
      %3216 = vmatprep.mubr.f32.mxu0 0.0
      %v3217 = vand.u32 %v2651, 4294901760
      %v3218 = vsub.f32 %v2651, %v3217
      %3219 = vmatmul.mubr.f32.gmra.mrb[0].mxu0 %v3218
      %v3220 = vpop.f32.mrb[0].mxu0
      %v3221 = vadd.f32 %v3042, %v3220
      %v3222 = vpop.f32.mrb[0].mxu0
      %3223 = vmatprep.mubr.f32.mxu0 0.0
      %v3224 = vand.u32 %v2654, 4294901760
      %v3225 = vsub.f32 %v2654, %v3224
      %3226 = vmatmul.mubr.f32.gmra.mrb[0].mxu0 %v3225
      %v3227 = vpop.f32.mrb[0].mxu0
      %v3228 = vadd.f32 %v3048, %v3227
      %v3229 = vpop.f32.mrb[0].mxu0
      %3230 = vmatprep.mubr.f32.mxu0 0.0
      %v3231 = vand.u32 %v2657, 4294901760
      %v3232 = vsub.f32 %v2657, %v3231
      %3233 = vmatmul.mubr.f32.gmra.mrb[0].mxu0 %v3232
      %v3234 = vpop.f32.mrb[0].mxu0
      %v3235 = vadd.f32 %v3054, %v3234
      %v3236 = vpop.f32.mrb[0].mxu0
      %3237 = vdwg.mxu0
      %3238 = vmatprep.subr.mxu0 0.0
      %v3239 = vand.u32 %v2567, 4294901760
      %3240 = vmatpush1.msra.mxu0 %v3239
      %3241 = vmatprep.subr.mxu0 0.0
      %v3242 = vand.u32 %v2568, 4294901760
      %3243 = vmatpush1.msra.mxu0 %v3242
      %3244 = vmatprep.subr.mxu0 0.0
      %3245 = vmatpush1.msra.mxu0 0.0
      %3246 = vmatprep.subr.mxu0 0.0
      %3247 = vmatpush1.msra.mxu0 0.0
      %3248 = vmatprep.subr.mxu0 0.0
      %3249 = vmatpush1.msra.mxu0 0.0
      %3250 = vmatprep.subr.mxu0 0.0
      %3251 = vmatpush1.msra.mxu0 0.0
      %3252 = vmatprep.subr.mxu0 0.0
      %3253 = vmatpush1.msra.mxu0 0.0
      %3254 = vmatprep.subr.mxu0 0.0
      %3255 = vmatpush1.msra.mxu0 0.0
      %3256 = vmatprep.subr.mxu0 0.0
      %3257 = vmatpush1.msra.mxu0 0.0
      %3258 = vmatprep.subr.mxu0 0.0
      %3259 = vmatpush1.msra.mxu0 0.0
      %3260 = vmatprep.subr.mxu0 0.0
      %3261 = vmatpush1.msra.mxu0 0.0
      %3262 = vmatprep.subr.mxu0 0.0
      %3263 = vmatpush1.msra.mxu0 0.0
      %3264 = vmatprep.subr.mxu0 0.0
      %3265 = vmatpush1.msra.mxu0 0.0
      %3266 = vmatprep.subr.mxu0 0.0
      %3267 = vmatpush1.msra.mxu0 0.0
      %3268 = vmatprep.subr.mxu0 0.0
      %3269 = vmatpush1.msra.mxu0 0.0
      %3270 = vmatprep.subr.mxu0 0.0
      %3271 = vmatpush1.msra.mxu0 0.0
      %3272 = vmatprep.subr.mxu0 0.0
      %3273 = vmatpush1.msra.mxu0 0.0
      %3274 = vmatprep.subr.mxu0 0.0
      %3275 = vmatpush1.msra.mxu0 0.0
      %3276 = vmatprep.subr.mxu0 0.0
      %3277 = vmatpush1.msra.mxu0 0.0
      %3278 = vmatprep.subr.mxu0 0.0
      %3279 = vmatpush1.msra.mxu0 0.0
      %3280 = vmatprep.subr.mxu0 0.0
      %3281 = vmatpush1.msra.mxu0 0.0
      %3282 = vmatprep.subr.mxu0 0.0
      %3283 = vmatpush1.msra.mxu0 0.0
      %3284 = vmatprep.subr.mxu0 0.0
      %3285 = vmatpush1.msra.mxu0 0.0
      %3286 = vmatprep.subr.mxu0 0.0
      %3287 = vmatpush1.msra.mxu0 0.0
      %3288 = vmatprep.subr.mxu0 0.0
      %3289 = vmatpush1.msra.mxu0 0.0
      %3290 = vmatprep.subr.mxu0 0.0
      %3291 = vmatpush1.msra.mxu0 0.0
      %3292 = vmatprep.subr.mxu0 0.0
      %3293 = vmatpush1.msra.mxu0 0.0
      %3294 = vmatprep.subr.mxu0 0.0
      %3295 = vmatpush1.msra.mxu0 0.0
      %3296 = vmatprep.subr.mxu0 0.0
      %3297 = vmatpush1.msra.mxu0 0.0
      %3298 = vmatprep.subr.mxu0 0.0
      %3299 = vmatpush1.msra.mxu0 0.0
      %3300 = vmatprep.subr.mxu0 0.0
      %3301 = vmatpush1.msra.mxu0 0.0
      %3302 = vmatprep.subr.mxu0 0.0
      %3303 = vmatpush1.msra.mxu0 0.0
      %3304 = vmatprep.mubr.f32.mxu0 0.0
      %v3305 = vand.u32 %v2612, 4294901760
      %v3306 = vsub.f32 %v2612, %v3305
      %v3307 = vand.u32 %v3306, 4294901760
      %3308 = vmatmul.mubr.f32.gmra.mrb[0].mxu0 %v3307
      %v3309 = vpop.f32.mrb[0].mxu0
      %v3310 = vadd.f32 %v3130, %v3309
      %v3311 = vpop.f32.mrb[0].mxu0
      %3312 = vmatprep.mubr.f32.mxu0 0.0
      %v3313 = vand.u32 %v2615, 4294901760
      %v3314 = vsub.f32 %v2615, %v3313
      %v3315 = vand.u32 %v3314, 4294901760
      %3316 = vmatmul.mubr.f32.gmra.mrb[0].mxu0 %v3315
      %v3317 = vpop.f32.mrb[0].mxu0
      %v3318 = vadd.f32 %v3137, %v3317
      %v3319 = vpop.f32.mrb[0].mxu0
      %3320 = vmatprep.mubr.f32.mxu0 0.0
      %v3321 = vand.u32 %v2618, 4294901760
      %v3322 = vsub.f32 %v2618, %v3321
      %v3323 = vand.u32 %v3322, 4294901760
      %3324 = vmatmul.mubr.f32.gmra.mrb[0].mxu0 %v3323
      %v3325 = vpop.f32.mrb[0].mxu0
      %v3326 = vadd.f32 %v3144, %v3325
      %v3327 = vpop.f32.mrb[0].mxu0
      %3328 = vmatprep.mubr.f32.mxu0 0.0
      %v3329 = vand.u32 %v2621, 4294901760
      %v3330 = vsub.f32 %v2621, %v3329
      %v3331 = vand.u32 %v3330, 4294901760
      %3332 = vmatmul.mubr.f32.gmra.mrb[0].mxu0 %v3331
      %v3333 = vpop.f32.mrb[0].mxu0
      %v3334 = vadd.f32 %v3151, %v3333
      %v3335 = vpop.f32.mrb[0].mxu0
      %3336 = vmatprep.mubr.f32.mxu0 0.0
      %v3337 = vand.u32 %v2624, 4294901760
      %v3338 = vsub.f32 %v2624, %v3337
      %v3339 = vand.u32 %v3338, 4294901760
      %3340 = vmatmul.mubr.f32.gmra.mrb[0].mxu0 %v3339
      %v3341 = vpop.f32.mrb[0].mxu0
      %v3342 = vadd.f32 %v3158, %v3341
      %v3343 = vpop.f32.mrb[0].mxu0
      %3344 = vmatprep.mubr.f32.mxu0 0.0
      %v3345 = vand.u32 %v2627, 4294901760
      %v3346 = vsub.f32 %v2627, %v3345
      %v3347 = vand.u32 %v3346, 4294901760
      %3348 = vmatmul.mubr.f32.gmra.mrb[0].mxu0 %v3347
      %v3349 = vpop.f32.mrb[0].mxu0
      %v3350 = vadd.f32 %v3165, %v3349
      %v3351 = vpop.f32.mrb[0].mxu0
      %3352 = vmatprep.mubr.f32.mxu0 0.0
      %v3353 = vand.u32 %v2630, 4294901760
      %v3354 = vsub.f32 %v2630, %v3353
      %v3355 = vand.u32 %v3354, 4294901760
      %3356 = vmatmul.mubr.f32.gmra.mrb[0].mxu0 %v3355
      %v3357 = vpop.f32.mrb[0].mxu0
      %v3358 = vadd.f32 %v3172, %v3357
      %v3359 = vpop.f32.mrb[0].mxu0
      %3360 = vmatprep.mubr.f32.mxu0 0.0
      %v3361 = vand.u32 %v2633, 4294901760
      %v3362 = vsub.f32 %v2633, %v3361
      %v3363 = vand.u32 %v3362, 4294901760
      %3364 = vmatmul.mubr.f32.gmra.mrb[0].mxu0 %v3363
      %v3365 = vpop.f32.mrb[0].mxu0
      %v3366 = vadd.f32 %v3179, %v3365
      %v3367 = vpop.f32.mrb[0].mxu0
      %3368 = vmatprep.mubr.f32.mxu0 0.0
      %v3369 = vand.u32 %v2636, 4294901760
      %v3370 = vsub.f32 %v2636, %v3369
      %v3371 = vand.u32 %v3370, 4294901760
      %3372 = vmatmul.mubr.f32.gmra.mrb[0].mxu0 %v3371
      %v3373 = vpop.f32.mrb[0].mxu0
      %v3374 = vadd.f32 %v3186, %v3373
      %v3375 = vpop.f32.mrb[0].mxu0
      %3376 = vmatprep.mubr.f32.mxu0 0.0
      %v3377 = vand.u32 %v2639, 4294901760
      %v3378 = vsub.f32 %v2639, %v3377
      %v3379 = vand.u32 %v3378, 4294901760
      %3380 = vmatmul.mubr.f32.gmra.mrb[0].mxu0 %v3379
      %v3381 = vpop.f32.mrb[0].mxu0
      %v3382 = vadd.f32 %v3193, %v3381
      %v3383 = vpop.f32.mrb[0].mxu0
      %3384 = vmatprep.mubr.f32.mxu0 0.0
      %v3385 = vand.u32 %v2642, 4294901760
      %v3386 = vsub.f32 %v2642, %v3385
      %v3387 = vand.u32 %v3386, 4294901760
      %3388 = vmatmul.mubr.f32.gmra.mrb[0].mxu0 %v3387
      %v3389 = vpop.f32.mrb[0].mxu0
      %v3390 = vadd.f32 %v3200, %v3389
      %v3391 = vpop.f32.mrb[0].mxu0
      %3392 = vmatprep.mubr.f32.mxu0 0.0
      %v3393 = vand.u32 %v2645, 4294901760
      %v3394 = vsub.f32 %v2645, %v3393
      %v3395 = vand.u32 %v3394, 4294901760
      %3396 = vmatmul.mubr.f32.gmra.mrb[0].mxu0 %v3395
      %v3397 = vpop.f32.mrb[0].mxu0
      %v3398 = vadd.f32 %v3207, %v3397
      %v3399 = vpop.f32.mrb[0].mxu0
      %3400 = vmatprep.mubr.f32.mxu0 0.0
      %v3401 = vand.u32 %v2648, 4294901760
      %v3402 = vsub.f32 %v2648, %v3401
      %v3403 = vand.u32 %v3402, 4294901760
      %3404 = vmatmul.mubr.f32.gmra.mrb[0].mxu0 %v3403
      %v3405 = vpop.f32.mrb[0].mxu0
      %v3406 = vadd.f32 %v3214, %v3405
      %v3407 = vpop.f32.mrb[0].mxu0
      %3408 = vmatprep.mubr.f32.mxu0 0.0
      %v3409 = vand.u32 %v2651, 4294901760
      %v3410 = vsub.f32 %v2651, %v3409
      %v3411 = vand.u32 %v3410, 4294901760
      %3412 = vmatmul.mubr.f32.gmra.mrb[0].mxu0 %v3411
      %v3413 = vpop.f32.mrb[0].mxu0
      %v3414 = vadd.f32 %v3221, %v3413
      %v3415 = vpop.f32.mrb[0].mxu0
      %3416 = vmatprep.mubr.f32.mxu0 0.0
      %v3417 = vand.u32 %v2654, 4294901760
      %v3418 = vsub.f32 %v2654, %v3417
      %v3419 = vand.u32 %v3418, 4294901760
      %3420 = vmatmul.mubr.f32.gmra.mrb[0].mxu0 %v3419
      %v3421 = vpop.f32.mrb[0].mxu0
      %v3422 = vadd.f32 %v3228, %v3421
      %v3423 = vpop.f32.mrb[0].mxu0
      %3424 = vmatprep.mubr.f32.mxu0 0.0
      %v3425 = vand.u32 %v2657, 4294901760
      %v3426 = vsub.f32 %v2657, %v3425
      %v3427 = vand.u32 %v3426, 4294901760
      %3428 = vmatmul.mubr.f32.gmra.mrb[0].mxu0 %v3427
      %v3429 = vpop.f32.mrb[0].mxu0
      %v3430 = vadd.f32 %v3235, %v3429
      %v3431 = vpop.f32.mrb[0].mxu0
      %3432 = vdwg.mxu0
      %3433 = vmatprep.subr.mxu0 0.0
      %v3434 = vand.u32 %v2567, 4294901760
      %v3435 = vsub.f32 %v2567, %v3434
      %v3436 = vand.u32 %v3435, 4294901760
      %3437 = vmatpush1.msra.mxu0 %v3436
      %3438 = vmatprep.subr.mxu0 0.0
      %v3439 = vand.u32 %v2568, 4294901760
      %v3440 = vsub.f32 %v2568, %v3439
      %v3441 = vand.u32 %v3440, 4294901760
      %3442 = vmatpush1.msra.mxu0 %v3441
      %3443 = vmatprep.subr.mxu0 0.0
      %3444 = vmatpush1.msra.mxu0 0.0
      %3445 = vmatprep.subr.mxu0 0.0
      %3446 = vmatpush1.msra.mxu0 0.0
      %3447 = vmatprep.subr.mxu0 0.0
      %3448 = vmatpush1.msra.mxu0 0.0
      %3449 = vmatprep.subr.mxu0 0.0
      %3450 = vmatpush1.msra.mxu0 0.0
      %3451 = vmatprep.subr.mxu0 0.0
      %3452 = vmatpush1.msra.mxu0 0.0
      %3453 = vmatprep.subr.mxu0 0.0
      %3454 = vmatpush1.msra.mxu0 0.0
      %3455 = vmatprep.subr.mxu0 0.0
      %3456 = vmatpush1.msra.mxu0 0.0
      %3457 = vmatprep.subr.mxu0 0.0
      %3458 = vmatpush1.msra.mxu0 0.0
      %3459 = vmatprep.subr.mxu0 0.0
      %3460 = vmatpush1.msra.mxu0 0.0
      %3461 = vmatprep.subr.mxu0 0.0
      %3462 = vmatpush1.msra.mxu0 0.0
      %3463 = vmatprep.subr.mxu0 0.0
      %3464 = vmatpush1.msra.mxu0 0.0
      %3465 = vmatprep.subr.mxu0 0.0
      %3466 = vmatpush1.msra.mxu0 0.0
      %3467 = vmatprep.subr.mxu0 0.0
      %3468 = vmatpush1.msra.mxu0 0.0
      %3469 = vmatprep.subr.mxu0 0.0
      %3470 = vmatpush1.msra.mxu0 0.0
      %3471 = vmatprep.subr.mxu0 0.0
      %3472 = vmatpush1.msra.mxu0 0.0
      %3473 = vmatprep.subr.mxu0 0.0
      %3474 = vmatpush1.msra.mxu0 0.0
      %3475 = vmatprep.subr.mxu0 0.0
      %3476 = vmatpush1.msra.mxu0 0.0
      %3477 = vmatprep.subr.mxu0 0.0
      %3478 = vmatpush1.msra.mxu0 0.0
      %3479 = vmatprep.subr.mxu0 0.0
      %3480 = vmatpush1.msra.mxu0 0.0
      %3481 = vmatprep.subr.mxu0 0.0
      %3482 = vmatpush1.msra.mxu0 0.0
      %3483 = vmatprep.subr.mxu0 0.0
      %3484 = vmatpush1.msra.mxu0 0.0
      %3485 = vmatprep.subr.mxu0 0.0
      %3486 = vmatpush1.msra.mxu0 0.0
      %3487 = vmatprep.subr.mxu0 0.0
      %3488 = vmatpush1.msra.mxu0 0.0
      %3489 = vmatprep.subr.mxu0 0.0
      %3490 = vmatpush1.msra.mxu0 0.0
      %3491 = vmatprep.subr.mxu0 0.0
      %3492 = vmatpush1.msra.mxu0 0.0
      %3493 = vmatprep.subr.mxu0 0.0
      %3494 = vmatpush1.msra.mxu0 0.0
      %3495 = vmatprep.subr.mxu0 0.0
      %3496 = vmatpush1.msra.mxu0 0.0
      %3497 = vmatprep.subr.mxu0 0.0
      %3498 = vmatpush1.msra.mxu0 0.0
      %3499 = vmatprep.subr.mxu0 0.0
      %3500 = vmatpush1.msra.mxu0 0.0
      %3501 = vmatprep.subr.mxu0 0.0
      %3502 = vmatpush1.msra.mxu0 0.0
      %3503 = vmatprep.mubr.f32.mxu0 0.0
      %v3504 = vand.u32 %v2612, 4294901760
      %3505 = vmatmul.mubr.f32.gmra.mrb[0].mxu0 %v3504
      %v3506 = vpop.f32.mrb[0].mxu0
      %v3507 = vadd.f32 %v3310, %v3506
      %v3508 = vpop.f32.mrb[0].mxu0
      %3509 = vmatprep.mubr.f32.mxu0 0.0
      %v3510 = vand.u32 %v2615, 4294901760
      %3511 = vmatmul.mubr.f32.gmra.mrb[0].mxu0 %v3510
      %v3512 = vpop.f32.mrb[0].mxu0
      %v3513 = vadd.f32 %v3318, %v3512
      %v3514 = vpop.f32.mrb[0].mxu0
      %3515 = vmatprep.mubr.f32.mxu0 0.0
      %v3516 = vand.u32 %v2618, 4294901760
      %3517 = vmatmul.mubr.f32.gmra.mrb[0].mxu0 %v3516
      %v3518 = vpop.f32.mrb[0].mxu0
      %v3519 = vadd.f32 %v3326, %v3518
      %v3520 = vpop.f32.mrb[0].mxu0
      %3521 = vmatprep.mubr.f32.mxu0 0.0
      %v3522 = vand.u32 %v2621, 4294901760
      %3523 = vmatmul.mubr.f32.gmra.mrb[0].mxu0 %v3522
      %v3524 = vpop.f32.mrb[0].mxu0
      %v3525 = vadd.f32 %v3334, %v3524
      %v3526 = vpop.f32.mrb[0].mxu0
      %3527 = vmatprep.mubr.f32.mxu0 0.0
      %v3528 = vand.u32 %v2624, 4294901760
      %3529 = vmatmul.mubr.f32.gmra.mrb[0].mxu0 %v3528
      %v3530 = vpop.f32.mrb[0].mxu0
      %v3531 = vadd.f32 %v3342, %v3530
      %v3532 = vpop.f32.mrb[0].mxu0
      %3533 = vmatprep.mubr.f32.mxu0 0.0
      %v3534 = vand.u32 %v2627, 4294901760
      %3535 = vmatmul.mubr.f32.gmra.mrb[0].mxu0 %v3534
      %v3536 = vpop.f32.mrb[0].mxu0
      %v3537 = vadd.f32 %v3350, %v3536
      %v3538 = vpop.f32.mrb[0].mxu0
      %3539 = vmatprep.mubr.f32.mxu0 0.0
      %v3540 = vand.u32 %v2630, 4294901760
      %3541 = vmatmul.mubr.f32.gmra.mrb[0].mxu0 %v3540
      %v3542 = vpop.f32.mrb[0].mxu0
      %v3543 = vadd.f32 %v3358, %v3542
      %v3544 = vpop.f32.mrb[0].mxu0
      %3545 = vmatprep.mubr.f32.mxu0 0.0
      %v3546 = vand.u32 %v2633, 4294901760
      %3547 = vmatmul.mubr.f32.gmra.mrb[0].mxu0 %v3546
      %v3548 = vpop.f32.mrb[0].mxu0
      %v3549 = vadd.f32 %v3366, %v3548
      %v3550 = vpop.f32.mrb[0].mxu0
      %3551 = vmatprep.mubr.f32.mxu0 0.0
      %v3552 = vand.u32 %v2636, 4294901760
      %3553 = vmatmul.mubr.f32.gmra.mrb[0].mxu0 %v3552
      %v3554 = vpop.f32.mrb[0].mxu0
      %v3555 = vadd.f32 %v3374, %v3554
      %v3556 = vpop.f32.mrb[0].mxu0
      %3557 = vmatprep.mubr.f32.mxu0 0.0
      %v3558 = vand.u32 %v2639, 4294901760
      %3559 = vmatmul.mubr.f32.gmra.mrb[0].mxu0 %v3558
      %v3560 = vpop.f32.mrb[0].mxu0
      %v3561 = vadd.f32 %v3382, %v3560
      %v3562 = vpop.f32.mrb[0].mxu0
      %3563 = vmatprep.mubr.f32.mxu0 0.0
      %v3564 = vand.u32 %v2642, 4294901760
      %3565 = vmatmul.mubr.f32.gmra.mrb[0].mxu0 %v3564
      %v3566 = vpop.f32.mrb[0].mxu0
      %v3567 = vadd.f32 %v3390, %v3566
      %v3568 = vpop.f32.mrb[0].mxu0
      %3569 = vmatprep.mubr.f32.mxu0 0.0
      %v3570 = vand.u32 %v2645, 4294901760
      %3571 = vmatmul.mubr.f32.gmra.mrb[0].mxu0 %v3570
      %v3572 = vpop.f32.mrb[0].mxu0
      %v3573 = vadd.f32 %v3398, %v3572
      %v3574 = vpop.f32.mrb[0].mxu0
      %3575 = vmatprep.mubr.f32.mxu0 0.0
      %v3576 = vand.u32 %v2648, 4294901760
      %3577 = vmatmul.mubr.f32.gmra.mrb[0].mxu0 %v3576
      %v3578 = vpop.f32.mrb[0].mxu0
      %v3579 = vadd.f32 %v3406, %v3578
      %v3580 = vpop.f32.mrb[0].mxu0
      %3581 = vmatprep.mubr.f32.mxu0 0.0
      %v3582 = vand.u32 %v2651, 4294901760
      %3583 = vmatmul.mubr.f32.gmra.mrb[0].mxu0 %v3582
      %v3584 = vpop.f32.mrb[0].mxu0
      %v3585 = vadd.f32 %v3414, %v3584
      %v3586 = vpop.f32.mrb[0].mxu0
      %3587 = vmatprep.mubr.f32.mxu0 0.0
      %v3588 = vand.u32 %v2654, 4294901760
      %3589 = vmatmul.mubr.f32.gmra.mrb[0].mxu0 %v3588
      %v3590 = vpop.f32.mrb[0].mxu0
      %v3591 = vadd.f32 %v3422, %v3590
      %v3592 = vpop.f32.mrb[0].mxu0
      %3593 = vmatprep.mubr.f32.mxu0 0.0
      %v3594 = vand.u32 %v2657, 4294901760
      %3595 = vmatmul.mubr.f32.gmra.mrb[0].mxu0 %v3594
      %v3596 = vpop.f32.mrb[0].mxu0
      %v3597 = vadd.f32 %v3430, %v3596
      %v3598 = vpop.f32.mrb[0].mxu0
      %3599 = vdwg.mxu0
      %3600 = vmatprep.subr.mxu0 0.0
      %v3601 = vand.u32 %v2567, 4294901760
      %3602 = vmatpush1.msra.mxu0 %v3601
      %3603 = vmatprep.subr.mxu0 0.0
      %v3604 = vand.u32 %v2568, 4294901760
      %3605 = vmatpush1.msra.mxu0 %v3604
      %3606 = vmatprep.subr.mxu0 0.0
      %3607 = vmatpush1.msra.mxu0 0.0
      %3608 = vmatprep.subr.mxu0 0.0
      %3609 = vmatpush1.msra.mxu0 0.0
      %3610 = vmatprep.subr.mxu0 0.0
      %3611 = vmatpush1.msra.mxu0 0.0
      %3612 = vmatprep.subr.mxu0 0.0
      %3613 = vmatpush1.msra.mxu0 0.0
      %3614 = vmatprep.subr.mxu0 0.0
      %3615 = vmatpush1.msra.mxu0 0.0
      %3616 = vmatprep.subr.mxu0 0.0
      %3617 = vmatpush1.msra.mxu0 0.0
      %3618 = vmatprep.subr.mxu0 0.0
      %3619 = vmatpush1.msra.mxu0 0.0
      %3620 = vmatprep.subr.mxu0 0.0
      %3621 = vmatpush1.msra.mxu0 0.0
      %3622 = vmatprep.subr.mxu0 0.0
      %3623 = vmatpush1.msra.mxu0 0.0
      %3624 = vmatprep.subr.mxu0 0.0
      %3625 = vmatpush1.msra.mxu0 0.0
      %3626 = vmatprep.subr.mxu0 0.0
      %3627 = vmatpush1.msra.mxu0 0.0
      %3628 = vmatprep.subr.mxu0 0.0
      %3629 = vmatpush1.msra.mxu0 0.0
      %3630 = vmatprep.subr.mxu0 0.0
      %3631 = vmatpush1.msra.mxu0 0.0
      %3632 = vmatprep.subr.mxu0 0.0
      %3633 = vmatpush1.msra.mxu0 0.0
      %3634 = vmatprep.subr.mxu0 0.0
      %3635 = vmatpush1.msra.mxu0 0.0
      %3636 = vmatprep.subr.mxu0 0.0
      %3637 = vmatpush1.msra.mxu0 0.0
      %3638 = vmatprep.subr.mxu0 0.0
      %3639 = vmatpush1.msra.mxu0 0.0
      %3640 = vmatprep.subr.mxu0 0.0
      %3641 = vmatpush1.msra.mxu0 0.0
      %3642 = vmatprep.subr.mxu0 0.0
      %3643 = vmatpush1.msra.mxu0 0.0
      %3644 = vmatprep.subr.mxu0 0.0
      %3645 = vmatpush1.msra.mxu0 0.0
      %3646 = vmatprep.subr.mxu0 0.0
      %3647 = vmatpush1.msra.mxu0 0.0
      %3648 = vmatprep.subr.mxu0 0.0
      %3649 = vmatpush1.msra.mxu0 0.0
      %3650 = vmatprep.subr.mxu0 0.0
      %3651 = vmatpush1.msra.mxu0 0.0
      %3652 = vmatprep.subr.mxu0 0.0
      %3653 = vmatpush1.msra.mxu0 0.0
      %3654 = vmatprep.subr.mxu0 0.0
      %3655 = vmatpush1.msra.mxu0 0.0
      %3656 = vmatprep.subr.mxu0 0.0
      %3657 = vmatpush1.msra.mxu0 0.0
      %3658 = vmatprep.subr.mxu0 0.0
      %3659 = vmatpush1.msra.mxu0 0.0
      %3660 = vmatprep.subr.mxu0 0.0
      %3661 = vmatpush1.msra.mxu0 0.0
      %3662 = vmatprep.subr.mxu0 0.0
      %3663 = vmatpush1.msra.mxu0 0.0
      %3664 = vmatprep.subr.mxu0 0.0
      %3665 = vmatpush1.msra.mxu0 0.0
      %3666 = vmatprep.mubr.f32.mxu0 0.0
      %v3667 = vand.u32 %v2612, 4294901760
      %3668 = vmatmul.mubr.f32.gmra.mrb[0].mxu0 %v3667
      %v3669 = vpop.f32.mrb[0].mxu0
      %v3670 = vadd.f32 %v3507, %v3669
      %v3671 = vpop.f32.mrb[0].mxu0
      %3672 = vmatprep.mubr.f32.mxu0 0.0
      %v3673 = vand.u32 %v2615, 4294901760
      %3674 = vmatmul.mubr.f32.gmra.mrb[0].mxu0 %v3673
      %v3675 = vpop.f32.mrb[0].mxu0
      %v3676 = vadd.f32 %v3513, %v3675
      %v3677 = vpop.f32.mrb[0].mxu0
      %3678 = vmatprep.mubr.f32.mxu0 0.0
      %v3679 = vand.u32 %v2618, 4294901760
      %3680 = vmatmul.mubr.f32.gmra.mrb[0].mxu0 %v3679
      %v3681 = vpop.f32.mrb[0].mxu0
      %v3682 = vadd.f32 %v3519, %v3681
      %v3683 = vpop.f32.mrb[0].mxu0
      %3684 = vmatprep.mubr.f32.mxu0 0.0
      %v3685 = vand.u32 %v2621, 4294901760
      %3686 = vmatmul.mubr.f32.gmra.mrb[0].mxu0 %v3685
      %v3687 = vpop.f32.mrb[0].mxu0
      %v3688 = vadd.f32 %v3525, %v3687
      %v3689 = vpop.f32.mrb[0].mxu0
      %3690 = vmatprep.mubr.f32.mxu0 0.0
      %v3691 = vand.u32 %v2624, 4294901760
      %3692 = vmatmul.mubr.f32.gmra.mrb[0].mxu0 %v3691
      %v3693 = vpop.f32.mrb[0].mxu0
      %v3694 = vadd.f32 %v3531, %v3693
      %v3695 = vpop.f32.mrb[0].mxu0
      %3696 = vmatprep.mubr.f32.mxu0 0.0
      %v3697 = vand.u32 %v2627, 4294901760
      %3698 = vmatmul.mubr.f32.gmra.mrb[0].mxu0 %v3697
      %v3699 = vpop.f32.mrb[0].mxu0
      %v3700 = vadd.f32 %v3537, %v3699
      %v3701 = vpop.f32.mrb[0].mxu0
      %3702 = vmatprep.mubr.f32.mxu0 0.0
      %v3703 = vand.u32 %v2630, 4294901760
      %3704 = vmatmul.mubr.f32.gmra.mrb[0].mxu0 %v3703
      %v3705 = vpop.f32.mrb[0].mxu0
      %v3706 = vadd.f32 %v3543, %v3705
      %v3707 = vpop.f32.mrb[0].mxu0
      %3708 = vmatprep.mubr.f32.mxu0 0.0
      %v3709 = vand.u32 %v2633, 4294901760
      %3710 = vmatmul.mubr.f32.gmra.mrb[0].mxu0 %v3709
      %v3711 = vpop.f32.mrb[0].mxu0
      %v3712 = vadd.f32 %v3549, %v3711
      %v3713 = vpop.f32.mrb[0].mxu0
      %3714 = vmatprep.mubr.f32.mxu0 0.0
      %v3715 = vand.u32 %v2636, 4294901760
      %3716 = vmatmul.mubr.f32.gmra.mrb[0].mxu0 %v3715
      %v3717 = vpop.f32.mrb[0].mxu0
      %v3718 = vadd.f32 %v3555, %v3717
      %v3719 = vpop.f32.mrb[0].mxu0
      %3720 = vmatprep.mubr.f32.mxu0 0.0
      %v3721 = vand.u32 %v2639, 4294901760
      %3722 = vmatmul.mubr.f32.gmra.mrb[0].mxu0 %v3721
      %v3723 = vpop.f32.mrb[0].mxu0
      %v3724 = vadd.f32 %v3561, %v3723
      %v3725 = vpop.f32.mrb[0].mxu0
      %3726 = vmatprep.mubr.f32.mxu0 0.0
      %v3727 = vand.u32 %v2642, 4294901760
      %3728 = vmatmul.mubr.f32.gmra.mrb[0].mxu0 %v3727
      %v3729 = vpop.f32.mrb[0].mxu0
      %v3730 = vadd.f32 %v3567, %v3729
      %v3731 = vpop.f32.mrb[0].mxu0
      %3732 = vmatprep.mubr.f32.mxu0 0.0
      %v3733 = vand.u32 %v2645, 4294901760
      %3734 = vmatmul.mubr.f32.gmra.mrb[0].mxu0 %v3733
      %v3735 = vpop.f32.mrb[0].mxu0
      %v3736 = vadd.f32 %v3573, %v3735
      %v3737 = vpop.f32.mrb[0].mxu0
      %3738 = vmatprep.mubr.f32.mxu0 0.0
      %v3739 = vand.u32 %v2648, 4294901760
      %3740 = vmatmul.mubr.f32.gmra.mrb[0].mxu0 %v3739
      %v3741 = vpop.f32.mrb[0].mxu0
      %v3742 = vadd.f32 %v3579, %v3741
      %v3743 = vpop.f32.mrb[0].mxu0
      %3744 = vmatprep.mubr.f32.mxu0 0.0
      %v3745 = vand.u32 %v2651, 4294901760
      %3746 = vmatmul.mubr.f32.gmra.mrb[0].mxu0 %v3745
      %v3747 = vpop.f32.mrb[0].mxu0
      %v3748 = vadd.f32 %v3585, %v3747
      %v3749 = vpop.f32.mrb[0].mxu0
      %3750 = vmatprep.mubr.f32.mxu0 0.0
      %v3751 = vand.u32 %v2654, 4294901760
      %3752 = vmatmul.mubr.f32.gmra.mrb[0].mxu0 %v3751
      %v3753 = vpop.f32.mrb[0].mxu0
      %v3754 = vadd.f32 %v3591, %v3753
      %v3755 = vpop.f32.mrb[0].mxu0
      %3756 = vmatprep.mubr.f32.mxu0 0.0
      %v3757 = vand.u32 %v2657, 4294901760
      %3758 = vmatmul.mubr.f32.gmra.mrb[0].mxu0 %v3757
      %v3759 = vpop.f32.mrb[0].mxu0
      %v3760 = vadd.f32 %v3597, %v3759
      %v3761 = vpop.f32.mrb[0].mxu0
      %3762 = vdwg.mxu0
      %3763 = vst.msk [vmem:[%s501] sm:$0xff] %vm551, %v3670
      %3764 = vst.msk [vmem:[%s501 + $0x8] sm:$0xff] %vm551, %v3676
      %3765 = vst.msk [vmem:[%s501 + $0x10] sm:$0xff] %vm551, %v3682
      %3766 = vst.msk [vmem:[%s501 + $0x18] sm:$0xff] %vm551, %v3688
      %3767 = vst.msk [vmem:[%s501 + $0x20] sm:$0xff] %vm551, %v3694
      %3768 = vst.msk [vmem:[%s501 + $0x28] sm:$0xff] %vm551, %v3700
      %3769 = vst.msk [vmem:[%s501 + $0x30] sm:$0xff] %vm551, %v3706
      %3770 = vst.msk [vmem:[%s501 + $0x38] sm:$0xff] %vm551, %v3712
      %3771 = vst.msk [vmem:[%s501 + $0x40] sm:$0xff] %vm551, %v3718
      %3772 = vst.msk [vmem:[%s501 + $0x48] sm:$0xff] %vm551, %v3724
      %3773 = vst.msk [vmem:[%s501 + $0x50] sm:$0xff] %vm551, %v3730
      %3774 = vst.msk [vmem:[%s501 + $0x58] sm:$0xff] %vm551, %v3736
      %3775 = vst.msk [vmem:[%s501 + $0x60] sm:$0xff] %vm551, %v3742
      %3776 = vst.msk [vmem:[%s501 + $0x68] sm:$0xff] %vm551, %v3748
      %3777 = vst.msk [vmem:[%s501 + $0x70] sm:$0xff] %vm551, %v3754
      %3778 = vst.msk [vmem:[%s501 + $0x78] sm:$0xff] %vm551, %v3760
      %v3780 = vlaneseq
      %v3781 = vshrl.u32 %v3780, 7
      %v3782 = vsub.s32 0, %v3781
      %v3783 = vrot.slane %v2572, %v3782
      %3785 = vmatprep.subr.mxu0 0.0
      %v3786 = vand.u32 %v2569, 4294901760
      %3787 = vmatpush1.msra.mxu0 %v3786
      %3788 = vmatprep.subr.mxu0 0.0
      %v3789 = vand.u32 %v2570, 4294901760
      %3790 = vmatpush1.msra.mxu0 %v3789
      %3791 = vmatprep.subr.mxu0 0.0
      %3792 = vmatpush1.msra.mxu0 0.0
      %3793 = vmatprep.subr.mxu0 0.0
      %3794 = vmatpush1.msra.mxu0 0.0
      %3795 = vmatprep.subr.mxu0 0.0
      %3796 = vmatpush1.msra.mxu0 0.0
      %3797 = vmatprep.subr.mxu0 0.0
      %3798 = vmatpush1.msra.mxu0 0.0
      %3799 = vmatprep.subr.mxu0 0.0
      %3800 = vmatpush1.msra.mxu0 0.0
      %3801 = vmatprep.subr.mxu0 0.0
      %3802 = vmatpush1.msra.mxu0 0.0
      %3803 = vmatprep.subr.mxu0 0.0
      %3804 = vmatpush1.msra.mxu0 0.0
      %3805 = vmatprep.subr.mxu0 0.0
      %3806 = vmatpush1.msra.mxu0 0.0
      %3807 = vmatprep.subr.mxu0 0.0
      %3808 = vmatpush1.msra.mxu0 0.0
      %3809 = vmatprep.subr.mxu0 0.0
      %3810 = vmatpush1.msra.mxu0 0.0
      %3811 = vmatprep.subr.mxu0 0.0
      %3812 = vmatpush1.msra.mxu0 0.0
      %3813 = vmatprep.subr.mxu0 0.0
      %3814 = vmatpush1.msra.mxu0 0.0
      %3815 = vmatprep.subr.mxu0 0.0
      %3816 = vmatpush1.msra.mxu0 0.0
      %3817 = vmatprep.subr.mxu0 0.0
      %3818 = vmatpush1.msra.mxu0 0.0
      %3819 = vmatprep.subr.mxu0 0.0
      %3820 = vmatpush1.msra.mxu0 0.0
      %3821 = vmatprep.subr.mxu0 0.0
      %3822 = vmatpush1.msra.mxu0 0.0
      %3823 = vmatprep.subr.mxu0 0.0
      %3824 = vmatpush1.msra.mxu0 0.0
      %3825 = vmatprep.subr.mxu0 0.0
      %3826 = vmatpush1.msra.mxu0 0.0
      %3827 = vmatprep.subr.mxu0 0.0
      %3828 = vmatpush1.msra.mxu0 0.0
      %3829 = vmatprep.subr.mxu0 0.0
      %3830 = vmatpush1.msra.mxu0 0.0
      %3831 = vmatprep.subr.mxu0 0.0
      %3832 = vmatpush1.msra.mxu0 0.0
      %3833 = vmatprep.subr.mxu0 0.0
      %3834 = vmatpush1.msra.mxu0 0.0
      %3835 = vmatprep.subr.mxu0 0.0
      %3836 = vmatpush1.msra.mxu0 0.0
      %3837 = vmatprep.subr.mxu0 0.0
      %3838 = vmatpush1.msra.mxu0 0.0
      %3839 = vmatprep.subr.mxu0 0.0
      %3840 = vmatpush1.msra.mxu0 0.0
      %3841 = vmatprep.subr.mxu0 0.0
      %3842 = vmatpush1.msra.mxu0 0.0
      %3843 = vmatprep.subr.mxu0 0.0
      %3844 = vmatpush1.msra.mxu0 0.0
      %3845 = vmatprep.subr.mxu0 0.0
      %3846 = vmatpush1.msra.mxu0 0.0
      %3847 = vmatprep.subr.mxu0 0.0
      %3848 = vmatpush1.msra.mxu0 0.0
      %3849 = vmatprep.subr.mxu0 0.0
      %3850 = vmatpush1.msra.mxu0 0.0
      %3851 = vmatprep.mubr.f32.mxu0 0.0
      %v3852 = vand.u32 %v2612, 4294901760
      %v3853 = vsub.f32 %v2612, %v3852
      %v3854 = vand.u32 %v3853, 4294901760
      %v3855 = vsub.f32 %v3853, %v3854
      %v3856 = vand.u32 %v3855, 4294901760
      %3857 = vmatmul.mubr.f32.gmra.mrb[0].mxu0 %v3856
      %v3858 = vpop.f32.mrb[0].mxu0
      %v3859 = vadd.f32 %v3783, %v3858
      %v3860 = vpop.f32.mrb[0].mxu0
      %3861 = vmatprep.mubr.f32.mxu0 0.0
      %v3862 = vand.u32 %v2615, 4294901760
      %v3863 = vsub.f32 %v2615, %v3862
      %v3864 = vand.u32 %v3863, 4294901760
      %v3865 = vsub.f32 %v3863, %v3864
      %v3866 = vand.u32 %v3865, 4294901760
      %3867 = vmatmul.mubr.f32.gmra.mrb[0].mxu0 %v3866
      %v3868 = vpop.f32.mrb[0].mxu0
      %v3869 = vadd.f32 %v3783, %v3868
      %v3870 = vpop.f32.mrb[0].mxu0
      %3871 = vmatprep.mubr.f32.mxu0 0.0
      %v3872 = vand.u32 %v2618, 4294901760
      %v3873 = vsub.f32 %v2618, %v3872
      %v3874 = vand.u32 %v3873, 4294901760
      %v3875 = vsub.f32 %v3873, %v3874
      %v3876 = vand.u32 %v3875, 4294901760
      %3877 = vmatmul.mubr.f32.gmra.mrb[0].mxu0 %v3876
      %v3878 = vpop.f32.mrb[0].mxu0
      %v3879 = vadd.f32 %v3783, %v3878
      %v3880 = vpop.f32.mrb[0].mxu0
      %3881 = vmatprep.mubr.f32.mxu0 0.0
      %v3882 = vand.u32 %v2621, 4294901760
      %v3883 = vsub.f32 %v2621, %v3882
      %v3884 = vand.u32 %v3883, 4294901760
      %v3885 = vsub.f32 %v3883, %v3884
      %v3886 = vand.u32 %v3885, 4294901760
      %3887 = vmatmul.mubr.f32.gmra.mrb[0].mxu0 %v3886
      %v3888 = vpop.f32.mrb[0].mxu0
      %v3889 = vadd.f32 %v3783, %v3888
      %v3890 = vpop.f32.mrb[0].mxu0
      %3891 = vmatprep.mubr.f32.mxu0 0.0
      %v3892 = vand.u32 %v2624, 4294901760
      %v3893 = vsub.f32 %v2624, %v3892
      %v3894 = vand.u32 %v3893, 4294901760
      %v3895 = vsub.f32 %v3893, %v3894
      %v3896 = vand.u32 %v3895, 4294901760
      %3897 = vmatmul.mubr.f32.gmra.mrb[0].mxu0 %v3896
      %v3898 = vpop.f32.mrb[0].mxu0
      %v3899 = vadd.f32 %v3783, %v3898
      %v3900 = vpop.f32.mrb[0].mxu0
      %3901 = vmatprep.mubr.f32.mxu0 0.0
      %v3902 = vand.u32 %v2627, 4294901760
      %v3903 = vsub.f32 %v2627, %v3902
      %v3904 = vand.u32 %v3903, 4294901760
      %v3905 = vsub.f32 %v3903, %v3904
      %v3906 = vand.u32 %v3905, 4294901760
      %3907 = vmatmul.mubr.f32.gmra.mrb[0].mxu0 %v3906
      %v3908 = vpop.f32.mrb[0].mxu0
      %v3909 = vadd.f32 %v3783, %v3908
      %v3910 = vpop.f32.mrb[0].mxu0
      %3911 = vmatprep.mubr.f32.mxu0 0.0
      %v3912 = vand.u32 %v2630, 4294901760
      %v3913 = vsub.f32 %v2630, %v3912
      %v3914 = vand.u32 %v3913, 4294901760
      %v3915 = vsub.f32 %v3913, %v3914
      %v3916 = vand.u32 %v3915, 4294901760
      %3917 = vmatmul.mubr.f32.gmra.mrb[0].mxu0 %v3916
      %v3918 = vpop.f32.mrb[0].mxu0
      %v3919 = vadd.f32 %v3783, %v3918
      %v3920 = vpop.f32.mrb[0].mxu0
      %3921 = vmatprep.mubr.f32.mxu0 0.0
      %v3922 = vand.u32 %v2633, 4294901760
      %v3923 = vsub.f32 %v2633, %v3922
      %v3924 = vand.u32 %v3923, 4294901760
      %v3925 = vsub.f32 %v3923, %v3924
      %v3926 = vand.u32 %v3925, 4294901760
      %3927 = vmatmul.mubr.f32.gmra.mrb[0].mxu0 %v3926
      %v3928 = vpop.f32.mrb[0].mxu0
      %v3929 = vadd.f32 %v3783, %v3928
      %v3930 = vpop.f32.mrb[0].mxu0
      %3931 = vmatprep.mubr.f32.mxu0 0.0
      %v3932 = vand.u32 %v2636, 4294901760
      %v3933 = vsub.f32 %v2636, %v3932
      %v3934 = vand.u32 %v3933, 4294901760
      %v3935 = vsub.f32 %v3933, %v3934
      %v3936 = vand.u32 %v3935, 4294901760
      %3937 = vmatmul.mubr.f32.gmra.mrb[0].mxu0 %v3936
      %v3938 = vpop.f32.mrb[0].mxu0
      %v3939 = vadd.f32 %v3783, %v3938
      %v3940 = vpop.f32.mrb[0].mxu0
      %3941 = vmatprep.mubr.f32.mxu0 0.0
      %v3942 = vand.u32 %v2639, 4294901760
      %v3943 = vsub.f32 %v2639, %v3942
      %v3944 = vand.u32 %v3943, 4294901760
      %v3945 = vsub.f32 %v3943, %v3944
      %v3946 = vand.u32 %v3945, 4294901760
      %3947 = vmatmul.mubr.f32.gmra.mrb[0].mxu0 %v3946
      %v3948 = vpop.f32.mrb[0].mxu0
      %v3949 = vadd.f32 %v3783, %v3948
      %v3950 = vpop.f32.mrb[0].mxu0
      %3951 = vmatprep.mubr.f32.mxu0 0.0
      %v3952 = vand.u32 %v2642, 4294901760
      %v3953 = vsub.f32 %v2642, %v3952
      %v3954 = vand.u32 %v3953, 4294901760
      %v3955 = vsub.f32 %v3953, %v3954
      %v3956 = vand.u32 %v3955, 4294901760
      %3957 = vmatmul.mubr.f32.gmra.mrb[0].mxu0 %v3956
      %v3958 = vpop.f32.mrb[0].mxu0
      %v3959 = vadd.f32 %v3783, %v3958
      %v3960 = vpop.f32.mrb[0].mxu0
      %3961 = vmatprep.mubr.f32.mxu0 0.0
      %v3962 = vand.u32 %v2645, 4294901760
      %v3963 = vsub.f32 %v2645, %v3962
      %v3964 = vand.u32 %v3963, 4294901760
      %v3965 = vsub.f32 %v3963, %v3964
      %v3966 = vand.u32 %v3965, 4294901760
      %3967 = vmatmul.mubr.f32.gmra.mrb[0].mxu0 %v3966
      %v3968 = vpop.f32.mrb[0].mxu0
      %v3969 = vadd.f32 %v3783, %v3968
      %v3970 = vpop.f32.mrb[0].mxu0
      %3971 = vmatprep.mubr.f32.mxu0 0.0
      %v3972 = vand.u32 %v2648, 4294901760
      %v3973 = vsub.f32 %v2648, %v3972
      %v3974 = vand.u32 %v3973, 4294901760
      %v3975 = vsub.f32 %v3973, %v3974
      %v3976 = vand.u32 %v3975, 4294901760
      %3977 = vmatmul.mubr.f32.gmra.mrb[0].mxu0 %v3976
      %v3978 = vpop.f32.mrb[0].mxu0
      %v3979 = vadd.f32 %v3783, %v3978
      %v3980 = vpop.f32.mrb[0].mxu0
      %3981 = vmatprep.mubr.f32.mxu0 0.0
      %v3982 = vand.u32 %v2651, 4294901760
      %v3983 = vsub.f32 %v2651, %v3982
      %v3984 = vand.u32 %v3983, 4294901760
      %v3985 = vsub.f32 %v3983, %v3984
      %v3986 = vand.u32 %v3985, 4294901760
      %3987 = vmatmul.mubr.f32.gmra.mrb[0].mxu0 %v3986
      %v3988 = vpop.f32.mrb[0].mxu0
      %v3989 = vadd.f32 %v3783, %v3988
      %v3990 = vpop.f32.mrb[0].mxu0
      %3991 = vmatprep.mubr.f32.mxu0 0.0
      %v3992 = vand.u32 %v2654, 4294901760
      %v3993 = vsub.f32 %v2654, %v3992
      %v3994 = vand.u32 %v3993, 4294901760
      %v3995 = vsub.f32 %v3993, %v3994
      %v3996 = vand.u32 %v3995, 4294901760
      %3997 = vmatmul.mubr.f32.gmra.mrb[0].mxu0 %v3996
      %v3998 = vpop.f32.mrb[0].mxu0
      %v3999 = vadd.f32 %v3783, %v3998
      %v4000 = vpop.f32.mrb[0].mxu0
      %4001 = vmatprep.mubr.f32.mxu0 0.0
      %v4002 = vand.u32 %v2657, 4294901760
      %v4003 = vsub.f32 %v2657, %v4002
      %v4004 = vand.u32 %v4003, 4294901760
      %v4005 = vsub.f32 %v4003, %v4004
      %v4006 = vand.u32 %v4005, 4294901760
      %4007 = vmatmul.mubr.f32.gmra.mrb[0].mxu0 %v4006
      %v4008 = vpop.f32.mrb[0].mxu0
      %v4009 = vadd.f32 %v3783, %v4008
      %v4010 = vpop.f32.mrb[0].mxu0
      %4011 = vdwg.mxu0
      %4012 = vmatprep.subr.mxu0 0.0
      %v4013 = vand.u32 %v2569, 4294901760
      %v4014 = vsub.f32 %v2569, %v4013
      %v4015 = vand.u32 %v4014, 4294901760
      %v4016 = vsub.f32 %v4014, %v4015
      %v4017 = vand.u32 %v4016, 4294901760
      %4018 = vmatpush1.msra.mxu0 %v4017
      %4019 = vmatprep.subr.mxu0 0.0
      %v4020 = vand.u32 %v2570, 4294901760
      %v4021 = vsub.f32 %v2570, %v4020
      %v4022 = vand.u32 %v4021, 4294901760
      %v4023 = vsub.f32 %v4021, %v4022
      %v4024 = vand.u32 %v4023, 4294901760
      %4025 = vmatpush1.msra.mxu0 %v4024
      %4026 = vmatprep.subr.mxu0 0.0
      %4027 = vmatpush1.msra.mxu0 0.0
      %4028 = vmatprep.subr.mxu0 0.0
      %4029 = vmatpush1.msra.mxu0 0.0
      %4030 = vmatprep.subr.mxu0 0.0
      %4031 = vmatpush1.msra.mxu0 0.0
      %4032 = vmatprep.subr.mxu0 0.0
      %4033 = vmatpush1.msra.mxu0 0.0
      %4034 = vmatprep.subr.mxu0 0.0
      %4035 = vmatpush1.msra.mxu0 0.0
      %4036 = vmatprep.subr.mxu0 0.0
      %4037 = vmatpush1.msra.mxu0 0.0
      %4038 = vmatprep.subr.mxu0 0.0
      %4039 = vmatpush1.msra.mxu0 0.0
      %4040 = vmatprep.subr.mxu0 0.0
      %4041 = vmatpush1.msra.mxu0 0.0
      %4042 = vmatprep.subr.mxu0 0.0
      %4043 = vmatpush1.msra.mxu0 0.0
      %4044 = vmatprep.subr.mxu0 0.0
      %4045 = vmatpush1.msra.mxu0 0.0
      %4046 = vmatprep.subr.mxu0 0.0
      %4047 = vmatpush1.msra.mxu0 0.0
      %4048 = vmatprep.subr.mxu0 0.0
      %4049 = vmatpush1.msra.mxu0 0.0
      %4050 = vmatprep.subr.mxu0 0.0
      %4051 = vmatpush1.msra.mxu0 0.0
      %4052 = vmatprep.subr.mxu0 0.0
      %4053 = vmatpush1.msra.mxu0 0.0
      %4054 = vmatprep.subr.mxu0 0.0
      %4055 = vmatpush1.msra.mxu0 0.0
      %4056 = vmatprep.subr.mxu0 0.0
      %4057 = vmatpush1.msra.mxu0 0.0
      %4058 = vmatprep.subr.mxu0 0.0
      %4059 = vmatpush1.msra.mxu0 0.0
      %4060 = vmatprep.subr.mxu0 0.0
      %4061 = vmatpush1.msra.mxu0 0.0
      %4062 = vmatprep.subr.mxu0 0.0
      %4063 = vmatpush1.msra.mxu0 0.0
      %4064 = vmatprep.subr.mxu0 0.0
      %4065 = vmatpush1.msra.mxu0 0.0
      %4066 = vmatprep.subr.mxu0 0.0
      %4067 = vmatpush1.msra.mxu0 0.0
      %4068 = vmatprep.subr.mxu0 0.0
      %4069 = vmatpush1.msra.mxu0 0.0
      %4070 = vmatprep.subr.mxu0 0.0
      %4071 = vmatpush1.msra.mxu0 0.0
      %4072 = vmatprep.subr.mxu0 0.0
      %4073 = vmatpush1.msra.mxu0 0.0
      %4074 = vmatprep.subr.mxu0 0.0
      %4075 = vmatpush1.msra.mxu0 0.0
      %4076 = vmatprep.subr.mxu0 0.0
      %4077 = vmatpush1.msra.mxu0 0.0
      %4078 = vmatprep.subr.mxu0 0.0
      %4079 = vmatpush1.msra.mxu0 0.0
      %4080 = vmatprep.subr.mxu0 0.0
      %4081 = vmatpush1.msra.mxu0 0.0
      %4082 = vmatprep.subr.mxu0 0.0
      %4083 = vmatpush1.msra.mxu0 0.0
      %4084 = vmatprep.subr.mxu0 0.0
      %4085 = vmatpush1.msra.mxu0 0.0
      %4086 = vmatprep.mubr.f32.mxu0 0.0
      %v4087 = vand.u32 %v2612, 4294901760
      %4088 = vmatmul.mubr.f32.gmra.mrb[0].mxu0 %v4087
      %v4089 = vpop.f32.mrb[0].mxu0
      %v4090 = vadd.f32 %v3859, %v4089
      %v4091 = vpop.f32.mrb[0].mxu0
      %4092 = vmatprep.mubr.f32.mxu0 0.0
      %v4093 = vand.u32 %v2615, 4294901760
      %4094 = vmatmul.mubr.f32.gmra.mrb[0].mxu0 %v4093
      %v4095 = vpop.f32.mrb[0].mxu0
      %v4096 = vadd.f32 %v3869, %v4095
      %v4097 = vpop.f32.mrb[0].mxu0
      %4098 = vmatprep.mubr.f32.mxu0 0.0
      %v4099 = vand.u32 %v2618, 4294901760
      %4100 = vmatmul.mubr.f32.gmra.mrb[0].mxu0 %v4099
      %v4101 = vpop.f32.mrb[0].mxu0
      %v4102 = vadd.f32 %v3879, %v4101
      %v4103 = vpop.f32.mrb[0].mxu0
      %4104 = vmatprep.mubr.f32.mxu0 0.0
      %v4105 = vand.u32 %v2621, 4294901760
      %4106 = vmatmul.mubr.f32.gmra.mrb[0].mxu0 %v4105
      %v4107 = vpop.f32.mrb[0].mxu0
      %v4108 = vadd.f32 %v3889, %v4107
      %v4109 = vpop.f32.mrb[0].mxu0
      %4110 = vmatprep.mubr.f32.mxu0 0.0
      %v4111 = vand.u32 %v2624, 4294901760
      %4112 = vmatmul.mubr.f32.gmra.mrb[0].mxu0 %v4111
      %v4113 = vpop.f32.mrb[0].mxu0
      %v4114 = vadd.f32 %v3899, %v4113
      %v4115 = vpop.f32.mrb[0].mxu0
      %4116 = vmatprep.mubr.f32.mxu0 0.0
      %v4117 = vand.u32 %v2627, 4294901760
      %4118 = vmatmul.mubr.f32.gmra.mrb[0].mxu0 %v4117
      %v4119 = vpop.f32.mrb[0].mxu0
      %v4120 = vadd.f32 %v3909, %v4119
      %v4121 = vpop.f32.mrb[0].mxu0
      %4122 = vmatprep.mubr.f32.mxu0 0.0
      %v4123 = vand.u32 %v2630, 4294901760
      %4124 = vmatmul.mubr.f32.gmra.mrb[0].mxu0 %v4123
      %v4125 = vpop.f32.mrb[0].mxu0
      %v4126 = vadd.f32 %v3919, %v4125
      %v4127 = vpop.f32.mrb[0].mxu0
      %4128 = vmatprep.mubr.f32.mxu0 0.0
      %v4129 = vand.u32 %v2633, 4294901760
      %4130 = vmatmul.mubr.f32.gmra.mrb[0].mxu0 %v4129
      %v4131 = vpop.f32.mrb[0].mxu0
      %v4132 = vadd.f32 %v3929, %v4131
      %v4133 = vpop.f32.mrb[0].mxu0
      %4134 = vmatprep.mubr.f32.mxu0 0.0
      %v4135 = vand.u32 %v2636, 4294901760
      %4136 = vmatmul.mubr.f32.gmra.mrb[0].mxu0 %v4135
      %v4137 = vpop.f32.mrb[0].mxu0
      %v4138 = vadd.f32 %v3939, %v4137
      %v4139 = vpop.f32.mrb[0].mxu0
      %4140 = vmatprep.mubr.f32.mxu0 0.0
      %v4141 = vand.u32 %v2639, 4294901760
      %4142 = vmatmul.mubr.f32.gmra.mrb[0].mxu0 %v4141
      %v4143 = vpop.f32.mrb[0].mxu0
      %v4144 = vadd.f32 %v3949, %v4143
      %v4145 = vpop.f32.mrb[0].mxu0
      %4146 = vmatprep.mubr.f32.mxu0 0.0
      %v4147 = vand.u32 %v2642, 4294901760
      %4148 = vmatmul.mubr.f32.gmra.mrb[0].mxu0 %v4147
      %v4149 = vpop.f32.mrb[0].mxu0
      %v4150 = vadd.f32 %v3959, %v4149
      %v4151 = vpop.f32.mrb[0].mxu0
      %4152 = vmatprep.mubr.f32.mxu0 0.0
      %v4153 = vand.u32 %v2645, 4294901760
      %4154 = vmatmul.mubr.f32.gmra.mrb[0].mxu0 %v4153
      %v4155 = vpop.f32.mrb[0].mxu0
      %v4156 = vadd.f32 %v3969, %v4155
      %v4157 = vpop.f32.mrb[0].mxu0
      %4158 = vmatprep.mubr.f32.mxu0 0.0
      %v4159 = vand.u32 %v2648, 4294901760
      %4160 = vmatmul.mubr.f32.gmra.mrb[0].mxu0 %v4159
      %v4161 = vpop.f32.mrb[0].mxu0
      %v4162 = vadd.f32 %v3979, %v4161
      %v4163 = vpop.f32.mrb[0].mxu0
      %4164 = vmatprep.mubr.f32.mxu0 0.0
      %v4165 = vand.u32 %v2651, 4294901760
      %4166 = vmatmul.mubr.f32.gmra.mrb[0].mxu0 %v4165
      %v4167 = vpop.f32.mrb[0].mxu0
      %v4168 = vadd.f32 %v3989, %v4167
      %v4169 = vpop.f32.mrb[0].mxu0
      %4170 = vmatprep.mubr.f32.mxu0 0.0
      %v4171 = vand.u32 %v2654, 4294901760
      %4172 = vmatmul.mubr.f32.gmra.mrb[0].mxu0 %v4171
      %v4173 = vpop.f32.mrb[0].mxu0
      %v4174 = vadd.f32 %v3999, %v4173
      %v4175 = vpop.f32.mrb[0].mxu0
      %4176 = vmatprep.mubr.f32.mxu0 0.0
      %v4177 = vand.u32 %v2657, 4294901760
      %4178 = vmatmul.mubr.f32.gmra.mrb[0].mxu0 %v4177
      %v4179 = vpop.f32.mrb[0].mxu0
      %v4180 = vadd.f32 %v4009, %v4179
      %v4181 = vpop.f32.mrb[0].mxu0
      %4182 = vdwg.mxu0
      %4183 = vmatprep.subr.mxu0 0.0
      %v4184 = vand.u32 %v2569, 4294901760
      %v4185 = vsub.f32 %v2569, %v4184
      %4186 = vmatpush1.msra.mxu0 %v4185
      %4187 = vmatprep.subr.mxu0 0.0
      %v4188 = vand.u32 %v2570, 4294901760
      %v4189 = vsub.f32 %v2570, %v4188
      %4190 = vmatpush1.msra.mxu0 %v4189
      %4191 = vmatprep.subr.mxu0 0.0
      %4192 = vmatpush1.msra.mxu0 0.0
      %4193 = vmatprep.subr.mxu0 0.0
      %4194 = vmatpush1.msra.mxu0 0.0
      %4195 = vmatprep.subr.mxu0 0.0
      %4196 = vmatpush1.msra.mxu0 0.0
      %4197 = vmatprep.subr.mxu0 0.0
      %4198 = vmatpush1.msra.mxu0 0.0
      %4199 = vmatprep.subr.mxu0 0.0
      %4200 = vmatpush1.msra.mxu0 0.0
      %4201 = vmatprep.subr.mxu0 0.0
      %4202 = vmatpush1.msra.mxu0 0.0
      %4203 = vmatprep.subr.mxu0 0.0
      %4204 = vmatpush1.msra.mxu0 0.0
      %4205 = vmatprep.subr.mxu0 0.0
      %4206 = vmatpush1.msra.mxu0 0.0
      %4207 = vmatprep.subr.mxu0 0.0
      %4208 = vmatpush1.msra.mxu0 0.0
      %4209 = vmatprep.subr.mxu0 0.0
      %4210 = vmatpush1.msra.mxu0 0.0
      %4211 = vmatprep.subr.mxu0 0.0
      %4212 = vmatpush1.msra.mxu0 0.0
      %4213 = vmatprep.subr.mxu0 0.0
      %4214 = vmatpush1.msra.mxu0 0.0
      %4215 = vmatprep.subr.mxu0 0.0
      %4216 = vmatpush1.msra.mxu0 0.0
      %4217 = vmatprep.subr.mxu0 0.0
      %4218 = vmatpush1.msra.mxu0 0.0
      %4219 = vmatprep.subr.mxu0 0.0
      %4220 = vmatpush1.msra.mxu0 0.0
      %4221 = vmatprep.subr.mxu0 0.0
      %4222 = vmatpush1.msra.mxu0 0.0
      %4223 = vmatprep.subr.mxu0 0.0
      %4224 = vmatpush1.msra.mxu0 0.0
      %4225 = vmatprep.subr.mxu0 0.0
      %4226 = vmatpush1.msra.mxu0 0.0
      %4227 = vmatprep.subr.mxu0 0.0
      %4228 = vmatpush1.msra.mxu0 0.0
      %4229 = vmatprep.subr.mxu0 0.0
      %4230 = vmatpush1.msra.mxu0 0.0
      %4231 = vmatprep.subr.mxu0 0.0
      %4232 = vmatpush1.msra.mxu0 0.0
      %4233 = vmatprep.subr.mxu0 0.0
      %4234 = vmatpush1.msra.mxu0 0.0
      %4235 = vmatprep.subr.mxu0 0.0
      %4236 = vmatpush1.msra.mxu0 0.0
      %4237 = vmatprep.subr.mxu0 0.0
      %4238 = vmatpush1.msra.mxu0 0.0
      %4239 = vmatprep.subr.mxu0 0.0
      %4240 = vmatpush1.msra.mxu0 0.0
      %4241 = vmatprep.subr.mxu0 0.0
      %4242 = vmatpush1.msra.mxu0 0.0
      %4243 = vmatprep.subr.mxu0 0.0
      %4244 = vmatpush1.msra.mxu0 0.0
      %4245 = vmatprep.subr.mxu0 0.0
      %4246 = vmatpush1.msra.mxu0 0.0
      %4247 = vmatprep.subr.mxu0 0.0
      %4248 = vmatpush1.msra.mxu0 0.0
      %4249 = vmatprep.subr.mxu0 0.0
      %4250 = vmatpush1.msra.mxu0 0.0
      %4251 = vmatprep.mubr.f32.mxu0 0.0
      %v4252 = vand.u32 %v2612, 4294901760
      %v4253 = vsub.f32 %v2612, %v4252
      %4254 = vmatmul.mubr.f32.gmra.mrb[0].mxu0 %v4253
      %v4255 = vpop.f32.mrb[0].mxu0
      %v4256 = vadd.f32 %v4090, %v4255
      %v4257 = vpop.f32.mrb[0].mxu0
      %4258 = vmatprep.mubr.f32.mxu0 0.0
      %v4259 = vand.u32 %v2615, 4294901760
      %v4260 = vsub.f32 %v2615, %v4259
      %4261 = vmatmul.mubr.f32.gmra.mrb[0].mxu0 %v4260
      %v4262 = vpop.f32.mrb[0].mxu0
      %v4263 = vadd.f32 %v4096, %v4262
      %v4264 = vpop.f32.mrb[0].mxu0
      %4265 = vmatprep.mubr.f32.mxu0 0.0
      %v4266 = vand.u32 %v2618, 4294901760
      %v4267 = vsub.f32 %v2618, %v4266
      %4268 = vmatmul.mubr.f32.gmra.mrb[0].mxu0 %v4267
      %v4269 = vpop.f32.mrb[0].mxu0
      %v4270 = vadd.f32 %v4102, %v4269
      %v4271 = vpop.f32.mrb[0].mxu0
      %4272 = vmatprep.mubr.f32.mxu0 0.0
      %v4273 = vand.u32 %v2621, 4294901760
      %v4274 = vsub.f32 %v2621, %v4273
      %4275 = vmatmul.mubr.f32.gmra.mrb[0].mxu0 %v4274
      %v4276 = vpop.f32.mrb[0].mxu0
      %v4277 = vadd.f32 %v4108, %v4276
      %v4278 = vpop.f32.mrb[0].mxu0
      %4279 = vmatprep.mubr.f32.mxu0 0.0
      %v4280 = vand.u32 %v2624, 4294901760
      %v4281 = vsub.f32 %v2624, %v4280
      %4282 = vmatmul.mubr.f32.gmra.mrb[0].mxu0 %v4281
      %v4283 = vpop.f32.mrb[0].mxu0
      %v4284 = vadd.f32 %v4114, %v4283
      %v4285 = vpop.f32.mrb[0].mxu0
      %4286 = vmatprep.mubr.f32.mxu0 0.0
      %v4287 = vand.u32 %v2627, 4294901760
      %v4288 = vsub.f32 %v2627, %v4287
      %4289 = vmatmul.mubr.f32.gmra.mrb[0].mxu0 %v4288
      %v4290 = vpop.f32.mrb[0].mxu0
      %v4291 = vadd.f32 %v4120, %v4290
      %v4292 = vpop.f32.mrb[0].mxu0
      %4293 = vmatprep.mubr.f32.mxu0 0.0
      %v4294 = vand.u32 %v2630, 4294901760
      %v4295 = vsub.f32 %v2630, %v4294
      %4296 = vmatmul.mubr.f32.gmra.mrb[0].mxu0 %v4295
      %v4297 = vpop.f32.mrb[0].mxu0
      %v4298 = vadd.f32 %v4126, %v4297
      %v4299 = vpop.f32.mrb[0].mxu0
      %4300 = vmatprep.mubr.f32.mxu0 0.0
      %v4301 = vand.u32 %v2633, 4294901760
      %v4302 = vsub.f32 %v2633, %v4301
      %4303 = vmatmul.mubr.f32.gmra.mrb[0].mxu0 %v4302
      %v4304 = vpop.f32.mrb[0].mxu0
      %v4305 = vadd.f32 %v4132, %v4304
      %v4306 = vpop.f32.mrb[0].mxu0
      %4307 = vmatprep.mubr.f32.mxu0 0.0
      %v4308 = vand.u32 %v2636, 4294901760
      %v4309 = vsub.f32 %v2636, %v4308
      %4310 = vmatmul.mubr.f32.gmra.mrb[0].mxu0 %v4309
      %v4311 = vpop.f32.mrb[0].mxu0
      %v4312 = vadd.f32 %v4138, %v4311
      %v4313 = vpop.f32.mrb[0].mxu0
      %4314 = vmatprep.mubr.f32.mxu0 0.0
      %v4315 = vand.u32 %v2639, 4294901760
      %v4316 = vsub.f32 %v2639, %v4315
      %4317 = vmatmul.mubr.f32.gmra.mrb[0].mxu0 %v4316
      %v4318 = vpop.f32.mrb[0].mxu0
      %v4319 = vadd.f32 %v4144, %v4318
      %v4320 = vpop.f32.mrb[0].mxu0
      %4321 = vmatprep.mubr.f32.mxu0 0.0
      %v4322 = vand.u32 %v2642, 4294901760
      %v4323 = vsub.f32 %v2642, %v4322
      %4324 = vmatmul.mubr.f32.gmra.mrb[0].mxu0 %v4323
      %v4325 = vpop.f32.mrb[0].mxu0
      %v4326 = vadd.f32 %v4150, %v4325
      %v4327 = vpop.f32.mrb[0].mxu0
      %4328 = vmatprep.mubr.f32.mxu0 0.0
      %v4329 = vand.u32 %v2645, 4294901760
      %v4330 = vsub.f32 %v2645, %v4329
      %4331 = vmatmul.mubr.f32.gmra.mrb[0].mxu0 %v4330
      %v4332 = vpop.f32.mrb[0].mxu0
      %v4333 = vadd.f32 %v4156, %v4332
      %v4334 = vpop.f32.mrb[0].mxu0
      %4335 = vmatprep.mubr.f32.mxu0 0.0
      %v4336 = vand.u32 %v2648, 4294901760
      %v4337 = vsub.f32 %v2648, %v4336
      %4338 = vmatmul.mubr.f32.gmra.mrb[0].mxu0 %v4337
      %v4339 = vpop.f32.mrb[0].mxu0
      %v4340 = vadd.f32 %v4162, %v4339
      %v4341 = vpop.f32.mrb[0].mxu0
      %4342 = vmatprep.mubr.f32.mxu0 0.0
      %v4343 = vand.u32 %v2651, 4294901760
      %v4344 = vsub.f32 %v2651, %v4343
      %4345 = vmatmul.mubr.f32.gmra.mrb[0].mxu0 %v4344
      %v4346 = vpop.f32.mrb[0].mxu0
      %v4347 = vadd.f32 %v4168, %v4346
      %v4348 = vpop.f32.mrb[0].mxu0
      %4349 = vmatprep.mubr.f32.mxu0 0.0
      %v4350 = vand.u32 %v2654, 4294901760
      %v4351 = vsub.f32 %v2654, %v4350
      %4352 = vmatmul.mubr.f32.gmra.mrb[0].mxu0 %v4351
      %v4353 = vpop.f32.mrb[0].mxu0
      %v4354 = vadd.f32 %v4174, %v4353
      %v4355 = vpop.f32.mrb[0].mxu0
      %4356 = vmatprep.mubr.f32.mxu0 0.0
      %v4357 = vand.u32 %v2657, 4294901760
      %v4358 = vsub.f32 %v2657, %v4357
      %4359 = vmatmul.mubr.f32.gmra.mrb[0].mxu0 %v4358
      %v4360 = vpop.f32.mrb[0].mxu0
      %v4361 = vadd.f32 %v4180, %v4360
      %v4362 = vpop.f32.mrb[0].mxu0
      %4363 = vdwg.mxu0
      %4364 = vmatprep.subr.mxu0 0.0
      %v4365 = vand.u32 %v2569, 4294901760
      %4366 = vmatpush1.msra.mxu0 %v4365
      %4367 = vmatprep.subr.mxu0 0.0
      %v4368 = vand.u32 %v2570, 4294901760
      %4369 = vmatpush1.msra.mxu0 %v4368
      %4370 = vmatprep.subr.mxu0 0.0
      %4371 = vmatpush1.msra.mxu0 0.0
      %4372 = vmatprep.subr.mxu0 0.0
      %4373 = vmatpush1.msra.mxu0 0.0
      %4374 = vmatprep.subr.mxu0 0.0
      %4375 = vmatpush1.msra.mxu0 0.0
      %4376 = vmatprep.subr.mxu0 0.0
      %4377 = vmatpush1.msra.mxu0 0.0
      %4378 = vmatprep.subr.mxu0 0.0
      %4379 = vmatpush1.msra.mxu0 0.0
      %4380 = vmatprep.subr.mxu0 0.0
      %4381 = vmatpush1.msra.mxu0 0.0
      %4382 = vmatprep.subr.mxu0 0.0
      %4383 = vmatpush1.msra.mxu0 0.0
      %4384 = vmatprep.subr.mxu0 0.0
      %4385 = vmatpush1.msra.mxu0 0.0
      %4386 = vmatprep.subr.mxu0 0.0
      %4387 = vmatpush1.msra.mxu0 0.0
      %4388 = vmatprep.subr.mxu0 0.0
      %4389 = vmatpush1.msra.mxu0 0.0
      %4390 = vmatprep.subr.mxu0 0.0
      %4391 = vmatpush1.msra.mxu0 0.0
      %4392 = vmatprep.subr.mxu0 0.0
      %4393 = vmatpush1.msra.mxu0 0.0
      %4394 = vmatprep.subr.mxu0 0.0
      %4395 = vmatpush1.msra.mxu0 0.0
      %4396 = vmatprep.subr.mxu0 0.0
      %4397 = vmatpush1.msra.mxu0 0.0
      %4398 = vmatprep.subr.mxu0 0.0
      %4399 = vmatpush1.msra.mxu0 0.0
      %4400 = vmatprep.subr.mxu0 0.0
      %4401 = vmatpush1.msra.mxu0 0.0
      %4402 = vmatprep.subr.mxu0 0.0
      %4403 = vmatpush1.msra.mxu0 0.0
      %4404 = vmatprep.subr.mxu0 0.0
      %4405 = vmatpush1.msra.mxu0 0.0
      %4406 = vmatprep.subr.mxu0 0.0
      %4407 = vmatpush1.msra.mxu0 0.0
      %4408 = vmatprep.subr.mxu0 0.0
      %4409 = vmatpush1.msra.mxu0 0.0
      %4410 = vmatprep.subr.mxu0 0.0
      %4411 = vmatpush1.msra.mxu0 0.0
      %4412 = vmatprep.subr.mxu0 0.0
      %4413 = vmatpush1.msra.mxu0 0.0
      %4414 = vmatprep.subr.mxu0 0.0
      %4415 = vmatpush1.msra.mxu0 0.0
      %4416 = vmatprep.subr.mxu0 0.0
      %4417 = vmatpush1.msra.mxu0 0.0
      %4418 = vmatprep.subr.mxu0 0.0
      %4419 = vmatpush1.msra.mxu0 0.0
      %4420 = vmatprep.subr.mxu0 0.0
      %4421 = vmatpush1.msra.mxu0 0.0
      %4422 = vmatprep.subr.mxu0 0.0
      %4423 = vmatpush1.msra.mxu0 0.0
      %4424 = vmatprep.subr.mxu0 0.0
      %4425 = vmatpush1.msra.mxu0 0.0
      %4426 = vmatprep.subr.mxu0 0.0
      %4427 = vmatpush1.msra.mxu0 0.0
      %4428 = vmatprep.subr.mxu0 0.0
      %4429 = vmatpush1.msra.mxu0 0.0
      %4430 = vmatprep.mubr.f32.mxu0 0.0
      %v4431 = vand.u32 %v2612, 4294901760
      %v4432 = vsub.f32 %v2612, %v4431
      %v4433 = vand.u32 %v4432, 4294901760
      %4434 = vmatmul.mubr.f32.gmra.mrb[0].mxu0 %v4433
      %v4435 = vpop.f32.mrb[0].mxu0
      %v4436 = vadd.f32 %v4256, %v4435
      %v4437 = vpop.f32.mrb[0].mxu0
      %4438 = vmatprep.mubr.f32.mxu0 0.0
      %v4439 = vand.u32 %v2615, 4294901760
      %v4440 = vsub.f32 %v2615, %v4439
      %v4441 = vand.u32 %v4440, 4294901760
      %4442 = vmatmul.mubr.f32.gmra.mrb[0].mxu0 %v4441
      %v4443 = vpop.f32.mrb[0].mxu0
      %v4444 = vadd.f32 %v4263, %v4443
      %v4445 = vpop.f32.mrb[0].mxu0
      %4446 = vmatprep.mubr.f32.mxu0 0.0
      %v4447 = vand.u32 %v2618, 4294901760
      %v4448 = vsub.f32 %v2618, %v4447
      %v4449 = vand.u32 %v4448, 4294901760
      %4450 = vmatmul.mubr.f32.gmra.mrb[0].mxu0 %v4449
      %v4451 = vpop.f32.mrb[0].mxu0
      %v4452 = vadd.f32 %v4270, %v4451
      %v4453 = vpop.f32.mrb[0].mxu0
      %4454 = vmatprep.mubr.f32.mxu0 0.0
      %v4455 = vand.u32 %v2621, 4294901760
      %v4456 = vsub.f32 %v2621, %v4455
      %v4457 = vand.u32 %v4456, 4294901760
      %4458 = vmatmul.mubr.f32.gmra.mrb[0].mxu0 %v4457
      %v4459 = vpop.f32.mrb[0].mxu0
      %v4460 = vadd.f32 %v4277, %v4459
      %v4461 = vpop.f32.mrb[0].mxu0
      %4462 = vmatprep.mubr.f32.mxu0 0.0
      %v4463 = vand.u32 %v2624, 4294901760
      %v4464 = vsub.f32 %v2624, %v4463
      %v4465 = vand.u32 %v4464, 4294901760
      %4466 = vmatmul.mubr.f32.gmra.mrb[0].mxu0 %v4465
      %v4467 = vpop.f32.mrb[0].mxu0
      %v4468 = vadd.f32 %v4284, %v4467
      %v4469 = vpop.f32.mrb[0].mxu0
      %4470 = vmatprep.mubr.f32.mxu0 0.0
      %v4471 = vand.u32 %v2627, 4294901760
      %v4472 = vsub.f32 %v2627, %v4471
      %v4473 = vand.u32 %v4472, 4294901760
      %4474 = vmatmul.mubr.f32.gmra.mrb[0].mxu0 %v4473
      %v4475 = vpop.f32.mrb[0].mxu0
      %v4476 = vadd.f32 %v4291, %v4475
      %v4477 = vpop.f32.mrb[0].mxu0
      %4478 = vmatprep.mubr.f32.mxu0 0.0
      %v4479 = vand.u32 %v2630, 4294901760
      %v4480 = vsub.f32 %v2630, %v4479
      %v4481 = vand.u32 %v4480, 4294901760
      %4482 = vmatmul.mubr.f32.gmra.mrb[0].mxu0 %v4481
      %v4483 = vpop.f32.mrb[0].mxu0
      %v4484 = vadd.f32 %v4298, %v4483
      %v4485 = vpop.f32.mrb[0].mxu0
      %4486 = vmatprep.mubr.f32.mxu0 0.0
      %v4487 = vand.u32 %v2633, 4294901760
      %v4488 = vsub.f32 %v2633, %v4487
      %v4489 = vand.u32 %v4488, 4294901760
      %4490 = vmatmul.mubr.f32.gmra.mrb[0].mxu0 %v4489
      %v4491 = vpop.f32.mrb[0].mxu0
      %v4492 = vadd.f32 %v4305, %v4491
      %v4493 = vpop.f32.mrb[0].mxu0
      %4494 = vmatprep.mubr.f32.mxu0 0.0
      %v4495 = vand.u32 %v2636, 4294901760
      %v4496 = vsub.f32 %v2636, %v4495
      %v4497 = vand.u32 %v4496, 4294901760
      %4498 = vmatmul.mubr.f32.gmra.mrb[0].mxu0 %v4497
      %v4499 = vpop.f32.mrb[0].mxu0
      %v4500 = vadd.f32 %v4312, %v4499
      %v4501 = vpop.f32.mrb[0].mxu0
      %4502 = vmatprep.mubr.f32.mxu0 0.0
      %v4503 = vand.u32 %v2639, 4294901760
      %v4504 = vsub.f32 %v2639, %v4503
      %v4505 = vand.u32 %v4504, 4294901760
      %4506 = vmatmul.mubr.f32.gmra.mrb[0].mxu0 %v4505
      %v4507 = vpop.f32.mrb[0].mxu0
      %v4508 = vadd.f32 %v4319, %v4507
      %v4509 = vpop.f32.mrb[0].mxu0
      %4510 = vmatprep.mubr.f32.mxu0 0.0
      %v4511 = vand.u32 %v2642, 4294901760
      %v4512 = vsub.f32 %v2642, %v4511
      %v4513 = vand.u32 %v4512, 4294901760
      %4514 = vmatmul.mubr.f32.gmra.mrb[0].mxu0 %v4513
      %v4515 = vpop.f32.mrb[0].mxu0
      %v4516 = vadd.f32 %v4326, %v4515
      %v4517 = vpop.f32.mrb[0].mxu0
      %4518 = vmatprep.mubr.f32.mxu0 0.0
      %v4519 = vand.u32 %v2645, 4294901760
      %v4520 = vsub.f32 %v2645, %v4519
      %v4521 = vand.u32 %v4520, 4294901760
      %4522 = vmatmul.mubr.f32.gmra.mrb[0].mxu0 %v4521
      %v4523 = vpop.f32.mrb[0].mxu0
      %v4524 = vadd.f32 %v4333, %v4523
      %v4525 = vpop.f32.mrb[0].mxu0
      %4526 = vmatprep.mubr.f32.mxu0 0.0
      %v4527 = vand.u32 %v2648, 4294901760
      %v4528 = vsub.f32 %v2648, %v4527
      %v4529 = vand.u32 %v4528, 4294901760
      %4530 = vmatmul.mubr.f32.gmra.mrb[0].mxu0 %v4529
      %v4531 = vpop.f32.mrb[0].mxu0
      %v4532 = vadd.f32 %v4340, %v4531
      %v4533 = vpop.f32.mrb[0].mxu0
      %4534 = vmatprep.mubr.f32.mxu0 0.0
      %v4535 = vand.u32 %v2651, 4294901760
      %v4536 = vsub.f32 %v2651, %v4535
      %v4537 = vand.u32 %v4536, 4294901760
      %4538 = vmatmul.mubr.f32.gmra.mrb[0].mxu0 %v4537
      %v4539 = vpop.f32.mrb[0].mxu0
      %v4540 = vadd.f32 %v4347, %v4539
      %v4541 = vpop.f32.mrb[0].mxu0
      %4542 = vmatprep.mubr.f32.mxu0 0.0
      %v4543 = vand.u32 %v2654, 4294901760
      %v4544 = vsub.f32 %v2654, %v4543
      %v4545 = vand.u32 %v4544, 4294901760
      %4546 = vmatmul.mubr.f32.gmra.mrb[0].mxu0 %v4545
      %v4547 = vpop.f32.mrb[0].mxu0
      %v4548 = vadd.f32 %v4354, %v4547
      %v4549 = vpop.f32.mrb[0].mxu0
      %4550 = vmatprep.mubr.f32.mxu0 0.0
      %v4551 = vand.u32 %v2657, 4294901760
      %v4552 = vsub.f32 %v2657, %v4551
      %v4553 = vand.u32 %v4552, 4294901760
      %4554 = vmatmul.mubr.f32.gmra.mrb[0].mxu0 %v4553
      %v4555 = vpop.f32.mrb[0].mxu0
      %v4556 = vadd.f32 %v4361, %v4555
      %v4557 = vpop.f32.mrb[0].mxu0
      %4558 = vdwg.mxu0
      %4559 = vmatprep.subr.mxu0 0.0
      %v4560 = vand.u32 %v2569, 4294901760
      %v4561 = vsub.f32 %v2569, %v4560
      %v4562 = vand.u32 %v4561, 4294901760
      %4563 = vmatpush1.msra.mxu0 %v4562
      %4564 = vmatprep.subr.mxu0 0.0
      %v4565 = vand.u32 %v2570, 4294901760
      %v4566 = vsub.f32 %v2570, %v4565
      %v4567 = vand.u32 %v4566, 4294901760
      %4568 = vmatpush1.msra.mxu0 %v4567
      %4569 = vmatprep.subr.mxu0 0.0
      %4570 = vmatpush1.msra.mxu0 0.0
      %4571 = vmatprep.subr.mxu0 0.0
      %4572 = vmatpush1.msra.mxu0 0.0
      %4573 = vmatprep.subr.mxu0 0.0
      %4574 = vmatpush1.msra.mxu0 0.0
      %4575 = vmatprep.subr.mxu0 0.0
      %4576 = vmatpush1.msra.mxu0 0.0
      %4577 = vmatprep.subr.mxu0 0.0
      %4578 = vmatpush1.msra.mxu0 0.0
      %4579 = vmatprep.subr.mxu0 0.0
      %4580 = vmatpush1.msra.mxu0 0.0
      %4581 = vmatprep.subr.mxu0 0.0
      %4582 = vmatpush1.msra.mxu0 0.0
      %4583 = vmatprep.subr.mxu0 0.0
      %4584 = vmatpush1.msra.mxu0 0.0
      %4585 = vmatprep.subr.mxu0 0.0
      %4586 = vmatpush1.msra.mxu0 0.0
      %4587 = vmatprep.subr.mxu0 0.0
      %4588 = vmatpush1.msra.mxu0 0.0
      %4589 = vmatprep.subr.mxu0 0.0
      %4590 = vmatpush1.msra.mxu0 0.0
      %4591 = vmatprep.subr.mxu0 0.0
      %4592 = vmatpush1.msra.mxu0 0.0
      %4593 = vmatprep.subr.mxu0 0.0
      %4594 = vmatpush1.msra.mxu0 0.0
      %4595 = vmatprep.subr.mxu0 0.0
      %4596 = vmatpush1.msra.mxu0 0.0
      %4597 = vmatprep.subr.mxu0 0.0
      %4598 = vmatpush1.msra.mxu0 0.0
      %4599 = vmatprep.subr.mxu0 0.0
      %4600 = vmatpush1.msra.mxu0 0.0
      %4601 = vmatprep.subr.mxu0 0.0
      %4602 = vmatpush1.msra.mxu0 0.0
      %4603 = vmatprep.subr.mxu0 0.0
      %4604 = vmatpush1.msra.mxu0 0.0
      %4605 = vmatprep.subr.mxu0 0.0
      %4606 = vmatpush1.msra.mxu0 0.0
      %4607 = vmatprep.subr.mxu0 0.0
      %4608 = vmatpush1.msra.mxu0 0.0
      %4609 = vmatprep.subr.mxu0 0.0
      %4610 = vmatpush1.msra.mxu0 0.0
      %4611 = vmatprep.subr.mxu0 0.0
      %4612 = vmatpush1.msra.mxu0 0.0
      %4613 = vmatprep.subr.mxu0 0.0
      %4614 = vmatpush1.msra.mxu0 0.0
      %4615 = vmatprep.subr.mxu0 0.0
      %4616 = vmatpush1.msra.mxu0 0.0
      %4617 = vmatprep.subr.mxu0 0.0
      %4618 = vmatpush1.msra.mxu0 0.0
      %4619 = vmatprep.subr.mxu0 0.0
      %4620 = vmatpush1.msra.mxu0 0.0
      %4621 = vmatprep.subr.mxu0 0.0
      %4622 = vmatpush1.msra.mxu0 0.0
      %4623 = vmatprep.subr.mxu0 0.0
      %4624 = vmatpush1.msra.mxu0 0.0
      %4625 = vmatprep.subr.mxu0 0.0
      %4626 = vmatpush1.msra.mxu0 0.0
      %4627 = vmatprep.subr.mxu0 0.0
      %4628 = vmatpush1.msra.mxu0 0.0
      %4629 = vmatprep.mubr.f32.mxu0 0.0
      %v4630 = vand.u32 %v2612, 4294901760
      %4631 = vmatmul.mubr.f32.gmra.mrb[0].mxu0 %v4630
      %v4632 = vpop.f32.mrb[0].mxu0
      %v4633 = vadd.f32 %v4436, %v4632
      %v4634 = vpop.f32.mrb[0].mxu0
      %4635 = vmatprep.mubr.f32.mxu0 0.0
      %v4636 = vand.u32 %v2615, 4294901760
      %4637 = vmatmul.mubr.f32.gmra.mrb[0].mxu0 %v4636
      %v4638 = vpop.f32.mrb[0].mxu0
      %v4639 = vadd.f32 %v4444, %v4638
      %v4640 = vpop.f32.mrb[0].mxu0
      %4641 = vmatprep.mubr.f32.mxu0 0.0
      %v4642 = vand.u32 %v2618, 4294901760
      %4643 = vmatmul.mubr.f32.gmra.mrb[0].mxu0 %v4642
      %v4644 = vpop.f32.mrb[0].mxu0
      %v4645 = vadd.f32 %v4452, %v4644
      %v4646 = vpop.f32.mrb[0].mxu0
      %4647 = vmatprep.mubr.f32.mxu0 0.0
      %v4648 = vand.u32 %v2621, 4294901760
      %4649 = vmatmul.mubr.f32.gmra.mrb[0].mxu0 %v4648
      %v4650 = vpop.f32.mrb[0].mxu0
      %v4651 = vadd.f32 %v4460, %v4650
      %v4652 = vpop.f32.mrb[0].mxu0
      %4653 = vmatprep.mubr.f32.mxu0 0.0
      %v4654 = vand.u32 %v2624, 4294901760
      %4655 = vmatmul.mubr.f32.gmra.mrb[0].mxu0 %v4654
      %v4656 = vpop.f32.mrb[0].mxu0
      %v4657 = vadd.f32 %v4468, %v4656
      %v4658 = vpop.f32.mrb[0].mxu0
      %4659 = vmatprep.mubr.f32.mxu0 0.0
      %v4660 = vand.u32 %v2627, 4294901760
      %4661 = vmatmul.mubr.f32.gmra.mrb[0].mxu0 %v4660
      %v4662 = vpop.f32.mrb[0].mxu0
      %v4663 = vadd.f32 %v4476, %v4662
      %v4664 = vpop.f32.mrb[0].mxu0
      %4665 = vmatprep.mubr.f32.mxu0 0.0
      %v4666 = vand.u32 %v2630, 4294901760
      %4667 = vmatmul.mubr.f32.gmra.mrb[0].mxu0 %v4666
      %v4668 = vpop.f32.mrb[0].mxu0
      %v4669 = vadd.f32 %v4484, %v4668
      %v4670 = vpop.f32.mrb[0].mxu0
      %4671 = vmatprep.mubr.f32.mxu0 0.0
      %v4672 = vand.u32 %v2633, 4294901760
      %4673 = vmatmul.mubr.f32.gmra.mrb[0].mxu0 %v4672
      %v4674 = vpop.f32.mrb[0].mxu0
      %v4675 = vadd.f32 %v4492, %v4674
      %v4676 = vpop.f32.mrb[0].mxu0
      %4677 = vmatprep.mubr.f32.mxu0 0.0
      %v4678 = vand.u32 %v2636, 4294901760
      %4679 = vmatmul.mubr.f32.gmra.mrb[0].mxu0 %v4678
      %v4680 = vpop.f32.mrb[0].mxu0
      %v4681 = vadd.f32 %v4500, %v4680
      %v4682 = vpop.f32.mrb[0].mxu0
      %4683 = vmatprep.mubr.f32.mxu0 0.0
      %v4684 = vand.u32 %v2639, 4294901760
      %4685 = vmatmul.mubr.f32.gmra.mrb[0].mxu0 %v4684
      %v4686 = vpop.f32.mrb[0].mxu0
      %v4687 = vadd.f32 %v4508, %v4686
      %v4688 = vpop.f32.mrb[0].mxu0
      %4689 = vmatprep.mubr.f32.mxu0 0.0
      %v4690 = vand.u32 %v2642, 4294901760
      %4691 = vmatmul.mubr.f32.gmra.mrb[0].mxu0 %v4690
      %v4692 = vpop.f32.mrb[0].mxu0
      %v4693 = vadd.f32 %v4516, %v4692
      %v4694 = vpop.f32.mrb[0].mxu0
      %4695 = vmatprep.mubr.f32.mxu0 0.0
      %v4696 = vand.u32 %v2645, 4294901760
      %4697 = vmatmul.mubr.f32.gmra.mrb[0].mxu0 %v4696
      %v4698 = vpop.f32.mrb[0].mxu0
      %v4699 = vadd.f32 %v4524, %v4698
      %v4700 = vpop.f32.mrb[0].mxu0
      %4701 = vmatprep.mubr.f32.mxu0 0.0
      %v4702 = vand.u32 %v2648, 4294901760
      %4703 = vmatmul.mubr.f32.gmra.mrb[0].mxu0 %v4702
      %v4704 = vpop.f32.mrb[0].mxu0
      %v4705 = vadd.f32 %v4532, %v4704
      %v4706 = vpop.f32.mrb[0].mxu0
      %4707 = vmatprep.mubr.f32.mxu0 0.0
      %v4708 = vand.u32 %v2651, 4294901760
      %4709 = vmatmul.mubr.f32.gmra.mrb[0].mxu0 %v4708
      %v4710 = vpop.f32.mrb[0].mxu0
      %v4711 = vadd.f32 %v4540, %v4710
      %v4712 = vpop.f32.mrb[0].mxu0
      %4713 = vmatprep.mubr.f32.mxu0 0.0
      %v4714 = vand.u32 %v2654, 4294901760
      %4715 = vmatmul.mubr.f32.gmra.mrb[0].mxu0 %v4714
      %v4716 = vpop.f32.mrb[0].mxu0
      %v4717 = vadd.f32 %v4548, %v4716
      %v4718 = vpop.f32.mrb[0].mxu0
      %4719 = vmatprep.mubr.f32.mxu0 0.0
      %v4720 = vand.u32 %v2657, 4294901760
      %4721 = vmatmul.mubr.f32.gmra.mrb[0].mxu0 %v4720
      %v4722 = vpop.f32.mrb[0].mxu0
      %v4723 = vadd.f32 %v4556, %v4722
      %v4724 = vpop.f32.mrb[0].mxu0
      %4725 = vdwg.mxu0
      %4726 = vmatprep.subr.mxu0 0.0
      %v4727 = vand.u32 %v2569, 4294901760
      %4728 = vmatpush1.msra.mxu0 %v4727
      %4729 = vmatprep.subr.mxu0 0.0
      %v4730 = vand.u32 %v2570, 4294901760
      %4731 = vmatpush1.msra.mxu0 %v4730
      %4732 = vmatprep.subr.mxu0 0.0
      %4733 = vmatpush1.msra.mxu0 0.0
      %4734 = vmatprep.subr.mxu0 0.0
      %4735 = vmatpush1.msra.mxu0 0.0
      %4736 = vmatprep.subr.mxu0 0.0
      %4737 = vmatpush1.msra.mxu0 0.0
      %4738 = vmatprep.subr.mxu0 0.0
      %4739 = vmatpush1.msra.mxu0 0.0
      %4740 = vmatprep.subr.mxu0 0.0
      %4741 = vmatpush1.msra.mxu0 0.0
      %4742 = vmatprep.subr.mxu0 0.0
      %4743 = vmatpush1.msra.mxu0 0.0
      %4744 = vmatprep.subr.mxu0 0.0
      %4745 = vmatpush1.msra.mxu0 0.0
      %4746 = vmatprep.subr.mxu0 0.0
      %4747 = vmatpush1.msra.mxu0 0.0
      %4748 = vmatprep.subr.mxu0 0.0
      %4749 = vmatpush1.msra.mxu0 0.0
      %4750 = vmatprep.subr.mxu0 0.0
      %4751 = vmatpush1.msra.mxu0 0.0
      %4752 = vmatprep.subr.mxu0 0.0
      %4753 = vmatpush1.msra.mxu0 0.0
      %4754 = vmatprep.subr.mxu0 0.0
      %4755 = vmatpush1.msra.mxu0 0.0
      %4756 = vmatprep.subr.mxu0 0.0
      %4757 = vmatpush1.msra.mxu0 0.0
      %4758 = vmatprep.subr.mxu0 0.0
      %4759 = vmatpush1.msra.mxu0 0.0
      %4760 = vmatprep.subr.mxu0 0.0
      %4761 = vmatpush1.msra.mxu0 0.0
      %4762 = vmatprep.subr.mxu0 0.0
      %4763 = vmatpush1.msra.mxu0 0.0
      %4764 = vmatprep.subr.mxu0 0.0
      %4765 = vmatpush1.msra.mxu0 0.0
      %4766 = vmatprep.subr.mxu0 0.0
      %4767 = vmatpush1.msra.mxu0 0.0
      %4768 = vmatprep.subr.mxu0 0.0
      %4769 = vmatpush1.msra.mxu0 0.0
      %4770 = vmatprep.subr.mxu0 0.0
      %4771 = vmatpush1.msra.mxu0 0.0
      %4772 = vmatprep.subr.mxu0 0.0
      %4773 = vmatpush1.msra.mxu0 0.0
      %4774 = vmatprep.subr.mxu0 0.0
      %4775 = vmatpush1.msra.mxu0 0.0
      %4776 = vmatprep.subr.mxu0 0.0
      %4777 = vmatpush1.msra.mxu0 0.0
      %4778 = vmatprep.subr.mxu0 0.0
      %4779 = vmatpush1.msra.mxu0 0.0
      %4780 = vmatprep.subr.mxu0 0.0
      %4781 = vmatpush1.msra.mxu0 0.0
      %4782 = vmatprep.subr.mxu0 0.0
      %4783 = vmatpush1.msra.mxu0 0.0
      %4784 = vmatprep.subr.mxu0 0.0
      %4785 = vmatpush1.msra.mxu0 0.0
      %4786 = vmatprep.subr.mxu0 0.0
      %4787 = vmatpush1.msra.mxu0 0.0
      %4788 = vmatprep.subr.mxu0 0.0
      %4789 = vmatpush1.msra.mxu0 0.0
      %4790 = vmatprep.subr.mxu0 0.0
      %4791 = vmatpush1.msra.mxu0 0.0
      %4792 = vmatprep.mubr.f32.mxu0 0.0
      %v4793 = vand.u32 %v2612, 4294901760
      %4794 = vmatmul.mubr.f32.gmra.mrb[0].mxu0 %v4793
      %v4795 = vpop.f32.mrb[0].mxu0
      %v4796 = vadd.f32 %v4633, %v4795
      %v4797 = vpop.f32.mrb[0].mxu0
      %4798 = vmatprep.mubr.f32.mxu0 0.0
      %v4799 = vand.u32 %v2615, 4294901760
      %4800 = vmatmul.mubr.f32.gmra.mrb[0].mxu0 %v4799
      %v4801 = vpop.f32.mrb[0].mxu0
      %v4802 = vadd.f32 %v4639, %v4801
      %v4803 = vpop.f32.mrb[0].mxu0
      %4804 = vmatprep.mubr.f32.mxu0 0.0
      %v4805 = vand.u32 %v2618, 4294901760
      %4806 = vmatmul.mubr.f32.gmra.mrb[0].mxu0 %v4805
      %v4807 = vpop.f32.mrb[0].mxu0
      %v4808 = vadd.f32 %v4645, %v4807
      %v4809 = vpop.f32.mrb[0].mxu0
      %4810 = vmatprep.mubr.f32.mxu0 0.0
      %v4811 = vand.u32 %v2621, 4294901760
      %4812 = vmatmul.mubr.f32.gmra.mrb[0].mxu0 %v4811
      %v4813 = vpop.f32.mrb[0].mxu0
      %v4814 = vadd.f32 %v4651, %v4813
      %v4815 = vpop.f32.mrb[0].mxu0
      %4816 = vmatprep.mubr.f32.mxu0 0.0
      %v4817 = vand.u32 %v2624, 4294901760
      %4818 = vmatmul.mubr.f32.gmra.mrb[0].mxu0 %v4817
      %v4819 = vpop.f32.mrb[0].mxu0
      %v4820 = vadd.f32 %v4657, %v4819
      %v4821 = vpop.f32.mrb[0].mxu0
      %4822 = vmatprep.mubr.f32.mxu0 0.0
      %v4823 = vand.u32 %v2627, 4294901760
      %4824 = vmatmul.mubr.f32.gmra.mrb[0].mxu0 %v4823
      %v4825 = vpop.f32.mrb[0].mxu0
      %v4826 = vadd.f32 %v4663, %v4825
      %v4827 = vpop.f32.mrb[0].mxu0
      %4828 = vmatprep.mubr.f32.mxu0 0.0
      %v4829 = vand.u32 %v2630, 4294901760
      %4830 = vmatmul.mubr.f32.gmra.mrb[0].mxu0 %v4829
      %v4831 = vpop.f32.mrb[0].mxu0
      %v4832 = vadd.f32 %v4669, %v4831
      %v4833 = vpop.f32.mrb[0].mxu0
      %4834 = vmatprep.mubr.f32.mxu0 0.0
      %v4835 = vand.u32 %v2633, 4294901760
      %4836 = vmatmul.mubr.f32.gmra.mrb[0].mxu0 %v4835
      %v4837 = vpop.f32.mrb[0].mxu0
      %v4838 = vadd.f32 %v4675, %v4837
      %v4839 = vpop.f32.mrb[0].mxu0
      %4840 = vmatprep.mubr.f32.mxu0 0.0
      %v4841 = vand.u32 %v2636, 4294901760
      %4842 = vmatmul.mubr.f32.gmra.mrb[0].mxu0 %v4841
      %v4843 = vpop.f32.mrb[0].mxu0
      %v4844 = vadd.f32 %v4681, %v4843
      %v4845 = vpop.f32.mrb[0].mxu0
      %4846 = vmatprep.mubr.f32.mxu0 0.0
      %v4847 = vand.u32 %v2639, 4294901760
      %4848 = vmatmul.mubr.f32.gmra.mrb[0].mxu0 %v4847
      %v4849 = vpop.f32.mrb[0].mxu0
      %v4850 = vadd.f32 %v4687, %v4849
      %v4851 = vpop.f32.mrb[0].mxu0
      %4852 = vmatprep.mubr.f32.mxu0 0.0
      %v4853 = vand.u32 %v2642, 4294901760
      %4854 = vmatmul.mubr.f32.gmra.mrb[0].mxu0 %v4853
      %v4855 = vpop.f32.mrb[0].mxu0
      %v4856 = vadd.f32 %v4693, %v4855
      %v4857 = vpop.f32.mrb[0].mxu0
      %4858 = vmatprep.mubr.f32.mxu0 0.0
      %v4859 = vand.u32 %v2645, 4294901760
      %4860 = vmatmul.mubr.f32.gmra.mrb[0].mxu0 %v4859
      %v4861 = vpop.f32.mrb[0].mxu0
      %v4862 = vadd.f32 %v4699, %v4861
      %v4863 = vpop.f32.mrb[0].mxu0
      %4864 = vmatprep.mubr.f32.mxu0 0.0
      %v4865 = vand.u32 %v2648, 4294901760
      %4866 = vmatmul.mubr.f32.gmra.mrb[0].mxu0 %v4865
      %v4867 = vpop.f32.mrb[0].mxu0
      %v4868 = vadd.f32 %v4705, %v4867
      %v4869 = vpop.f32.mrb[0].mxu0
      %4870 = vmatprep.mubr.f32.mxu0 0.0
      %v4871 = vand.u32 %v2651, 4294901760
      %4872 = vmatmul.mubr.f32.gmra.mrb[0].mxu0 %v4871
      %v4873 = vpop.f32.mrb[0].mxu0
      %v4874 = vadd.f32 %v4711, %v4873
      %v4875 = vpop.f32.mrb[0].mxu0
      %4876 = vmatprep.mubr.f32.mxu0 0.0
      %v4877 = vand.u32 %v2654, 4294901760
      %4878 = vmatmul.mubr.f32.gmra.mrb[0].mxu0 %v4877
      %v4879 = vpop.f32.mrb[0].mxu0
      %v4880 = vadd.f32 %v4717, %v4879
      %v4881 = vpop.f32.mrb[0].mxu0
      %4882 = vmatprep.mubr.f32.mxu0 0.0
      %v4883 = vand.u32 %v2657, 4294901760
      %4884 = vmatmul.mubr.f32.gmra.mrb[0].mxu0 %v4883
      %v4885 = vpop.f32.mrb[0].mxu0
      %v4886 = vadd.f32 %v4723, %v4885
      %v4887 = vpop.f32.mrb[0].mxu0
      %4888 = vdwg.mxu0
      %4889 = vst.msk [vmem:[%s511] sm:$0xff] %vm551, %v4796
      %4890 = vst.msk [vmem:[%s511 + $0x8] sm:$0xff] %vm551, %v4802
      %4891 = vst.msk [vmem:[%s511 + $0x10] sm:$0xff] %vm551, %v4808
      %4892 = vst.msk [vmem:[%s511 + $0x18] sm:$0xff] %vm551, %v4814
      %4893 = vst.msk [vmem:[%s511 + $0x20] sm:$0xff] %vm551, %v4820
      %4894 = vst.msk [vmem:[%s511 + $0x28] sm:$0xff] %vm551, %v4826
      %4895 = vst.msk [vmem:[%s511 + $0x30] sm:$0xff] %vm551, %v4832
      %4896 = vst.msk [vmem:[%s511 + $0x38] sm:$0xff] %vm551, %v4838
      %4897 = vst.msk [vmem:[%s511 + $0x40] sm:$0xff] %vm551, %v4844
      %4898 = vst.msk [vmem:[%s511 + $0x48] sm:$0xff] %vm551, %v4850
      %4899 = vst.msk [vmem:[%s511 + $0x50] sm:$0xff] %vm551, %v4856
      %4900 = vst.msk [vmem:[%s511 + $0x58] sm:$0xff] %vm551, %v4862
      %4901 = vst.msk [vmem:[%s511 + $0x60] sm:$0xff] %vm551, %v4868
      %4902 = vst.msk [vmem:[%s511 + $0x68] sm:$0xff] %vm551, %v4874
      %4903 = vst.msk [vmem:[%s511 + $0x70] sm:$0xff] %vm551, %v4880
      %4904 = vst.msk [vmem:[%s511 + $0x78] sm:$0xff] %vm551, %v4886
      %s4905 = smul.u32 16, %s29
      %p4906 = scmp.lt.s32.totalorder %s28, 1
      %s4907 = scalar_select %p4906, %s28, 1
      %p4908 = scmp.lt.s32.totalorder %s4905, 15
      %s4909 = scalar_select %p4908, %s4905, 15
      %s4910 = smul.addr %s4907, 16
      %s4911 = sadd.s32 %s4909, %s4910
      %s4912 = smul.addr %s4911, 8
      %s4913 = scalar_lea.vmem %s11, %s4912
      %s4914 = smul.u32 16, %s29
      %p4915 = scmp.lt.s32.totalorder %s28, 1
      %s4916 = scalar_select %p4915, %s28, 1
      %p4917 = scmp.lt.s32.totalorder %s4914, 15
      %s4918 = scalar_select %p4917, %s4914, 15
      %s4919 = smul.addr %s4916, 16
      %s4920 = sadd.s32 %s4918, %s4919
      %s4921 = smul.addr %s4920, 8
      %s4922 = scalar_lea.vmem %s12, %s4921
      // Predicated region
      $region65: #{tpu_custom_call.1} parent=63 // pred_check
        %p4923 = pneg %p301
      $region66: #{tpu_custom_call.1} parent=63 // pred_check_branch
        %4925 = sbr.rel (%p4923) target = $region68
      $region67: #{tpu_custom_call.1} parent=63 // pred_region
        %s4926 = smul.u32 16, %s29
      $region68: #{tpu_custom_call.1} parent=63 // pred_fallthru
        _
      // Predicated region
      $region69: #{tpu_custom_call.1} parent=63 // pred_check
        %p4927 = pneg %p329
      $region70: #{tpu_custom_call.1} parent=63 // pred_check_branch
        %4929 = sbr.rel (%p4927) target = $region72
      $region71: #{tpu_custom_call.1} parent=63 // pred_region
        %s4930 = smul.u32 16, %s29
      $region72: #{tpu_custom_call.1} parent=63 // pred_fallthru
        _
    $region64: #{tpu_custom_call.1} parent=5 // pred_fallthru
      _
    %p4931 = scmp.le.s32.totalorder 2, %s19
    // Predicated region
    $region73: #{tpu_custom_call.1} parent=5 // pred_check
      %p4932 = pneg %p4931
    $region74: #{tpu_custom_call.1} parent=5 // pred_check_branch
      %4934 = sbr.rel (%p4932) target = $region76
    $region75: #{tpu_custom_call.1} parent=5 // pred_region
      %s4935 = ssub.s32 %s19, 2
      // Predicated region
      $region77: #{tpu_custom_call.1} parent=75 // pred_check
        %p4936 = pneg %p307
      $region78: #{tpu_custom_call.1} parent=75 // pred_check_branch
        %4938 = sbr.rel (%p4936) target = $region80
      $region79: #{tpu_custom_call.1} parent=75 // pred_region
        %s4939 = smul.u32 16, %s31
        %p4940 = scmp.lt.s32.totalorder %s30, 1
        %s4941 = scalar_select %p4940, %s30, 1
        %p4942 = scmp.lt.s32.totalorder %s4939, 15
        %s4943 = scalar_select %p4942, %s4939, 15
        %s4944 = smul.addr %s4941, 16
        %s4945 = sadd.s32 %s4943, %s4944
        %s4946 = smul.addr %s4945, 8
        %s4947 = scalar_lea.vmem %s11, %s4946
      $region80: #{tpu_custom_call.1} parent=75 // pred_fallthru
        _
      // Predicated region
      $region81: #{tpu_custom_call.1} parent=75 // pred_check
        %p4948 = pneg %p335
      $region82: #{tpu_custom_call.1} parent=75 // pred_check_branch
        %4950 = sbr.rel (%p4948) target = $region84
      $region83: #{tpu_custom_call.1} parent=75 // pred_region
        %s4951 = smul.u32 16, %s31
        %p4952 = scmp.lt.s32.totalorder %s30, 1
        %s4953 = scalar_select %p4952, %s30, 1
        %p4954 = scmp.lt.s32.totalorder %s4951, 15
        %s4955 = scalar_select %p4954, %s4951, 15
        %s4956 = smul.addr %s4953, 16
        %s4957 = sadd.s32 %s4955, %s4956
        %s4958 = smul.addr %s4957, 8
        %s4959 = scalar_lea.vmem %s12, %s4958
      $region84: #{tpu_custom_call.1} parent=75 // pred_fallthru
        _
    $region76: #{tpu_custom_call.1} parent=5 // pred_fallthru
      _
  $region6: #{tpu_custom_call.1} parent=0 // loop_footer
    %s23 = sadd.s32 1, %s19
  $region7: #{tpu_custom_call.1} parent=0 // loop_footer_branch
    %18 = sbr.rel target = $region3
  $region8: #{tpu_custom_call.1} parent=0 // loop_exit
    _

</llo_original>
